<compile_context>
chip_gen: v6e
topology: v6e:2x2x1
jax: 0.10.0
libtpu: 0.0.40
codegen_flags: <defaults>
</compile_context>

<pallas_src>
import functools
import math

import jax
import jax.numpy as jnp
from jax import lax
from jax.experimental import pallas as pl
from jax.experimental.pallas import tpu as pltpu


def _round_up(a, b):
    return (a + b - 1) // b * b


# ---------------------------------------------------------------------------
# Pallas kernel: per-edge MLP + masked max over K neighbors, chunked over the
# query dimension so intermediates stay small.
#   feats_ref : (TM*K, C8) bf16   edge features + constant-1 column
#   mask_ref  : (TM, K)    f32    1.0 = valid neighbor
#   w1_ref    : (C8, H1)   bf16   last row = b1 (bias folded)
#   w2_ref    : (H1, H2)   bf16
#   b2_ref    : (1, H2)    f32
#   out_ref   : (TM, H2)   f32
# ---------------------------------------------------------------------------
def _sa_mlp_max_kernel(feats_ref, mask_ref, w1_ref, w2_ref, b2_ref, out_ref,
                       *, chunk_m):
    TM, K = mask_ref.shape
    H2 = out_ref.shape[-1]
    n_chunks = TM // chunk_m

    # Hoist weight / bias loads out of the chunk loop.
    w1 = w1_ref[...]                                     # (C8, H1) bf16
    w2 = w2_ref[...]                                     # (H1, H2) bf16
    b2 = b2_ref[...]                                     # (1, H2)  f32

    def body(j, carry):
        row0 = pl.multiple_of(j * chunk_m, chunk_m)
        erow0 = pl.multiple_of(j * (chunk_m * K), chunk_m * K)

        f = feats_ref[pl.ds(erow0, chunk_m * K), :]      # (cm*K, C8) bf16
        h = jnp.dot(f, w1, preferred_element_type=jnp.float32)
        h = jnp.maximum(h, 0.0)                          # bias1 folded into w1
        h = jnp.dot(h.astype(jnp.bfloat16), w2,
                    preferred_element_type=jnp.float32)
        h = jnp.maximum(h + b2, 0.0)                     # (cm*K, H2) f32, >= 0

        h = h.reshape(chunk_m, K, H2)                    # leading-dim split only
        m = mask_ref[pl.ds(row0, chunk_m), :]            # (cm, K) f32
        # Exact because h >= 0 post-ReLU; all-invalid rows reduce to 0.
        red = jnp.max(h * m[:, :, None], axis=1)         # (cm, H2)
        out_ref[pl.ds(row0, chunk_m), :] = red.astype(out_ref.dtype)
        return carry

    lax.fori_loop(0, n_chunks, body, 0, unroll=True)


def sa_mlp_max(feats, mask, w1, b1, w2, b2, *, tile_m=128, chunk_m=32):
    """feats: (M, K, C) f32, mask: (M, K) -> (M, H2) f32."""
    M, K, C = feats.shape
    H1 = w1.shape[1]
    H2 = w2.shape[1]
    C8 = C + 1                                   # constant-1 column (bias fold)

    # Keep >= 2 grid steps when possible so v7x's two TensorCores both get a
    # share of the ("parallel",) grid axis; tile_m stays a multiple of chunk_m.
    half = max(chunk_m, _round_up(_round_up(M, chunk_m) // 2, chunk_m))
    tile_m = min(_round_up(tile_m, chunk_m), half)
    chunk_m = min(chunk_m, tile_m)
    M_pad = _round_up(M, tile_m)
    grid = (M_pad // tile_m,)

    ones = jnp.ones((M, K, 1), jnp.float32)
    feats_aug = jnp.concatenate([feats.astype(jnp.float32), ones], axis=-1)
    feats_p = jnp.pad(feats_aug, ((0, M_pad - M), (0, 0), (0, 0)))
    feats2 = feats_p.reshape(M_pad * K, C8).astype(jnp.bfloat16)
    mask_p = jnp.pad(mask.astype(jnp.float32), ((0, M_pad - M), (0, 0)))

    w1_aug = jnp.concatenate([w1, b1.reshape(1, H1)], axis=0).astype(jnp.bfloat16)
    w2b = w2.astype(jnp.bfloat16)
    b2f = b2.reshape(1, H2).astype(jnp.float32)

    out = pl.pallas_call(
        functools.partial(_sa_mlp_max_kernel, chunk_m=chunk_m),
        out_shape=jax.ShapeDtypeStruct((M_pad, H2), jnp.float32),
        grid=grid,
        in_specs=[
            pl.BlockSpec((tile_m * K, C8), lambda i: (i, 0)),
            pl.BlockSpec((tile_m, K), lambda i: (i, 0)),
            pl.BlockSpec((C8, H1), lambda i: (0, 0)),
            pl.BlockSpec((H1, H2), lambda i: (0, 0)),
            pl.BlockSpec((1, H2), lambda i: (0, 0)),
        ],
        out_specs=pl.BlockSpec((tile_m, H2), lambda i: (i, 0)),
        compiler_params=pltpu.CompilerParams(
            dimension_semantics=("parallel",),
            vmem_limit_bytes=32 * 1024 * 1024),
    )(feats2, mask_p, w1_aug, w2b, b2f)
    return out[:M, :H2]


# ---------------------------------------------------------------------------
# Plain-JAX glue: farthest point sampling + radius neighbor search + gathers.
# ---------------------------------------------------------------------------
def _fps_one_batch(pos_b, n_sample):
    # pos_b: (N, 3). Deterministic start at index 0 (PyG uses a random start).
    N = pos_b.shape[0]

    def body(i, state):
        dists, sel = state
        last = sel[i - 1]
        d = jnp.sum((pos_b - pos_b[last]) ** 2, axis=-1)
        dists = jnp.minimum(dists, d)
        nxt = jnp.argmax(dists).astype(jnp.int32)
        sel = sel.at[i].set(nxt)
        return dists, sel

    sel = jnp.zeros((n_sample,), jnp.int32)
    dists = jnp.full((N,), jnp.inf, jnp.float32)
    _, sel = lax.fori_loop(1, n_sample, body, (dists, sel))
    return sel


def sa_module_forward(x, pos, batch, *, ratio, r, w1, b1, w2, b2,
                      num_batches, points_per_batch, max_num_neighbors=64):
    Ntot = pos.shape[0]
    B, N = num_batches, points_per_batch
    n_sample = int(math.ceil(ratio * N))

    # fps(pos, batch, ratio) -- equal-sized batches, sampled per batch.
    pos_bn = pos.reshape(B, N, 3)
    sel = jax.vmap(lambda p: _fps_one_batch(p, n_sample))(pos_bn)  # (B, n_sample)
    offsets = (jnp.arange(B, dtype=jnp.int32) * N)[:, None]
    idx = (sel + offsets).reshape(-1)                              # (M,)

    pos_q = pos[idx]
    batch_q = batch[idx]
    K = max_num_neighbors

    # radius(pos, pos[idx], r, batch, batch[idx], max_num_neighbors=K):
    # keep up to K in-radius, same-batch neighbors per query (lowest source
    # index first, loosely matching PyG's "first K found" behavior).
    d2 = jnp.sum((pos_q[:, None, :] - pos[None, :, :]) ** 2, axis=-1)  # (M,Ntot)
    valid = (d2 <= r * r) & (batch_q[:, None] == batch[None, :])
    key = jnp.where(valid, jnp.arange(Ntot, dtype=jnp.int32)[None, :],
                    jnp.int32(Ntot))
    kk = min(K, Ntot)
    neg_top, _ = lax.top_k(-key, kk)                # K smallest keys, no full sort
    nbr_raw = -neg_top                              # (M, kk), ascending indices
    if kk < K:
        nbr_raw = jnp.pad(nbr_raw, ((0, 0), (0, K - kk)), constant_values=Ntot)
    nbr_valid = nbr_raw < Ntot                      # (M, K)
    nbr_idx = jnp.where(nbr_valid, nbr_raw, 0).astype(jnp.int32)

    # PointNetConv message: nn([x_j, pos_j - pos_i]); aggregate: max per dst.
    x_j = x[nbr_idx]                                               # (M, K, F)
    rel = pos[nbr_idx] - pos_q[:, None, :]                         # (M, K, 3)
    feats = jnp.concatenate([x_j, rel], axis=-1).astype(jnp.float32)  # (M,K,C)
    mask = nbr_valid.astype(jnp.float32)

    x_out = sa_mlp_max(feats, mask, w1, b1, w2, b2)                # (M, H2)
    return x_out, pos_q, batch_q


# ---------------------------------------------------------------------------
if __name__ == "__main__":
    # Small deterministic problem: B=2 point clouds of 64 points, 4 features.
    B, N, F_IN = 2, 64, 4
    H1, H2 = 32, 64
    RATIO, R = 0.5, 0.4
    C_IN = F_IN + 3

    key = jax.random.PRNGKey(0)
    k_pos, k_x, k_w1, k_b1, k_w2, k_b2 = jax.random.split(key, 6)

    pos = jax.random.uniform(k_pos, (B * N, 3), dtype=jnp.float32)
    x = jax.random.normal(k_x, (B * N, F_IN), dtype=jnp.float32)
    batch = jnp.repeat(jnp.arange(B, dtype=jnp.int32), N)

    # MLP parameters (nn = Lin(C_IN,H1)->ReLU->Lin(H1,H2)->ReLU).
    w1 = 0.1 * jax.random.normal(k_w1, (C_IN, H1), dtype=jnp.float32)
    b1 = 0.1 * jax.random.normal(k_b1, (1, H1), dtype=jnp.float32)
    w2 = 0.1 * jax.random.normal(k_w2, (H1, H2), dtype=jnp.float32)
    b2 = 0.1 * jax.random.normal(k_b2, (1, H2), dtype=jnp.float32)

    x_out, pos_out, batch_out = sa_module_forward(
        x, pos, batch, ratio=RATIO, r=R,
        w1=w1, b1=b1, w2=w2, b2=b2,
        num_batches=B, points_per_batch=N, max_num_neighbors=64)

    jax.block_until_ready((x_out, pos_out, batch_out))

    M = B * int(math.ceil(RATIO * N))
    assert x_out.shape == (M, H2)
    assert pos_out.shape == (M, 3)
    assert batch_out.shape == (M,)
    assert bool(jnp.all(jnp.isfinite(x_out)))
    assert bool(jnp.all(x_out >= 0.0))   # post-ReLU max must be non-negative

    print("KERNEL_OK")
</pallas_src>

<mosaic_0001>
module attributes {stable_mosaic.version = 11 : i64} {
  func.func @_sa_mlp_max_kernel(%arg0: i32, %arg1: memref<2048x8xbf16, #tpu.memory_space<vmem>>, %arg2: memref<32x64xf32, #tpu.memory_space<vmem>>, %arg3: memref<8x32xbf16, #tpu.memory_space<vmem>>, %arg4: memref<32x64xbf16, #tpu.memory_space<vmem>>, %arg5: memref<1x64xf32, #tpu.memory_space<vmem>>, %arg6: memref<32x64xf32, #tpu.memory_space<vmem>>) attributes {dimension_semantics = [#tpu.dimension_semantics<parallel>], iteration_bounds = array<i64: 2>, scalar_prefetch = 0 : i64, scratch_operands = 0 : i64, tpu.core_type = #tpu.core_type<tc>, window_params = [{transform_indices = @transform_0, window_bounds = array<i64: 2048, 8>}, {transform_indices = @transform_1, window_bounds = array<i64: 32, 64>}, {pipeline_mode = #tpu.pipeline_mode<synchronous>, transform_indices = @transform_2, window_bounds = array<i64: 8, 32>}, {pipeline_mode = #tpu.pipeline_mode<synchronous>, transform_indices = @transform_3, window_bounds = array<i64: 32, 64>}, {pipeline_mode = #tpu.pipeline_mode<synchronous>, transform_indices = @transform_4, window_bounds = array<i64: 1, 64>}, {transform_indices = @transform_5, window_bounds = array<i64: 32, 64>}]} {
    %c0 = arith.constant 0 : index
    %c0_0 = arith.constant 0 : index
    %0 = vector.load %arg3[%c0, %c0_0] : memref<8x32xbf16, #tpu.memory_space<vmem>>, vector<8x32xbf16>
    %c0_1 = arith.constant 0 : index
    %c0_2 = arith.constant 0 : index
    %1 = vector.load %arg4[%c0_1, %c0_2] : memref<32x64xbf16, #tpu.memory_space<vmem>>, vector<32x64xbf16>
    %c0_3 = arith.constant 0 : index
    %c0_4 = arith.constant 0 : index
    %2 = vector.load %arg5[%c0_3, %c0_4] : memref<1x64xf32, #tpu.memory_space<vmem>>, vector<1x64xf32>
    %c0_i32 = arith.constant 0 : i32
    %c32_i32 = arith.constant 32 : i32
    %3 = arith.muli %c0_i32, %c32_i32 : i32
    %4 = tpu.assume_multiple %3, 32 : i32
    %c2048_i32 = arith.constant 2048 : i32
    %5 = arith.muli %c0_i32, %c2048_i32 : i32
    %6 = tpu.assume_multiple %5, 2048 : i32
    %7 = arith.index_cast %6 : i32 to index
    %c0_5 = arith.constant 0 : index
    %8 = vector.load %arg1[%7, %c0_5] : memref<2048x8xbf16, #tpu.memory_space<vmem>>, vector<2048x8xbf16>
    %cst = arith.constant dense<0.000000e+00> : vector<2048x32xf32>
    %9 = tpu.matmul %8, %0, %cst {dimension_numbers = #tpu.dot_dimension_numbers<[1], [0], [0], [1], [0, 0, 1, 1], [], []>} : vector<2048x8xbf16>, vector<8x32xbf16>, vector<2048x32xf32> -> vector<2048x32xf32>
    %cst_6 = arith.constant 0.000000e+00 : f32
    %10 = vector.broadcast %cst_6 : f32 to vector<2048x32xf32>
    %11 = arith.maximumf %9, %10 : vector<2048x32xf32>
    %12 = arith.truncf %11 : vector<2048x32xf32> to vector<2048x32xbf16>
    %cst_7 = arith.constant dense<0.000000e+00> : vector<2048x64xf32>
    %13 = tpu.matmul %12, %1, %cst_7 {dimension_numbers = #tpu.dot_dimension_numbers<[1], [0], [0], [1], [0, 0, 1, 1], [], []>} : vector<2048x32xbf16>, vector<32x64xbf16>, vector<2048x64xf32> -> vector<2048x64xf32>
    %14 = vector.broadcast %2 : vector<1x64xf32> to vector<2048x64xf32>
    %15 = arith.addf %13, %14 : vector<2048x64xf32>
    %cst_8 = arith.constant 0.000000e+00 : f32
    %16 = vector.broadcast %cst_8 : f32 to vector<2048x64xf32>
    %17 = arith.maximumf %15, %16 : vector<2048x64xf32>
    %18 = vector.shape_cast %17 : vector<2048x64xf32> to vector<32x64x64xf32>
    %19 = arith.index_cast %4 : i32 to index
    %c0_9 = arith.constant 0 : index
    %20 = vector.load %arg2[%19, %c0_9] : memref<32x64xf32, #tpu.memory_space<vmem>>, vector<32x64xf32>
    %21 = vector.shape_cast %20 : vector<32x64xf32> to vector<32x64x1xf32>
    %22 = vector.broadcast %21 : vector<32x64x1xf32> to vector<32x64x64xf32>
    %23 = arith.mulf %18, %22 : vector<32x64x64xf32>
    %cst_10 = arith.constant dense<0xFF800000> : vector<32x64xf32>
    %24 = vector.multi_reduction <maximumf>, %23, %cst_10 [1] : vector<32x64x64xf32> to vector<32x64xf32>
    %25 = arith.index_cast %4 : i32 to index
    %c0_11 = arith.constant 0 : index
    %26 = vector.load %arg6[%25, %c0_11] : memref<32x64xf32, #tpu.memory_space<vmem>>, vector<32x64xf32>
    tpu.vector_store %arg6[%25, %c0_11], %24 {strides = array<i32>} : memref<32x64xf32, #tpu.memory_space<vmem>>, vector<32x64xf32>,
    %c1_i32 = arith.constant 1 : i32
    return
  }
  func.func @transform_0(%arg0: i32) -> (i32, i32) {
    %c0_i32 = arith.constant 0 : i32
    %c0_i32_0 = arith.constant 0 : i32
    return %arg0, %c0_i32 : i32, i32
  }
  func.func @transform_1(%arg0: i32) -> (i32, i32) {
    %c0_i32 = arith.constant 0 : i32
    %c0_i32_0 = arith.constant 0 : i32
    return %arg0, %c0_i32 : i32, i32
  }
  func.func @transform_2(%arg0: i32) -> (i32, i32) {
    %c0_i32 = arith.constant 0 : i32
    %c0_i32_0 = arith.constant 0 : i32
    %c0_i32_1 = arith.constant 0 : i32
    return %c0_i32, %c0_i32_0 : i32, i32
  }
  func.func @transform_3(%arg0: i32) -> (i32, i32) {
    %c0_i32 = arith.constant 0 : i32
    %c0_i32_0 = arith.constant 0 : i32
    %c0_i32_1 = arith.constant 0 : i32
    return %c0_i32, %c0_i32_0 : i32, i32
  }
  func.func @transform_4(%arg0: i32) -> (i32, i32) {
    %c0_i32 = arith.constant 0 : i32
    %c0_i32_0 = arith.constant 0 : i32
    %c0_i32_1 = arith.constant 0 : i32
    return %c0_i32, %c0_i32_0 : i32, i32
  }
  func.func @transform_5(%arg0: i32) -> (i32, i32) {
    %c0_i32 = arith.constant 0 : i32
    %c0_i32_0 = arith.constant 0 : i32
    return %arg0, %c0_i32 : i32, i32
  }
}

</mosaic_0001>

<llo_original>
// kernel: tpu_custom_call.1
$region0: #{tpu_custom_call.1}
  #allocation0 [shape = 'u32[]', space=smem, size = 0x4, offset = 0x4, fixed_abs, tag = 'smem constant byte address 0x4 - core index']
  #allocation1 [shape = 'u32[144,128]{1,0:T(1,128)}', space=vmem, size = 0x12000, scoped, tag = 'internal scratch']
  %s0 = inlined_call_operand.vmem [shape: bf16[4096,8], index: 0, kind: input, shape index: {}]
  %s1 = inlined_call_operand.vmem [shape: f32[64,64], index: 1, kind: input, shape index: {}]
  %s2 = inlined_call_operand.vmem [shape: bf16[8,32], index: 2, kind: input, shape index: {}]
  %s3 = inlined_call_operand.vmem [shape: bf16[32,64], index: 3, kind: input, shape index: {}]
  %s4 = inlined_call_operand.vmem [shape: f32[1,64], index: 4, kind: input, shape index: {}]
  %s5 = inlined_call_operand.hbm [shape: f32[64,64], index: 5, kind: output, shape index: {}]
  %s6 = sld [smem:[#allocation0]]
  $region53: #{tpu_custom_call.1} parent=0
    _
  %s8 = ssub.s32 1, %s6
  %s9 = scalar_select 0, %s8, %s6
  $region1: #{tpu_custom_call.1} parent=0
    #allocation2 [shape = 'u8[32768]{0}', space=vmem, size = 0x8000, scoped, tag = 'output window, operand 0']
    #allocation3 [shape = 's32[2]{0}', space=sflag, size = 0x8, scoped, tag = 'scoped memory for tpu_custom_call.1']
    %10 = vsyncpa [#allocation3], 0
    %s11 = scalar_lea.sflag [#allocation3], 1
    %12 = vsyncpa %s11, 0
    loop: start=0, step=1, limit=4
    $region2: #{tpu_custom_call.1} parent=1 // loop_pre_header
      _
    $region3: #{tpu_custom_call.1} parent=1 // loop_header
      %s14 = sphi 0, %s18
      %p15 = scmp.ge.s32.totalorder %s14, 4
      %s24 = sphi 0, %s26
      %s27 = sphi 0, %s24
      %s28 = sphi 0, %s27
      %s44 = sphi 0, %s28
      %s50 = sphi 0, %s52
      %s53 = sphi 0, %s50
      %s54 = sphi 0, %s53
      %s70 = sphi 0, %s54
      %s74 = sphi 0, %s74
      %s76 = sphi 0, %s74
      %s77 = sphi 0, %s76
      %s91 = sphi 0, %s77
      %s95 = sphi 0, %s95
      %s97 = sphi 0, %s95
      %s98 = sphi 0, %s97
      %s112 = sphi 0, %s98
      %s116 = sphi 0, %s116
      %s118 = sphi 0, %s116
      %s119 = sphi 0, %s118
      %s133 = sphi 0, %s119
      %s139 = sphi 0, %s141
      %s142 = sphi 0, %s139
      %s143 = sphi 0, %s142
      %s159 = sphi 0, %s143
    $region4: #{tpu_custom_call.1} parent=1 // loop_header_branch
      %17 = sbr.rel (%p15) target = $region8
    $region5: #{tpu_custom_call.1} parent=1 // loop_body
      %s19 = ssub.s32 %s14, 1
      %s20 = ssub.s32 %s14, 2
      %s21 = sadd.s32 %s14, 1
      %s22 = ssub.s32 %s14, %s21
      %p23 = scmp.eq.s32.totalorder %s22, 0
      %s25 = sadd.s32 %s24, 1
      %s26 = scalar_select %p23, %s24, %s25
      %p29 = pneg %p23
      %p30 = scmp.eq.s32.totalorder %s14, 1
      %p31 = por %p29, %p30
      %p32 = scmp.ne.s32.totalorder %s24, %s27
      %p33 = scmp.eq.s32.totalorder %s14, 0
      %p34 = por %p32, %p33
      %p35 = scmp.ne.s32.totalorder %s24, %s27
      %p36 = scmp.eq.s32.totalorder %s19, 1
      %p37 = por %p35, %p36
      %p38 = scmp.ne.s32.totalorder %s27, %s28
      %p39 = scmp.eq.s32.totalorder %s19, 0
      %p40 = por %p38, %p39
      %p41 = scmp.ne.s32.totalorder %s27, %s28
      %p42 = scmp.eq.s32.totalorder %s20, 1
      %p43 = por %p41, %p42
      %p45 = scmp.ne.s32.totalorder %s28, %s44
      %p46 = scmp.eq.s32.totalorder %s20, 0
      %p47 = por %p45, %p46
      %s48 = ssub.s32 %s14, %s21
      %p49 = scmp.eq.s32.totalorder %s48, 0
      %s51 = sadd.s32 %s50, 1
      %s52 = scalar_select %p49, %s50, %s51
      %p55 = pneg %p49
      %p56 = scmp.eq.s32.totalorder %s14, 1
      %p57 = por %p55, %p56
      %p58 = scmp.ne.s32.totalorder %s50, %s53
      %p59 = scmp.eq.s32.totalorder %s14, 0
      %p60 = por %p58, %p59
      %p61 = scmp.ne.s32.totalorder %s50, %s53
      %p62 = scmp.eq.s32.totalorder %s19, 1
      %p63 = por %p61, %p62
      %p64 = scmp.ne.s32.totalorder %s53, %s54
      %p65 = scmp.eq.s32.totalorder %s19, 0
      %p66 = por %p64, %p65
      %p67 = scmp.ne.s32.totalorder %s53, %s54
      %p68 = scmp.eq.s32.totalorder %s20, 1
      %p69 = por %p67, %p68
      %p71 = scmp.ne.s32.totalorder %s54, %s70
      %p72 = scmp.eq.s32.totalorder %s20, 0
      %p73 = por %p71, %p72
      %s75 = sadd.s32 %s74, 1
      %p78 = scmp.eq.s32.totalorder %s14, 1
      %p79 = scmp.ne.s32.totalorder %s74, %s76
      %p80 = scmp.eq.s32.totalorder %s14, 0
      %p81 = por %p79, %p80
      %p82 = scmp.ne.s32.totalorder %s74, %s76
      %p83 = scmp.eq.s32.totalorder %s19, 1
      %p84 = por %p82, %p83
      %p85 = scmp.ne.s32.totalorder %s76, %s77
      %p86 = scmp.eq.s32.totalorder %s19, 0
      %p87 = por %p85, %p86
      %p88 = scmp.ne.s32.totalorder %s76, %s77
      %p89 = scmp.eq.s32.totalorder %s20, 1
      %p90 = por %p88, %p89
      %p92 = scmp.ne.s32.totalorder %s77, %s91
      %p93 = scmp.eq.s32.totalorder %s20, 0
      %p94 = por %p92, %p93
      %s96 = sadd.s32 %s95, 1
      %p99 = scmp.eq.s32.totalorder %s14, 1
      %p100 = scmp.ne.s32.totalorder %s95, %s97
      %p101 = scmp.eq.s32.totalorder %s14, 0
      %p102 = por %p100, %p101
      %p103 = scmp.ne.s32.totalorder %s95, %s97
      %p104 = scmp.eq.s32.totalorder %s19, 1
      %p105 = por %p103, %p104
      %p106 = scmp.ne.s32.totalorder %s97, %s98
      %p107 = scmp.eq.s32.totalorder %s19, 0
      %p108 = por %p106, %p107
      %p109 = scmp.ne.s32.totalorder %s97, %s98
      %p110 = scmp.eq.s32.totalorder %s20, 1
      %p111 = por %p109, %p110
      %p113 = scmp.ne.s32.totalorder %s98, %s112
      %p114 = scmp.eq.s32.totalorder %s20, 0
      %p115 = por %p113, %p114
      %s117 = sadd.s32 %s116, 1
      %p120 = scmp.eq.s32.totalorder %s14, 1
      %p121 = scmp.ne.s32.totalorder %s116, %s118
      %p122 = scmp.eq.s32.totalorder %s14, 0
      %p123 = por %p121, %p122
      %p124 = scmp.ne.s32.totalorder %s116, %s118
      %p125 = scmp.eq.s32.totalorder %s19, 1
      %p126 = por %p124, %p125
      %p127 = scmp.ne.s32.totalorder %s118, %s119
      %p128 = scmp.eq.s32.totalorder %s19, 0
      %p129 = por %p127, %p128
      %p130 = scmp.ne.s32.totalorder %s118, %s119
      %p131 = scmp.eq.s32.totalorder %s20, 1
      %p132 = por %p130, %p131
      %p134 = scmp.ne.s32.totalorder %s119, %s133
      %p135 = scmp.eq.s32.totalorder %s20, 0
      %p136 = por %p134, %p135
      %s137 = ssub.s32 %s14, %s21
      %p138 = scmp.eq.s32.totalorder %s137, 0
      %s140 = sadd.s32 %s139, 1
      %s141 = scalar_select %p138, %s139, %s140
      %p144 = pneg %p138
      %p145 = scmp.eq.s32.totalorder %s14, 1
      %p146 = por %p144, %p145
      %p147 = scmp.ne.s32.totalorder %s139, %s142
      %p148 = scmp.eq.s32.totalorder %s14, 0
      %p149 = por %p147, %p148
      %p150 = scmp.ne.s32.totalorder %s139, %s142
      %p151 = scmp.eq.s32.totalorder %s19, 1
      %p152 = por %p150, %p151
      %p153 = scmp.ne.s32.totalorder %s142, %s143
      %p154 = scmp.eq.s32.totalorder %s19, 0
      %p155 = por %p153, %p154
      %p156 = scmp.ne.s32.totalorder %s142, %s143
      %p157 = scmp.eq.s32.totalorder %s20, 1
      %p158 = por %p156, %p157
      %p160 = scmp.ne.s32.totalorder %s143, %s159
      %p161 = scmp.eq.s32.totalorder %s20, 0
      %p162 = por %p160, %p161
      %p163 = scmp.le.s32.totalorder 1, %s14
      %p164 = scmp.lt.s32.totalorder %s14, 3
      %p165 = pnand %p163, %p164
      %p166 = pneg %p165
      // Predicated region
      $region9: #{tpu_custom_call.1} parent=5 // pred_check
        _
      $region10: #{tpu_custom_call.1} parent=5 // pred_check_branch
        %168 = sbr.rel (%p165) target = $region12
      $region11: #{tpu_custom_call.1} parent=5 // pred_region
        %s169 = ssub.s32 %s14, 1
        // Predicated region
        $region13: #{tpu_custom_call.1} parent=11 // pred_check
          %p170 = pneg %p87
        $region14: #{tpu_custom_call.1} parent=11 // pred_check_branch
          %172 = sbr.rel (%p170) target = $region16
        $region15: #{tpu_custom_call.1} parent=11 // pred_region
          _
        $region16: #{tpu_custom_call.1} parent=11 // pred_fallthru
          _
        // Predicated region
        $region17: #{tpu_custom_call.1} parent=11 // pred_check
          %p173 = pneg %p108
        $region18: #{tpu_custom_call.1} parent=11 // pred_check_branch
          %175 = sbr.rel (%p173) target = $region20
        $region19: #{tpu_custom_call.1} parent=11 // pred_region
          _
        $region20: #{tpu_custom_call.1} parent=11 // pred_fallthru
          _
        // Predicated region
        $region21: #{tpu_custom_call.1} parent=11 // pred_check
          %p176 = pneg %p129
        $region22: #{tpu_custom_call.1} parent=11 // pred_check_branch
          %178 = sbr.rel (%p176) target = $region24
        $region23: #{tpu_custom_call.1} parent=11 // pred_region
          _
        $region24: #{tpu_custom_call.1} parent=11 // pred_fallthru
          _
      $region12: #{tpu_custom_call.1} parent=5 // pred_fallthru
        _
      %p179 = scmp.lt.s32.totalorder %s14, 2
      // Predicated region
      $region25: #{tpu_custom_call.1} parent=5 // pred_check
        %p180 = pneg %p179
      $region26: #{tpu_custom_call.1} parent=5 // pred_check_branch
        %182 = sbr.rel (%p180) target = $region28
      $region27: #{tpu_custom_call.1} parent=5 // pred_region
        // Predicated region
        $region29: #{tpu_custom_call.1} parent=27 // pred_check
          %p183 = pneg %p34
        $region30: #{tpu_custom_call.1} parent=27 // pred_check_branch
          %185 = sbr.rel (%p183) target = $region32
        $region31: #{tpu_custom_call.1} parent=27 // pred_region
          %s186 = smul.u32 256, %s14
          %p187 = scmp.lt.s32.totalorder %s186, 511
          %s188 = scalar_select %p187, %s186, 511
          %s189 = smul.addr %s188, 4
          %s190 = scalar_lea.vmem %s0, %s189
          %s191 = smul.u32 256, %s14
        $region32: #{tpu_custom_call.1} parent=27 // pred_fallthru
          _
        // Predicated region
        $region33: #{tpu_custom_call.1} parent=27 // pred_check
          %p192 = pneg %p60
        $region34: #{tpu_custom_call.1} parent=27 // pred_check_branch
          %194 = sbr.rel (%p192) target = $region36
        $region35: #{tpu_custom_call.1} parent=27 // pred_region
          %s195 = smul.u32 4, %s14
          %p196 = scmp.lt.s32.totalorder %s195, 7
          %s197 = scalar_select %p196, %s195, 7
          %s198 = smul.addr %s197, 8
          %s199 = scalar_lea.vmem %s1, %s198
          %s200 = smul.u32 4, %s14
        $region36: #{tpu_custom_call.1} parent=27 // pred_fallthru
          _
      $region28: #{tpu_custom_call.1} parent=5 // pred_fallthru
        _
      %p201 = scmp.le.s32.totalorder 1, %s14
      %p202 = scmp.lt.s32.totalorder %s14, 3
      %p203 = pnand %p201, %p202
      %p204 = pneg %p203
      // Predicated region
      $region37: #{tpu_custom_call.1} parent=5 // pred_check
        _
      $region38: #{tpu_custom_call.1} parent=5 // pred_check_branch
        %206 = sbr.rel (%p203) target = $region40
      $region39: #{tpu_custom_call.1} parent=5 // pred_region
        %s207 = ssub.s32 %s14, 1
        %s208 = smul.u32 256, %s19
        %p209 = scmp.lt.s32.totalorder %s208, 511
        %s210 = scalar_select %p209, %s208, 511
        %s211 = smul.addr %s210, 4
        %s212 = scalar_lea.vmem %s0, %s211
        %p213 = pneg %p40
        %p214 = pneg %p37
        %s215 = smul.u32 4, %s19
        %p216 = scmp.lt.s32.totalorder %s215, 7
        %s217 = scalar_select %p216, %s215, 7
        %s218 = smul.addr %s217, 8
        %s219 = scalar_lea.vmem %s1, %s218
        %p220 = pneg %p66
        %p221 = pneg %p63
        %p222 = pneg %p87
        %p223 = pneg %p84
        %p224 = pneg %p108
        %p225 = pneg %p105
        %p226 = pneg %p129
        %p227 = pneg %p126
        %p228 = pneg %p155
        %p229 = pneg %p152
        %s230 = sand.u32 %s142, 1
        %s231 = scalar_lea.sflag [#allocation3], %s230
        %s232 = sand.u32 %s142, 1
        %s233 = smul.addr %s232, 32
        %s234 = scalar_lea.vmem [#allocation2], %s233
        %s235 = smul.u32 256, %s19
        %p236 = scmp.lt.s32.totalorder %s235, 511
        %s237 = scalar_select %p236, %s235, 511
        %s238 = smul.addr %s237, 4
        %s239 = scalar_lea.vmem %s0, %s238
        %s240 = smul.u32 256, %s19
        %s241 = smul.u32 4, %s19
        %p242 = scmp.lt.s32.totalorder %s241, 7
        %s243 = scalar_select %p242, %s241, 7
        %s244 = smul.addr %s243, 8
        %s245 = scalar_lea.vmem %s1, %s244
        %s246 = smul.u32 4, %s19
        %s247 = smul.u32 4, %s19
        %v249 = vld [vmem:[%s2] sm:$0xf]
        %v250 = vld [vmem:[%s3] sm:$0xf]
        %v251 = vld [vmem:[%s3 + $0x4] sm:$0xf]
        %v252 = vld [vmem:[%s3 + $0x8] sm:$0xf]
        %v253 = vld [vmem:[%s3 + $0xc] sm:$0xf]
        %v254 = vld [vmem:[%s4] sm:$0x1]
        %v255 = vld [vmem:[%s239] sm:$0xf]
        %v256 = vld [vmem:[%s239 + $0x4] sm:$0xf]
        %v257 = vld [vmem:[%s239 + $0x8] sm:$0xf]
        %v258 = vld [vmem:[%s239 + $0xc] sm:$0xf]
        %v259 = vld [vmem:[%s239 + $0x10] sm:$0xf]
        %v260 = vld [vmem:[%s239 + $0x14] sm:$0xf]
        %v261 = vld [vmem:[%s239 + $0x18] sm:$0xf]
        %v262 = vld [vmem:[%s239 + $0x1c] sm:$0xf]
        %v263 = vld [vmem:[%s239 + $0x20] sm:$0xf]
        %v264 = vld [vmem:[%s239 + $0x24] sm:$0xf]
        %v265 = vld [vmem:[%s239 + $0x28] sm:$0xf]
        %v266 = vld [vmem:[%s239 + $0x2c] sm:$0xf]
        %v267 = vld [vmem:[%s239 + $0x30] sm:$0xf]
        %v268 = vld [vmem:[%s239 + $0x34] sm:$0xf]
        %v269 = vld [vmem:[%s239 + $0x38] sm:$0xf]
        %v270 = vld [vmem:[%s239 + $0x3c] sm:$0xf]
        %v271 = vld [vmem:[%s239 + $0x40] sm:$0xf]
        %v272 = vld [vmem:[%s239 + $0x44] sm:$0xf]
        %v273 = vld [vmem:[%s239 + $0x48] sm:$0xf]
        %v274 = vld [vmem:[%s239 + $0x4c] sm:$0xf]
        %v275 = vld [vmem:[%s239 + $0x50] sm:$0xf]
        %v276 = vld [vmem:[%s239 + $0x54] sm:$0xf]
        %v277 = vld [vmem:[%s239 + $0x58] sm:$0xf]
        %v278 = vld [vmem:[%s239 + $0x5c] sm:$0xf]
        %v279 = vld [vmem:[%s239 + $0x60] sm:$0xf]
        %v280 = vld [vmem:[%s239 + $0x64] sm:$0xf]
        %v281 = vld [vmem:[%s239 + $0x68] sm:$0xf]
        %v282 = vld [vmem:[%s239 + $0x6c] sm:$0xf]
        %v283 = vld [vmem:[%s239 + $0x70] sm:$0xf]
        %v284 = vld [vmem:[%s239 + $0x74] sm:$0xf]
        %v285 = vld [vmem:[%s239 + $0x78] sm:$0xf]
        %v286 = vld [vmem:[%s239 + $0x7c] sm:$0xf]
        %v287 = vld [vmem:[%s239 + $0x80] sm:$0xf]
        %v288 = vld [vmem:[%s239 + $0x84] sm:$0xf]
        %v289 = vld [vmem:[%s239 + $0x88] sm:$0xf]
        %v290 = vld [vmem:[%s239 + $0x8c] sm:$0xf]
        %v291 = vld [vmem:[%s239 + $0x90] sm:$0xf]
        %v292 = vld [vmem:[%s239 + $0x94] sm:$0xf]
        %v293 = vld [vmem:[%s239 + $0x98] sm:$0xf]
        %v294 = vld [vmem:[%s239 + $0x9c] sm:$0xf]
        %v295 = vld [vmem:[%s239 + $0xa0] sm:$0xf]
        %v296 = vld [vmem:[%s239 + $0xa4] sm:$0xf]
        %v297 = vld [vmem:[%s239 + $0xa8] sm:$0xf]
        %v298 = vld [vmem:[%s239 + $0xac] sm:$0xf]
        %v299 = vld [vmem:[%s239 + $0xb0] sm:$0xf]
        %v300 = vld [vmem:[%s239 + $0xb4] sm:$0xf]
        %v301 = vld [vmem:[%s239 + $0xb8] sm:$0xf]
        %v302 = vld [vmem:[%s239 + $0xbc] sm:$0xf]
        %v303 = vld [vmem:[%s239 + $0xc0] sm:$0xf]
        %v304 = vld [vmem:[%s239 + $0xc4] sm:$0xf]
        %v305 = vld [vmem:[%s239 + $0xc8] sm:$0xf]
        %v306 = vld [vmem:[%s239 + $0xcc] sm:$0xf]
        %v307 = vld [vmem:[%s239 + $0xd0] sm:$0xf]
        %v308 = vld [vmem:[%s239 + $0xd4] sm:$0xf]
        %v309 = vld [vmem:[%s239 + $0xd8] sm:$0xf]
        %v310 = vld [vmem:[%s239 + $0xdc] sm:$0xf]
        %v311 = vld [vmem:[%s239 + $0xe0] sm:$0xf]
        %v312 = vld [vmem:[%s239 + $0xe4] sm:$0xf]
        %v313 = vld [vmem:[%s239 + $0xe8] sm:$0xf]
        %v314 = vld [vmem:[%s239 + $0xec] sm:$0xf]
        %v315 = vld [vmem:[%s239 + $0xf0] sm:$0xf]
        %v316 = vld [vmem:[%s239 + $0xf4] sm:$0xf]
        %v317 = vld [vmem:[%s239 + $0xf8] sm:$0xf]
        %v318 = vld [vmem:[%s239 + $0xfc] sm:$0xf]
        %v319 = vld [vmem:[%s239 + $0x100] sm:$0xf]
        %v320 = vld [vmem:[%s239 + $0x104] sm:$0xf]
        %v321 = vld [vmem:[%s239 + $0x108] sm:$0xf]
        %v322 = vld [vmem:[%s239 + $0x10c] sm:$0xf]
        %v323 = vld [vmem:[%s239 + $0x110] sm:$0xf]
        %v324 = vld [vmem:[%s239 + $0x114] sm:$0xf]
        %v325 = vld [vmem:[%s239 + $0x118] sm:$0xf]
        %v326 = vld [vmem:[%s239 + $0x11c] sm:$0xf]
        %v327 = vld [vmem:[%s239 + $0x120] sm:$0xf]
        %v328 = vld [vmem:[%s239 + $0x124] sm:$0xf]
        %v329 = vld [vmem:[%s239 + $0x128] sm:$0xf]
        %v330 = vld [vmem:[%s239 + $0x12c] sm:$0xf]
        %v331 = vld [vmem:[%s239 + $0x130] sm:$0xf]
        %v332 = vld [vmem:[%s239 + $0x134] sm:$0xf]
        %v333 = vld [vmem:[%s239 + $0x138] sm:$0xf]
        %v334 = vld [vmem:[%s239 + $0x13c] sm:$0xf]
        %v335 = vld [vmem:[%s239 + $0x140] sm:$0xf]
        %v336 = vld [vmem:[%s239 + $0x144] sm:$0xf]
        %v337 = vld [vmem:[%s239 + $0x148] sm:$0xf]
        %v338 = vld [vmem:[%s239 + $0x14c] sm:$0xf]
        %v339 = vld [vmem:[%s239 + $0x150] sm:$0xf]
        %v340 = vld [vmem:[%s239 + $0x154] sm:$0xf]
        %v341 = vld [vmem:[%s239 + $0x158] sm:$0xf]
        %v342 = vld [vmem:[%s239 + $0x15c] sm:$0xf]
        %v343 = vld [vmem:[%s239 + $0x160] sm:$0xf]
        %v344 = vld [vmem:[%s239 + $0x164] sm:$0xf]
        %v345 = vld [vmem:[%s239 + $0x168] sm:$0xf]
        %v346 = vld [vmem:[%s239 + $0x16c] sm:$0xf]
        %v347 = vld [vmem:[%s239 + $0x170] sm:$0xf]
        %v348 = vld [vmem:[%s239 + $0x174] sm:$0xf]
        %v349 = vld [vmem:[%s239 + $0x178] sm:$0xf]
        %v350 = vld [vmem:[%s239 + $0x17c] sm:$0xf]
        %v351 = vld [vmem:[%s239 + $0x180] sm:$0xf]
        %v352 = vld [vmem:[%s239 + $0x184] sm:$0xf]
        %v353 = vld [vmem:[%s239 + $0x188] sm:$0xf]
        %v354 = vld [vmem:[%s239 + $0x18c] sm:$0xf]
        %v355 = vld [vmem:[%s239 + $0x190] sm:$0xf]
        %v356 = vld [vmem:[%s239 + $0x194] sm:$0xf]
        %v357 = vld [vmem:[%s239 + $0x198] sm:$0xf]
        %v358 = vld [vmem:[%s239 + $0x19c] sm:$0xf]
        %v359 = vld [vmem:[%s239 + $0x1a0] sm:$0xf]
        %v360 = vld [vmem:[%s239 + $0x1a4] sm:$0xf]
        %v361 = vld [vmem:[%s239 + $0x1a8] sm:$0xf]
        %v362 = vld [vmem:[%s239 + $0x1ac] sm:$0xf]
        %v363 = vld [vmem:[%s239 + $0x1b0] sm:$0xf]
        %v364 = vld [vmem:[%s239 + $0x1b4] sm:$0xf]
        %v365 = vld [vmem:[%s239 + $0x1b8] sm:$0xf]
        %v366 = vld [vmem:[%s239 + $0x1bc] sm:$0xf]
        %v367 = vld [vmem:[%s239 + $0x1c0] sm:$0xf]
        %v368 = vld [vmem:[%s239 + $0x1c4] sm:$0xf]
        %v369 = vld [vmem:[%s239 + $0x1c8] sm:$0xf]
        %v370 = vld [vmem:[%s239 + $0x1cc] sm:$0xf]
        %v371 = vld [vmem:[%s239 + $0x1d0] sm:$0xf]
        %v372 = vld [vmem:[%s239 + $0x1d4] sm:$0xf]
        %v373 = vld [vmem:[%s239 + $0x1d8] sm:$0xf]
        %v374 = vld [vmem:[%s239 + $0x1dc] sm:$0xf]
        %v375 = vld [vmem:[%s239 + $0x1e0] sm:$0xf]
        %v376 = vld [vmem:[%s239 + $0x1e4] sm:$0xf]
        %v377 = vld [vmem:[%s239 + $0x1e8] sm:$0xf]
        %v378 = vld [vmem:[%s239 + $0x1ec] sm:$0xf]
        %v379 = vld [vmem:[%s239 + $0x1f0] sm:$0xf]
        %v380 = vld [vmem:[%s239 + $0x1f4] sm:$0xf]
        %v381 = vld [vmem:[%s239 + $0x1f8] sm:$0xf]
        %v382 = vld [vmem:[%s239 + $0x1fc] sm:$0xf]
        %v383 = vld [vmem:[%s239 + $0x200] sm:$0xf]
        %v384 = vld [vmem:[%s239 + $0x204] sm:$0xf]
        %v385 = vld [vmem:[%s239 + $0x208] sm:$0xf]
        %v386 = vld [vmem:[%s239 + $0x20c] sm:$0xf]
        %v387 = vld [vmem:[%s239 + $0x210] sm:$0xf]
        %v388 = vld [vmem:[%s239 + $0x214] sm:$0xf]
        %v389 = vld [vmem:[%s239 + $0x218] sm:$0xf]
        %v390 = vld [vmem:[%s239 + $0x21c] sm:$0xf]
        %v391 = vld [vmem:[%s239 + $0x220] sm:$0xf]
        %v392 = vld [vmem:[%s239 + $0x224] sm:$0xf]
        %v393 = vld [vmem:[%s239 + $0x228] sm:$0xf]
        %v394 = vld [vmem:[%s239 + $0x22c] sm:$0xf]
        %v395 = vld [vmem:[%s239 + $0x230] sm:$0xf]
        %v396 = vld [vmem:[%s239 + $0x234] sm:$0xf]
        %v397 = vld [vmem:[%s239 + $0x238] sm:$0xf]
        %v398 = vld [vmem:[%s239 + $0x23c] sm:$0xf]
        %v399 = vld [vmem:[%s239 + $0x240] sm:$0xf]
        %v400 = vld [vmem:[%s239 + $0x244] sm:$0xf]
        %v401 = vld [vmem:[%s239 + $0x248] sm:$0xf]
        %v402 = vld [vmem:[%s239 + $0x24c] sm:$0xf]
        %v403 = vld [vmem:[%s239 + $0x250] sm:$0xf]
        %v404 = vld [vmem:[%s239 + $0x254] sm:$0xf]
        %v405 = vld [vmem:[%s239 + $0x258] sm:$0xf]
        %v406 = vld [vmem:[%s239 + $0x25c] sm:$0xf]
        %v407 = vld [vmem:[%s239 + $0x260] sm:$0xf]
        %v408 = vld [vmem:[%s239 + $0x264] sm:$0xf]
        %v409 = vld [vmem:[%s239 + $0x268] sm:$0xf]
        %v410 = vld [vmem:[%s239 + $0x26c] sm:$0xf]
        %v411 = vld [vmem:[%s239 + $0x270] sm:$0xf]
        %v412 = vld [vmem:[%s239 + $0x274] sm:$0xf]
        %v413 = vld [vmem:[%s239 + $0x278] sm:$0xf]
        %v414 = vld [vmem:[%s239 + $0x27c] sm:$0xf]
        %v415 = vld [vmem:[%s239 + $0x280] sm:$0xf]
        %v416 = vld [vmem:[%s239 + $0x284] sm:$0xf]
        %v417 = vld [vmem:[%s239 + $0x288] sm:$0xf]
        %v418 = vld [vmem:[%s239 + $0x28c] sm:$0xf]
        %v419 = vld [vmem:[%s239 + $0x290] sm:$0xf]
        %v420 = vld [vmem:[%s239 + $0x294] sm:$0xf]
        %v421 = vld [vmem:[%s239 + $0x298] sm:$0xf]
        %v422 = vld [vmem:[%s239 + $0x29c] sm:$0xf]
        %v423 = vld [vmem:[%s239 + $0x2a0] sm:$0xf]
        %v424 = vld [vmem:[%s239 + $0x2a4] sm:$0xf]
        %v425 = vld [vmem:[%s239 + $0x2a8] sm:$0xf]
        %v426 = vld [vmem:[%s239 + $0x2ac] sm:$0xf]
        %v427 = vld [vmem:[%s239 + $0x2b0] sm:$0xf]
        %v428 = vld [vmem:[%s239 + $0x2b4] sm:$0xf]
        %v429 = vld [vmem:[%s239 + $0x2b8] sm:$0xf]
        %v430 = vld [vmem:[%s239 + $0x2bc] sm:$0xf]
        %v431 = vld [vmem:[%s239 + $0x2c0] sm:$0xf]
        %v432 = vld [vmem:[%s239 + $0x2c4] sm:$0xf]
        %v433 = vld [vmem:[%s239 + $0x2c8] sm:$0xf]
        %v434 = vld [vmem:[%s239 + $0x2cc] sm:$0xf]
        %v435 = vld [vmem:[%s239 + $0x2d0] sm:$0xf]
        %v436 = vld [vmem:[%s239 + $0x2d4] sm:$0xf]
        %v437 = vld [vmem:[%s239 + $0x2d8] sm:$0xf]
        %v438 = vld [vmem:[%s239 + $0x2dc] sm:$0xf]
        %v439 = vld [vmem:[%s239 + $0x2e0] sm:$0xf]
        %v440 = vld [vmem:[%s239 + $0x2e4] sm:$0xf]
        %v441 = vld [vmem:[%s239 + $0x2e8] sm:$0xf]
        %v442 = vld [vmem:[%s239 + $0x2ec] sm:$0xf]
        %v443 = vld [vmem:[%s239 + $0x2f0] sm:$0xf]
        %v444 = vld [vmem:[%s239 + $0x2f4] sm:$0xf]
        %v445 = vld [vmem:[%s239 + $0x2f8] sm:$0xf]
        %v446 = vld [vmem:[%s239 + $0x2fc] sm:$0xf]
        %v447 = vld [vmem:[%s239 + $0x300] sm:$0xf]
        %v448 = vld [vmem:[%s239 + $0x304] sm:$0xf]
        %v449 = vld [vmem:[%s239 + $0x308] sm:$0xf]
        %v450 = vld [vmem:[%s239 + $0x30c] sm:$0xf]
        %v451 = vld [vmem:[%s239 + $0x310] sm:$0xf]
        %v452 = vld [vmem:[%s239 + $0x314] sm:$0xf]
        %v453 = vld [vmem:[%s239 + $0x318] sm:$0xf]
        %v454 = vld [vmem:[%s239 + $0x31c] sm:$0xf]
        %v455 = vld [vmem:[%s239 + $0x320] sm:$0xf]
        %v456 = vld [vmem:[%s239 + $0x324] sm:$0xf]
        %v457 = vld [vmem:[%s239 + $0x328] sm:$0xf]
        %v458 = vld [vmem:[%s239 + $0x32c] sm:$0xf]
        %v459 = vld [vmem:[%s239 + $0x330] sm:$0xf]
        %v460 = vld [vmem:[%s239 + $0x334] sm:$0xf]
        %v461 = vld [vmem:[%s239 + $0x338] sm:$0xf]
        %v462 = vld [vmem:[%s239 + $0x33c] sm:$0xf]
        %v463 = vld [vmem:[%s239 + $0x340] sm:$0xf]
        %v464 = vld [vmem:[%s239 + $0x344] sm:$0xf]
        %v465 = vld [vmem:[%s239 + $0x348] sm:$0xf]
        %v466 = vld [vmem:[%s239 + $0x34c] sm:$0xf]
        %v467 = vld [vmem:[%s239 + $0x350] sm:$0xf]
        %v468 = vld [vmem:[%s239 + $0x354] sm:$0xf]
        %v469 = vld [vmem:[%s239 + $0x358] sm:$0xf]
        %v470 = vld [vmem:[%s239 + $0x35c] sm:$0xf]
        %v471 = vld [vmem:[%s239 + $0x360] sm:$0xf]
        %v472 = vld [vmem:[%s239 + $0x364] sm:$0xf]
        %v473 = vld [vmem:[%s239 + $0x368] sm:$0xf]
        %v474 = vld [vmem:[%s239 + $0x36c] sm:$0xf]
        %v475 = vld [vmem:[%s239 + $0x370] sm:$0xf]
        %v476 = vld [vmem:[%s239 + $0x374] sm:$0xf]
        %v477 = vld [vmem:[%s239 + $0x378] sm:$0xf]
        %v478 = vld [vmem:[%s239 + $0x37c] sm:$0xf]
        %v479 = vld [vmem:[%s239 + $0x380] sm:$0xf]
        %v480 = vld [vmem:[%s239 + $0x384] sm:$0xf]
        %v481 = vld [vmem:[%s239 + $0x388] sm:$0xf]
        %v482 = vld [vmem:[%s239 + $0x38c] sm:$0xf]
        %v483 = vld [vmem:[%s239 + $0x390] sm:$0xf]
        %v484 = vld [vmem:[%s239 + $0x394] sm:$0xf]
        %v485 = vld [vmem:[%s239 + $0x398] sm:$0xf]
        %v486 = vld [vmem:[%s239 + $0x39c] sm:$0xf]
        %v487 = vld [vmem:[%s239 + $0x3a0] sm:$0xf]
        %v488 = vld [vmem:[%s239 + $0x3a4] sm:$0xf]
        %v489 = vld [vmem:[%s239 + $0x3a8] sm:$0xf]
        %v490 = vld [vmem:[%s239 + $0x3ac] sm:$0xf]
        %v491 = vld [vmem:[%s239 + $0x3b0] sm:$0xf]
        %v492 = vld [vmem:[%s239 + $0x3b4] sm:$0xf]
        %v493 = vld [vmem:[%s239 + $0x3b8] sm:$0xf]
        %v494 = vld [vmem:[%s239 + $0x3bc] sm:$0xf]
        %v495 = vld [vmem:[%s239 + $0x3c0] sm:$0xf]
        %v496 = vld [vmem:[%s239 + $0x3c4] sm:$0xf]
        %v497 = vld [vmem:[%s239 + $0x3c8] sm:$0xf]
        %v498 = vld [vmem:[%s239 + $0x3cc] sm:$0xf]
        %v499 = vld [vmem:[%s239 + $0x3d0] sm:$0xf]
        %v500 = vld [vmem:[%s239 + $0x3d4] sm:$0xf]
        %v501 = vld [vmem:[%s239 + $0x3d8] sm:$0xf]
        %v502 = vld [vmem:[%s239 + $0x3dc] sm:$0xf]
        %v503 = vld [vmem:[%s239 + $0x3e0] sm:$0xf]
        %v504 = vld [vmem:[%s239 + $0x3e4] sm:$0xf]
        %v505 = vld [vmem:[%s239 + $0x3e8] sm:$0xf]
        %v506 = vld [vmem:[%s239 + $0x3ec] sm:$0xf]
        %v507 = vld [vmem:[%s239 + $0x3f0] sm:$0xf]
        %v508 = vld [vmem:[%s239 + $0x3f4] sm:$0xf]
        %v509 = vld [vmem:[%s239 + $0x3f8] sm:$0xf]
        %v510 = vld [vmem:[%s239 + $0x3fc] sm:$0xf]
        %v767 = vunpack.c.l.b16 %v255
        %v768 = vunpack.c.l.b16 %v256
        %v769 = vunpack.c.l.b16 %v257
        %v770 = vunpack.c.l.b16 %v258
        %v771 = vunpack.c.l.b16 %v259
        %v772 = vunpack.c.l.b16 %v260
        %v773 = vunpack.c.l.b16 %v261
        %v774 = vunpack.c.l.b16 %v262
        %v775 = vunpack.c.l.b16 %v263
        %v776 = vunpack.c.l.b16 %v264
        %v777 = vunpack.c.l.b16 %v265
        %v778 = vunpack.c.l.b16 %v266
        %v779 = vunpack.c.l.b16 %v267
        %v780 = vunpack.c.l.b16 %v268
        %v781 = vunpack.c.l.b16 %v269
        %v782 = vunpack.c.l.b16 %v270
        %v783 = vunpack.c.l.b16 %v271
        %v784 = vunpack.c.l.b16 %v272
        %v785 = vunpack.c.l.b16 %v273
        %v786 = vunpack.c.l.b16 %v274
        %v787 = vunpack.c.l.b16 %v275
        %v788 = vunpack.c.l.b16 %v276
        %v789 = vunpack.c.l.b16 %v277
        %v790 = vunpack.c.l.b16 %v278
        %v791 = vunpack.c.l.b16 %v279
        %v792 = vunpack.c.l.b16 %v280
        %v793 = vunpack.c.l.b16 %v281
        %v794 = vunpack.c.l.b16 %v282
        %v795 = vunpack.c.l.b16 %v283
        %v796 = vunpack.c.l.b16 %v284
        %v797 = vunpack.c.l.b16 %v285
        %v798 = vunpack.c.l.b16 %v286
        %v799 = vunpack.c.l.b16 %v287
        %v800 = vunpack.c.l.b16 %v288
        %v801 = vunpack.c.l.b16 %v289
        %v802 = vunpack.c.l.b16 %v290
        %v803 = vunpack.c.l.b16 %v291
        %v804 = vunpack.c.l.b16 %v292
        %v805 = vunpack.c.l.b16 %v293
        %v806 = vunpack.c.l.b16 %v294
        %v807 = vunpack.c.l.b16 %v295
        %v808 = vunpack.c.l.b16 %v296
        %v809 = vunpack.c.l.b16 %v297
        %v810 = vunpack.c.l.b16 %v298
        %v811 = vunpack.c.l.b16 %v299
        %v812 = vunpack.c.l.b16 %v300
        %v813 = vunpack.c.l.b16 %v301
        %v814 = vunpack.c.l.b16 %v302
        %v815 = vunpack.c.l.b16 %v303
        %v816 = vunpack.c.l.b16 %v304
        %v817 = vunpack.c.l.b16 %v305
        %v818 = vunpack.c.l.b16 %v306
        %v819 = vunpack.c.l.b16 %v307
        %v820 = vunpack.c.l.b16 %v308
        %v821 = vunpack.c.l.b16 %v309
        %v822 = vunpack.c.l.b16 %v310
        %v823 = vunpack.c.l.b16 %v311
        %v824 = vunpack.c.l.b16 %v312
        %v825 = vunpack.c.l.b16 %v313
        %v826 = vunpack.c.l.b16 %v314
        %v827 = vunpack.c.l.b16 %v315
        %v828 = vunpack.c.l.b16 %v316
        %v829 = vunpack.c.l.b16 %v317
        %v830 = vunpack.c.l.b16 %v318
        %v831 = vunpack.c.l.b16 %v319
        %v832 = vunpack.c.l.b16 %v320
        %v833 = vunpack.c.l.b16 %v321
        %v834 = vunpack.c.l.b16 %v322
        %v835 = vunpack.c.l.b16 %v323
        %v836 = vunpack.c.l.b16 %v324
        %v837 = vunpack.c.l.b16 %v325
        %v838 = vunpack.c.l.b16 %v326
        %v839 = vunpack.c.l.b16 %v327
        %v840 = vunpack.c.l.b16 %v328
        %v841 = vunpack.c.l.b16 %v329
        %v842 = vunpack.c.l.b16 %v330
        %v843 = vunpack.c.l.b16 %v331
        %v844 = vunpack.c.l.b16 %v332
        %v845 = vunpack.c.l.b16 %v333
        %v846 = vunpack.c.l.b16 %v334
        %v847 = vunpack.c.l.b16 %v335
        %v848 = vunpack.c.l.b16 %v336
        %v849 = vunpack.c.l.b16 %v337
        %v850 = vunpack.c.l.b16 %v338
        %v851 = vunpack.c.l.b16 %v339
        %v852 = vunpack.c.l.b16 %v340
        %v853 = vunpack.c.l.b16 %v341
        %v854 = vunpack.c.l.b16 %v342
        %v855 = vunpack.c.l.b16 %v343
        %v856 = vunpack.c.l.b16 %v344
        %v857 = vunpack.c.l.b16 %v345
        %v858 = vunpack.c.l.b16 %v346
        %v859 = vunpack.c.l.b16 %v347
        %v860 = vunpack.c.l.b16 %v348
        %v861 = vunpack.c.l.b16 %v349
        %v862 = vunpack.c.l.b16 %v350
        %v863 = vunpack.c.l.b16 %v351
        %v864 = vunpack.c.l.b16 %v352
        %v865 = vunpack.c.l.b16 %v353
        %v866 = vunpack.c.l.b16 %v354
        %v867 = vunpack.c.l.b16 %v355
        %v868 = vunpack.c.l.b16 %v356
        %v869 = vunpack.c.l.b16 %v357
        %v870 = vunpack.c.l.b16 %v358
        %v871 = vunpack.c.l.b16 %v359
        %v872 = vunpack.c.l.b16 %v360
        %v873 = vunpack.c.l.b16 %v361
        %v874 = vunpack.c.l.b16 %v362
        %v875 = vunpack.c.l.b16 %v363
        %v876 = vunpack.c.l.b16 %v364
        %v877 = vunpack.c.l.b16 %v365
        %v878 = vunpack.c.l.b16 %v366
        %v879 = vunpack.c.l.b16 %v367
        %v880 = vunpack.c.l.b16 %v368
        %v881 = vunpack.c.l.b16 %v369
        %v882 = vunpack.c.l.b16 %v370
        %v883 = vunpack.c.l.b16 %v371
        %v884 = vunpack.c.l.b16 %v372
        %v885 = vunpack.c.l.b16 %v373
        %v886 = vunpack.c.l.b16 %v374
        %v887 = vunpack.c.l.b16 %v375
        %v888 = vunpack.c.l.b16 %v376
        %v889 = vunpack.c.l.b16 %v377
        %v890 = vunpack.c.l.b16 %v378
        %v891 = vunpack.c.l.b16 %v379
        %v892 = vunpack.c.l.b16 %v380
        %v893 = vunpack.c.l.b16 %v381
        %v894 = vunpack.c.l.b16 %v382
        %v895 = vunpack.c.l.b16 %v383
        %v896 = vunpack.c.l.b16 %v384
        %v897 = vunpack.c.l.b16 %v385
        %v898 = vunpack.c.l.b16 %v386
        %v899 = vunpack.c.l.b16 %v387
        %v900 = vunpack.c.l.b16 %v388
        %v901 = vunpack.c.l.b16 %v389
        %v902 = vunpack.c.l.b16 %v390
        %v903 = vunpack.c.l.b16 %v391
        %v904 = vunpack.c.l.b16 %v392
        %v905 = vunpack.c.l.b16 %v393
        %v906 = vunpack.c.l.b16 %v394
        %v907 = vunpack.c.l.b16 %v395
        %v908 = vunpack.c.l.b16 %v396
        %v909 = vunpack.c.l.b16 %v397
        %v910 = vunpack.c.l.b16 %v398
        %v911 = vunpack.c.l.b16 %v399
        %v912 = vunpack.c.l.b16 %v400
        %v913 = vunpack.c.l.b16 %v401
        %v914 = vunpack.c.l.b16 %v402
        %v915 = vunpack.c.l.b16 %v403
        %v916 = vunpack.c.l.b16 %v404
        %v917 = vunpack.c.l.b16 %v405
        %v918 = vunpack.c.l.b16 %v406
        %v919 = vunpack.c.l.b16 %v407
        %v920 = vunpack.c.l.b16 %v408
        %v921 = vunpack.c.l.b16 %v409
        %v922 = vunpack.c.l.b16 %v410
        %v923 = vunpack.c.l.b16 %v411
        %v924 = vunpack.c.l.b16 %v412
        %v925 = vunpack.c.l.b16 %v413
        %v926 = vunpack.c.l.b16 %v414
        %v927 = vunpack.c.l.b16 %v415
        %v928 = vunpack.c.l.b16 %v416
        %v929 = vunpack.c.l.b16 %v417
        %v930 = vunpack.c.l.b16 %v418
        %v931 = vunpack.c.l.b16 %v419
        %v932 = vunpack.c.l.b16 %v420
        %v933 = vunpack.c.l.b16 %v421
        %v934 = vunpack.c.l.b16 %v422
        %v935 = vunpack.c.l.b16 %v423
        %v936 = vunpack.c.l.b16 %v424
        %v937 = vunpack.c.l.b16 %v425
        %v938 = vunpack.c.l.b16 %v426
        %v939 = vunpack.c.l.b16 %v427
        %v940 = vunpack.c.l.b16 %v428
        %v941 = vunpack.c.l.b16 %v429
        %v942 = vunpack.c.l.b16 %v430
        %v943 = vunpack.c.l.b16 %v431
        %v944 = vunpack.c.l.b16 %v432
        %v945 = vunpack.c.l.b16 %v433
        %v946 = vunpack.c.l.b16 %v434
        %v947 = vunpack.c.l.b16 %v435
        %v948 = vunpack.c.l.b16 %v436
        %v949 = vunpack.c.l.b16 %v437
        %v950 = vunpack.c.l.b16 %v438
        %v951 = vunpack.c.l.b16 %v439
        %v952 = vunpack.c.l.b16 %v440
        %v953 = vunpack.c.l.b16 %v441
        %v954 = vunpack.c.l.b16 %v442
        %v955 = vunpack.c.l.b16 %v443
        %v956 = vunpack.c.l.b16 %v444
        %v957 = vunpack.c.l.b16 %v445
        %v958 = vunpack.c.l.b16 %v446
        %v959 = vunpack.c.l.b16 %v447
        %v960 = vunpack.c.l.b16 %v448
        %v961 = vunpack.c.l.b16 %v449
        %v962 = vunpack.c.l.b16 %v450
        %v963 = vunpack.c.l.b16 %v451
        %v964 = vunpack.c.l.b16 %v452
        %v965 = vunpack.c.l.b16 %v453
        %v966 = vunpack.c.l.b16 %v454
        %v967 = vunpack.c.l.b16 %v455
        %v968 = vunpack.c.l.b16 %v456
        %v969 = vunpack.c.l.b16 %v457
        %v970 = vunpack.c.l.b16 %v458
        %v971 = vunpack.c.l.b16 %v459
        %v972 = vunpack.c.l.b16 %v460
        %v973 = vunpack.c.l.b16 %v461
        %v974 = vunpack.c.l.b16 %v462
        %v975 = vunpack.c.l.b16 %v463
        %v976 = vunpack.c.l.b16 %v464
        %v977 = vunpack.c.l.b16 %v465
        %v978 = vunpack.c.l.b16 %v466
        %v979 = vunpack.c.l.b16 %v467
        %v980 = vunpack.c.l.b16 %v468
        %v981 = vunpack.c.l.b16 %v469
        %v982 = vunpack.c.l.b16 %v470
        %v983 = vunpack.c.l.b16 %v471
        %v984 = vunpack.c.l.b16 %v472
        %v985 = vunpack.c.l.b16 %v473
        %v986 = vunpack.c.l.b16 %v474
        %v987 = vunpack.c.l.b16 %v475
        %v988 = vunpack.c.l.b16 %v476
        %v989 = vunpack.c.l.b16 %v477
        %v990 = vunpack.c.l.b16 %v478
        %v991 = vunpack.c.l.b16 %v479
        %v992 = vunpack.c.l.b16 %v480
        %v993 = vunpack.c.l.b16 %v481
        %v994 = vunpack.c.l.b16 %v482
        %v995 = vunpack.c.l.b16 %v483
        %v996 = vunpack.c.l.b16 %v484
        %v997 = vunpack.c.l.b16 %v485
        %v998 = vunpack.c.l.b16 %v486
        %v999 = vunpack.c.l.b16 %v487
        %v1000 = vunpack.c.l.b16 %v488
        %v1001 = vunpack.c.l.b16 %v489
        %v1002 = vunpack.c.l.b16 %v490
        %v1003 = vunpack.c.l.b16 %v491
        %v1004 = vunpack.c.l.b16 %v492
        %v1005 = vunpack.c.l.b16 %v493
        %v1006 = vunpack.c.l.b16 %v494
        %v1007 = vunpack.c.l.b16 %v495
        %v1008 = vunpack.c.l.b16 %v496
        %v1009 = vunpack.c.l.b16 %v497
        %v1010 = vunpack.c.l.b16 %v498
        %v1011 = vunpack.c.l.b16 %v499
        %v1012 = vunpack.c.l.b16 %v500
        %v1013 = vunpack.c.l.b16 %v501
        %v1014 = vunpack.c.l.b16 %v502
        %v1015 = vunpack.c.l.b16 %v503
        %v1016 = vunpack.c.l.b16 %v504
        %v1017 = vunpack.c.l.b16 %v505
        %v1018 = vunpack.c.l.b16 %v506
        %v1019 = vunpack.c.l.b16 %v507
        %v1020 = vunpack.c.l.b16 %v508
        %v1021 = vunpack.c.l.b16 %v509
        %v1022 = vunpack.c.l.b16 %v510
        %v1023 = vpack.c.b16 %v768, %v767
        %v1024 = vpack.c.b16 %v770, %v769
        %v1025 = vpack.c.b16 %v772, %v771
        %v1026 = vpack.c.b16 %v774, %v773
        %v1027 = vpack.c.b16 %v776, %v775
        %v1028 = vpack.c.b16 %v778, %v777
        %v1029 = vpack.c.b16 %v780, %v779
        %v1030 = vpack.c.b16 %v782, %v781
        %v1031 = vpack.c.b16 %v784, %v783
        %v1032 = vpack.c.b16 %v786, %v785
        %v1033 = vpack.c.b16 %v788, %v787
        %v1034 = vpack.c.b16 %v790, %v789
        %v1035 = vpack.c.b16 %v792, %v791
        %v1036 = vpack.c.b16 %v794, %v793
        %v1037 = vpack.c.b16 %v796, %v795
        %v1038 = vpack.c.b16 %v798, %v797
        %v1039 = vpack.c.b16 %v800, %v799
        %v1040 = vpack.c.b16 %v802, %v801
        %v1041 = vpack.c.b16 %v804, %v803
        %v1042 = vpack.c.b16 %v806, %v805
        %v1043 = vpack.c.b16 %v808, %v807
        %v1044 = vpack.c.b16 %v810, %v809
        %v1045 = vpack.c.b16 %v812, %v811
        %v1046 = vpack.c.b16 %v814, %v813
        %v1047 = vpack.c.b16 %v816, %v815
        %v1048 = vpack.c.b16 %v818, %v817
        %v1049 = vpack.c.b16 %v820, %v819
        %v1050 = vpack.c.b16 %v822, %v821
        %v1051 = vpack.c.b16 %v824, %v823
        %v1052 = vpack.c.b16 %v826, %v825
        %v1053 = vpack.c.b16 %v828, %v827
        %v1054 = vpack.c.b16 %v830, %v829
        %v1055 = vpack.c.b16 %v832, %v831
        %v1056 = vpack.c.b16 %v834, %v833
        %v1057 = vpack.c.b16 %v836, %v835
        %v1058 = vpack.c.b16 %v838, %v837
        %v1059 = vpack.c.b16 %v840, %v839
        %v1060 = vpack.c.b16 %v842, %v841
        %v1061 = vpack.c.b16 %v844, %v843
        %v1062 = vpack.c.b16 %v846, %v845
        %v1063 = vpack.c.b16 %v848, %v847
        %v1064 = vpack.c.b16 %v850, %v849
        %v1065 = vpack.c.b16 %v852, %v851
        %v1066 = vpack.c.b16 %v854, %v853
        %v1067 = vpack.c.b16 %v856, %v855
        %v1068 = vpack.c.b16 %v858, %v857
        %v1069 = vpack.c.b16 %v860, %v859
        %v1070 = vpack.c.b16 %v862, %v861
        %v1071 = vpack.c.b16 %v864, %v863
        %v1072 = vpack.c.b16 %v866, %v865
        %v1073 = vpack.c.b16 %v868, %v867
        %v1074 = vpack.c.b16 %v870, %v869
        %v1075 = vpack.c.b16 %v872, %v871
        %v1076 = vpack.c.b16 %v874, %v873
        %v1077 = vpack.c.b16 %v876, %v875
        %v1078 = vpack.c.b16 %v878, %v877
        %v1079 = vpack.c.b16 %v880, %v879
        %v1080 = vpack.c.b16 %v882, %v881
        %v1081 = vpack.c.b16 %v884, %v883
        %v1082 = vpack.c.b16 %v886, %v885
        %v1083 = vpack.c.b16 %v888, %v887
        %v1084 = vpack.c.b16 %v890, %v889
        %v1085 = vpack.c.b16 %v892, %v891
        %v1086 = vpack.c.b16 %v894, %v893
        %v1087 = vpack.c.b16 %v896, %v895
        %v1088 = vpack.c.b16 %v898, %v897
        %v1089 = vpack.c.b16 %v900, %v899
        %v1090 = vpack.c.b16 %v902, %v901
        %v1091 = vpack.c.b16 %v904, %v903
        %v1092 = vpack.c.b16 %v906, %v905
        %v1093 = vpack.c.b16 %v908, %v907
        %v1094 = vpack.c.b16 %v910, %v909
        %v1095 = vpack.c.b16 %v912, %v911
        %v1096 = vpack.c.b16 %v914, %v913
        %v1097 = vpack.c.b16 %v916, %v915
        %v1098 = vpack.c.b16 %v918, %v917
        %v1099 = vpack.c.b16 %v920, %v919
        %v1100 = vpack.c.b16 %v922, %v921
        %v1101 = vpack.c.b16 %v924, %v923
        %v1102 = vpack.c.b16 %v926, %v925
        %v1103 = vpack.c.b16 %v928, %v927
        %v1104 = vpack.c.b16 %v930, %v929
        %v1105 = vpack.c.b16 %v932, %v931
        %v1106 = vpack.c.b16 %v934, %v933
        %v1107 = vpack.c.b16 %v936, %v935
        %v1108 = vpack.c.b16 %v938, %v937
        %v1109 = vpack.c.b16 %v940, %v939
        %v1110 = vpack.c.b16 %v942, %v941
        %v1111 = vpack.c.b16 %v944, %v943
        %v1112 = vpack.c.b16 %v946, %v945
        %v1113 = vpack.c.b16 %v948, %v947
        %v1114 = vpack.c.b16 %v950, %v949
        %v1115 = vpack.c.b16 %v952, %v951
        %v1116 = vpack.c.b16 %v954, %v953
        %v1117 = vpack.c.b16 %v956, %v955
        %v1118 = vpack.c.b16 %v958, %v957
        %v1119 = vpack.c.b16 %v960, %v959
        %v1120 = vpack.c.b16 %v962, %v961
        %v1121 = vpack.c.b16 %v964, %v963
        %v1122 = vpack.c.b16 %v966, %v965
        %v1123 = vpack.c.b16 %v968, %v967
        %v1124 = vpack.c.b16 %v970, %v969
        %v1125 = vpack.c.b16 %v972, %v971
        %v1126 = vpack.c.b16 %v974, %v973
        %v1127 = vpack.c.b16 %v976, %v975
        %v1128 = vpack.c.b16 %v978, %v977
        %v1129 = vpack.c.b16 %v980, %v979
        %v1130 = vpack.c.b16 %v982, %v981
        %v1131 = vpack.c.b16 %v984, %v983
        %v1132 = vpack.c.b16 %v986, %v985
        %v1133 = vpack.c.b16 %v988, %v987
        %v1134 = vpack.c.b16 %v990, %v989
        %v1135 = vpack.c.b16 %v992, %v991
        %v1136 = vpack.c.b16 %v994, %v993
        %v1137 = vpack.c.b16 %v996, %v995
        %v1138 = vpack.c.b16 %v998, %v997
        %v1139 = vpack.c.b16 %v1000, %v999
        %v1140 = vpack.c.b16 %v1002, %v1001
        %v1141 = vpack.c.b16 %v1004, %v1003
        %v1142 = vpack.c.b16 %v1006, %v1005
        %v1143 = vpack.c.b16 %v1008, %v1007
        %v1144 = vpack.c.b16 %v1010, %v1009
        %v1145 = vpack.c.b16 %v1012, %v1011
        %v1146 = vpack.c.b16 %v1014, %v1013
        %v1147 = vpack.c.b16 %v1016, %v1015
        %v1148 = vpack.c.b16 %v1018, %v1017
        %v1149 = vpack.c.b16 %v1020, %v1019
        %v1150 = vpack.c.b16 %v1022, %v1021
        %vm1151 = vcmask 64512
        %v1153 = vsel %vm1151, %v1023, 0
        %v1156 = vsel %vm1151, %v1024, 0
        %v1159 = vsel %vm1151, %v1025, 0
        %v1162 = vsel %vm1151, %v1026, 0
        %v1165 = vsel %vm1151, %v1027, 0
        %v1168 = vsel %vm1151, %v1028, 0
        %v1171 = vsel %vm1151, %v1029, 0
        %v1174 = vsel %vm1151, %v1030, 0
        %v1177 = vsel %vm1151, %v1031, 0
        %v1180 = vsel %vm1151, %v1032, 0
        %v1183 = vsel %vm1151, %v1033, 0
        %v1186 = vsel %vm1151, %v1034, 0
        %v1189 = vsel %vm1151, %v1035, 0
        %v1192 = vsel %vm1151, %v1036, 0
        %v1195 = vsel %vm1151, %v1037, 0
        %v1198 = vsel %vm1151, %v1038, 0
        %v1201 = vsel %vm1151, %v1039, 0
        %v1204 = vsel %vm1151, %v1040, 0
        %v1207 = vsel %vm1151, %v1041, 0
        %v1210 = vsel %vm1151, %v1042, 0
        %v1213 = vsel %vm1151, %v1043, 0
        %v1216 = vsel %vm1151, %v1044, 0
        %v1219 = vsel %vm1151, %v1045, 0
        %v1222 = vsel %vm1151, %v1046, 0
        %v1225 = vsel %vm1151, %v1047, 0
        %v1228 = vsel %vm1151, %v1048, 0
        %v1231 = vsel %vm1151, %v1049, 0
        %v1234 = vsel %vm1151, %v1050, 0
        %v1237 = vsel %vm1151, %v1051, 0
        %v1240 = vsel %vm1151, %v1052, 0
        %v1243 = vsel %vm1151, %v1053, 0
        %v1246 = vsel %vm1151, %v1054, 0
        %v1249 = vsel %vm1151, %v1055, 0
        %v1252 = vsel %vm1151, %v1056, 0
        %v1255 = vsel %vm1151, %v1057, 0
        %v1258 = vsel %vm1151, %v1058, 0
        %v1261 = vsel %vm1151, %v1059, 0
        %v1264 = vsel %vm1151, %v1060, 0
        %v1267 = vsel %vm1151, %v1061, 0
        %v1270 = vsel %vm1151, %v1062, 0
        %v1273 = vsel %vm1151, %v1063, 0
        %v1276 = vsel %vm1151, %v1064, 0
        %v1279 = vsel %vm1151, %v1065, 0
        %v1282 = vsel %vm1151, %v1066, 0
        %v1285 = vsel %vm1151, %v1067, 0
        %v1288 = vsel %vm1151, %v1068, 0
        %v1291 = vsel %vm1151, %v1069, 0
        %v1294 = vsel %vm1151, %v1070, 0
        %v1297 = vsel %vm1151, %v1071, 0
        %v1300 = vsel %vm1151, %v1072, 0
        %v1303 = vsel %vm1151, %v1073, 0
        %v1306 = vsel %vm1151, %v1074, 0
        %v1309 = vsel %vm1151, %v1075, 0
        %v1312 = vsel %vm1151, %v1076, 0
        %v1315 = vsel %vm1151, %v1077, 0
        %v1318 = vsel %vm1151, %v1078, 0
        %v1321 = vsel %vm1151, %v1079, 0
        %v1324 = vsel %vm1151, %v1080, 0
        %v1327 = vsel %vm1151, %v1081, 0
        %v1330 = vsel %vm1151, %v1082, 0
        %v1333 = vsel %vm1151, %v1083, 0
        %v1336 = vsel %vm1151, %v1084, 0
        %v1339 = vsel %vm1151, %v1085, 0
        %v1342 = vsel %vm1151, %v1086, 0
        %v1345 = vsel %vm1151, %v1087, 0
        %v1348 = vsel %vm1151, %v1088, 0
        %v1351 = vsel %vm1151, %v1089, 0
        %v1354 = vsel %vm1151, %v1090, 0
        %v1357 = vsel %vm1151, %v1091, 0
        %v1360 = vsel %vm1151, %v1092, 0
        %v1363 = vsel %vm1151, %v1093, 0
        %v1366 = vsel %vm1151, %v1094, 0
        %v1369 = vsel %vm1151, %v1095, 0
        %v1372 = vsel %vm1151, %v1096, 0
        %v1375 = vsel %vm1151, %v1097, 0
        %v1378 = vsel %vm1151, %v1098, 0
        %v1381 = vsel %vm1151, %v1099, 0
        %v1384 = vsel %vm1151, %v1100, 0
        %v1387 = vsel %vm1151, %v1101, 0
        %v1390 = vsel %vm1151, %v1102, 0
        %v1393 = vsel %vm1151, %v1103, 0
        %v1396 = vsel %vm1151, %v1104, 0
        %v1399 = vsel %vm1151, %v1105, 0
        %v1402 = vsel %vm1151, %v1106, 0
        %v1405 = vsel %vm1151, %v1107, 0
        %v1408 = vsel %vm1151, %v1108, 0
        %v1411 = vsel %vm1151, %v1109, 0
        %v1414 = vsel %vm1151, %v1110, 0
        %v1417 = vsel %vm1151, %v1111, 0
        %v1420 = vsel %vm1151, %v1112, 0
        %v1423 = vsel %vm1151, %v1113, 0
        %v1426 = vsel %vm1151, %v1114, 0
        %v1429 = vsel %vm1151, %v1115, 0
        %v1432 = vsel %vm1151, %v1116, 0
        %v1435 = vsel %vm1151, %v1117, 0
        %v1438 = vsel %vm1151, %v1118, 0
        %v1441 = vsel %vm1151, %v1119, 0
        %v1444 = vsel %vm1151, %v1120, 0
        %v1447 = vsel %vm1151, %v1121, 0
        %v1450 = vsel %vm1151, %v1122, 0
        %v1453 = vsel %vm1151, %v1123, 0
        %v1456 = vsel %vm1151, %v1124, 0
        %v1459 = vsel %vm1151, %v1125, 0
        %v1462 = vsel %vm1151, %v1126, 0
        %v1465 = vsel %vm1151, %v1127, 0
        %v1468 = vsel %vm1151, %v1128, 0
        %v1471 = vsel %vm1151, %v1129, 0
        %v1474 = vsel %vm1151, %v1130, 0
        %v1477 = vsel %vm1151, %v1131, 0
        %v1480 = vsel %vm1151, %v1132, 0
        %v1483 = vsel %vm1151, %v1133, 0
        %v1486 = vsel %vm1151, %v1134, 0
        %v1489 = vsel %vm1151, %v1135, 0
        %v1492 = vsel %vm1151, %v1136, 0
        %v1495 = vsel %vm1151, %v1137, 0
        %v1498 = vsel %vm1151, %v1138, 0
        %v1501 = vsel %vm1151, %v1139, 0
        %v1504 = vsel %vm1151, %v1140, 0
        %v1507 = vsel %vm1151, %v1141, 0
        %v1510 = vsel %vm1151, %v1142, 0
        %v1513 = vsel %vm1151, %v1143, 0
        %v1516 = vsel %vm1151, %v1144, 0
        %v1519 = vsel %vm1151, %v1145, 0
        %v1522 = vsel %vm1151, %v1146, 0
        %v1525 = vsel %vm1151, %v1147, 0
        %v1528 = vsel %vm1151, %v1148, 0
        %v1531 = vsel %vm1151, %v1149, 0
        %v1534 = vsel %vm1151, %v1150, 0
        %vm1536 = vcmask 1043456
        %v1538 = vsel %vm1536, %v249, 0
        %1540 = vmatprep.subr.bf16.mxu0 0
        %1541 = vmatpush1.bf16.msra.mxu0 0
        %1542 = vmatprep.subr.bf16.mxu0 0
        %1543 = vmatpush1.bf16.msra.mxu0 0
        %1544 = vmatprep.subr.bf16.mxu0 0
        %1545 = vmatpush1.bf16.msra.mxu0 0
        %1546 = vmatprep.subr.bf16.mxu0 0
        %1547 = vmatpush1.bf16.msra.mxu0 0
        %1548 = vmatprep.subr.bf16.mxu0 0
        %1549 = vmatpush1.bf16.msra.mxu0 0
        %1550 = vmatprep.subr.bf16.mxu0 0
        %1551 = vmatpush1.bf16.msra.mxu0 0
        %1552 = vmatprep.subr.bf16.mxu0 0
        %1553 = vmatpush1.bf16.msra.mxu0 0
        %1554 = vmatprep.subr.bf16.mxu0 0
        %1555 = vmatpush1.bf16.msra.mxu0 %v1538
        %1556 = vmatprep.subr.bf16.mxu0 0
        %1557 = vmatpush2.bf16.msra.mxu0 0
        %1558 = vmatprep.subr.bf16.mxu0 0
        %1559 = vmatpush2.bf16.msra.mxu0 0
        %1560 = vmatprep.subr.bf16.mxu0 0
        %1561 = vmatpush2.bf16.msra.mxu0 0
        %1562 = vmatprep.subr.bf16.mxu0 0
        %1563 = vmatpush2.bf16.msra.mxu0 0
        %1564 = vmatprep.subr.bf16.mxu0 0
        %1565 = vmatpush2.bf16.msra.mxu0 0
        %1566 = vmatprep.subr.bf16.mxu0 0
        %1567 = vmatpush2.bf16.msra.mxu0 0
        %1568 = vmatprep.subr.bf16.mxu0 0
        %1569 = vmatpush2.bf16.msra.mxu0 0
        %1570 = vmatprep.subr.bf16.mxu0 0
        %1571 = vmatpush2.bf16.msra.mxu0 0
        %1572 = vmatprep.mubr.bf16.mxu0 0
        %1573 = vmatmul.mubr.bf16.gmra.mxu0 %v1153
        %v1574 = vpop.f32.mrf.mxu0
        %v1575 = vadd.f32 0.0, %v1574
        %v1576 = vpop.f32.mrf.mxu0
        %v1577 = vpop.f32.mrf.mxu0
        %v1578 = vadd.f32 0.0, %v1577
        %v1579 = vpop.f32.mrf.mxu0
        %1580 = vmatprep.mubr.bf16.mxu0 0
        %1581 = vmatmul.mubr.bf16.gmra.mxu0 %v1156
        %v1582 = vpop.f32.mrf.mxu0
        %v1583 = vadd.f32 0.0, %v1582
        %v1584 = vpop.f32.mrf.mxu0
        %v1585 = vpop.f32.mrf.mxu0
        %v1586 = vadd.f32 0.0, %v1585
        %v1587 = vpop.f32.mrf.mxu0
        %1588 = vmatprep.mubr.bf16.mxu0 0
        %1589 = vmatmul.mubr.bf16.gmra.mxu0 %v1159
        %v1590 = vpop.f32.mrf.mxu0
        %v1591 = vadd.f32 0.0, %v1590
        %v1592 = vpop.f32.mrf.mxu0
        %v1593 = vpop.f32.mrf.mxu0
        %v1594 = vadd.f32 0.0, %v1593
        %v1595 = vpop.f32.mrf.mxu0
        %1596 = vmatprep.mubr.bf16.mxu0 0
        %1597 = vmatmul.mubr.bf16.gmra.mxu0 %v1162
        %v1598 = vpop.f32.mrf.mxu0
        %v1599 = vadd.f32 0.0, %v1598
        %v1600 = vpop.f32.mrf.mxu0
        %v1601 = vpop.f32.mrf.mxu0
        %v1602 = vadd.f32 0.0, %v1601
        %v1603 = vpop.f32.mrf.mxu0
        %1604 = vmatprep.mubr.bf16.mxu0 0
        %1605 = vmatmul.mubr.bf16.gmra.mxu0 %v1165
        %v1606 = vpop.f32.mrf.mxu0
        %v1607 = vadd.f32 0.0, %v1606
        %v1608 = vpop.f32.mrf.mxu0
        %v1609 = vpop.f32.mrf.mxu0
        %v1610 = vadd.f32 0.0, %v1609
        %v1611 = vpop.f32.mrf.mxu0
        %1612 = vmatprep.mubr.bf16.mxu0 0
        %1613 = vmatmul.mubr.bf16.gmra.mxu0 %v1168
        %v1614 = vpop.f32.mrf.mxu0
        %v1615 = vadd.f32 0.0, %v1614
        %v1616 = vpop.f32.mrf.mxu0
        %v1617 = vpop.f32.mrf.mxu0
        %v1618 = vadd.f32 0.0, %v1617
        %v1619 = vpop.f32.mrf.mxu0
        %1620 = vmatprep.mubr.bf16.mxu0 0
        %1621 = vmatmul.mubr.bf16.gmra.mxu0 %v1171
        %v1622 = vpop.f32.mrf.mxu0
        %v1623 = vadd.f32 0.0, %v1622
        %v1624 = vpop.f32.mrf.mxu0
        %v1625 = vpop.f32.mrf.mxu0
        %v1626 = vadd.f32 0.0, %v1625
        %v1627 = vpop.f32.mrf.mxu0
        %1628 = vmatprep.mubr.bf16.mxu0 0
        %1629 = vmatmul.mubr.bf16.gmra.mxu0 %v1174
        %v1630 = vpop.f32.mrf.mxu0
        %v1631 = vadd.f32 0.0, %v1630
        %v1632 = vpop.f32.mrf.mxu0
        %v1633 = vpop.f32.mrf.mxu0
        %v1634 = vadd.f32 0.0, %v1633
        %v1635 = vpop.f32.mrf.mxu0
        %1636 = vmatprep.mubr.bf16.mxu0 0
        %1637 = vmatmul.mubr.bf16.gmra.mxu0 %v1177
        %v1638 = vpop.f32.mrf.mxu0
        %v1639 = vadd.f32 0.0, %v1638
        %v1640 = vpop.f32.mrf.mxu0
        %v1641 = vpop.f32.mrf.mxu0
        %v1642 = vadd.f32 0.0, %v1641
        %v1643 = vpop.f32.mrf.mxu0
        %1644 = vmatprep.mubr.bf16.mxu0 0
        %1645 = vmatmul.mubr.bf16.gmra.mxu0 %v1180
        %v1646 = vpop.f32.mrf.mxu0
        %v1647 = vadd.f32 0.0, %v1646
        %v1648 = vpop.f32.mrf.mxu0
        %v1649 = vpop.f32.mrf.mxu0
        %v1650 = vadd.f32 0.0, %v1649
        %v1651 = vpop.f32.mrf.mxu0
        %1652 = vmatprep.mubr.bf16.mxu0 0
        %1653 = vmatmul.mubr.bf16.gmra.mxu0 %v1183
        %v1654 = vpop.f32.mrf.mxu0
        %v1655 = vadd.f32 0.0, %v1654
        %v1656 = vpop.f32.mrf.mxu0
        %v1657 = vpop.f32.mrf.mxu0
        %v1658 = vadd.f32 0.0, %v1657
        %v1659 = vpop.f32.mrf.mxu0
        %1660 = vmatprep.mubr.bf16.mxu0 0
        %1661 = vmatmul.mubr.bf16.gmra.mxu0 %v1186
        %v1662 = vpop.f32.mrf.mxu0
        %v1663 = vadd.f32 0.0, %v1662
        %v1664 = vpop.f32.mrf.mxu0
        %v1665 = vpop.f32.mrf.mxu0
        %v1666 = vadd.f32 0.0, %v1665
        %v1667 = vpop.f32.mrf.mxu0
        %1668 = vmatprep.mubr.bf16.mxu0 0
        %1669 = vmatmul.mubr.bf16.gmra.mxu0 %v1189
        %v1670 = vpop.f32.mrf.mxu0
        %v1671 = vadd.f32 0.0, %v1670
        %v1672 = vpop.f32.mrf.mxu0
        %v1673 = vpop.f32.mrf.mxu0
        %v1674 = vadd.f32 0.0, %v1673
        %v1675 = vpop.f32.mrf.mxu0
        %1676 = vmatprep.mubr.bf16.mxu0 0
        %1677 = vmatmul.mubr.bf16.gmra.mxu0 %v1192
        %v1678 = vpop.f32.mrf.mxu0
        %v1679 = vadd.f32 0.0, %v1678
        %v1680 = vpop.f32.mrf.mxu0
        %v1681 = vpop.f32.mrf.mxu0
        %v1682 = vadd.f32 0.0, %v1681
        %v1683 = vpop.f32.mrf.mxu0
        %1684 = vmatprep.mubr.bf16.mxu0 0
        %1685 = vmatmul.mubr.bf16.gmra.mxu0 %v1195
        %v1686 = vpop.f32.mrf.mxu0
        %v1687 = vadd.f32 0.0, %v1686
        %v1688 = vpop.f32.mrf.mxu0
        %v1689 = vpop.f32.mrf.mxu0
        %v1690 = vadd.f32 0.0, %v1689
        %v1691 = vpop.f32.mrf.mxu0
        %1692 = vmatprep.mubr.bf16.mxu0 0
        %1693 = vmatmul.mubr.bf16.gmra.mxu0 %v1198
        %v1694 = vpop.f32.mrf.mxu0
        %v1695 = vadd.f32 0.0, %v1694
        %v1696 = vpop.f32.mrf.mxu0
        %v1697 = vpop.f32.mrf.mxu0
        %v1698 = vadd.f32 0.0, %v1697
        %v1699 = vpop.f32.mrf.mxu0
        %1700 = vmatprep.mubr.bf16.mxu0 0
        %1701 = vmatmul.mubr.bf16.gmra.mxu0 %v1201
        %v1702 = vpop.f32.mrf.mxu0
        %v1703 = vadd.f32 0.0, %v1702
        %v1704 = vpop.f32.mrf.mxu0
        %v1705 = vpop.f32.mrf.mxu0
        %v1706 = vadd.f32 0.0, %v1705
        %v1707 = vpop.f32.mrf.mxu0
        %1708 = vmatprep.mubr.bf16.mxu0 0
        %1709 = vmatmul.mubr.bf16.gmra.mxu0 %v1204
        %v1710 = vpop.f32.mrf.mxu0
        %v1711 = vadd.f32 0.0, %v1710
        %v1712 = vpop.f32.mrf.mxu0
        %v1713 = vpop.f32.mrf.mxu0
        %v1714 = vadd.f32 0.0, %v1713
        %v1715 = vpop.f32.mrf.mxu0
        %1716 = vmatprep.mubr.bf16.mxu0 0
        %1717 = vmatmul.mubr.bf16.gmra.mxu0 %v1207
        %v1718 = vpop.f32.mrf.mxu0
        %v1719 = vadd.f32 0.0, %v1718
        %v1720 = vpop.f32.mrf.mxu0
        %v1721 = vpop.f32.mrf.mxu0
        %v1722 = vadd.f32 0.0, %v1721
        %v1723 = vpop.f32.mrf.mxu0
        %1724 = vmatprep.mubr.bf16.mxu0 0
        %1725 = vmatmul.mubr.bf16.gmra.mxu0 %v1210
        %v1726 = vpop.f32.mrf.mxu0
        %v1727 = vadd.f32 0.0, %v1726
        %v1728 = vpop.f32.mrf.mxu0
        %v1729 = vpop.f32.mrf.mxu0
        %v1730 = vadd.f32 0.0, %v1729
        %v1731 = vpop.f32.mrf.mxu0
        %1732 = vmatprep.mubr.bf16.mxu0 0
        %1733 = vmatmul.mubr.bf16.gmra.mxu0 %v1213
        %v1734 = vpop.f32.mrf.mxu0
        %v1735 = vadd.f32 0.0, %v1734
        %v1736 = vpop.f32.mrf.mxu0
        %v1737 = vpop.f32.mrf.mxu0
        %v1738 = vadd.f32 0.0, %v1737
        %v1739 = vpop.f32.mrf.mxu0
        %1740 = vmatprep.mubr.bf16.mxu0 0
        %1741 = vmatmul.mubr.bf16.gmra.mxu0 %v1216
        %v1742 = vpop.f32.mrf.mxu0
        %v1743 = vadd.f32 0.0, %v1742
        %v1744 = vpop.f32.mrf.mxu0
        %v1745 = vpop.f32.mrf.mxu0
        %v1746 = vadd.f32 0.0, %v1745
        %v1747 = vpop.f32.mrf.mxu0
        %1748 = vmatprep.mubr.bf16.mxu0 0
        %1749 = vmatmul.mubr.bf16.gmra.mxu0 %v1219
        %v1750 = vpop.f32.mrf.mxu0
        %v1751 = vadd.f32 0.0, %v1750
        %v1752 = vpop.f32.mrf.mxu0
        %v1753 = vpop.f32.mrf.mxu0
        %v1754 = vadd.f32 0.0, %v1753
        %v1755 = vpop.f32.mrf.mxu0
        %1756 = vmatprep.mubr.bf16.mxu0 0
        %1757 = vmatmul.mubr.bf16.gmra.mxu0 %v1222
        %v1758 = vpop.f32.mrf.mxu0
        %v1759 = vadd.f32 0.0, %v1758
        %v1760 = vpop.f32.mrf.mxu0
        %v1761 = vpop.f32.mrf.mxu0
        %v1762 = vadd.f32 0.0, %v1761
        %v1763 = vpop.f32.mrf.mxu0
        %1764 = vmatprep.mubr.bf16.mxu0 0
        %1765 = vmatmul.mubr.bf16.gmra.mxu0 %v1225
        %v1766 = vpop.f32.mrf.mxu0
        %v1767 = vadd.f32 0.0, %v1766
        %v1768 = vpop.f32.mrf.mxu0
        %v1769 = vpop.f32.mrf.mxu0
        %v1770 = vadd.f32 0.0, %v1769
        %v1771 = vpop.f32.mrf.mxu0
        %1772 = vmatprep.mubr.bf16.mxu0 0
        %1773 = vmatmul.mubr.bf16.gmra.mxu0 %v1228
        %v1774 = vpop.f32.mrf.mxu0
        %v1775 = vadd.f32 0.0, %v1774
        %v1776 = vpop.f32.mrf.mxu0
        %v1777 = vpop.f32.mrf.mxu0
        %v1778 = vadd.f32 0.0, %v1777
        %v1779 = vpop.f32.mrf.mxu0
        %1780 = vmatprep.mubr.bf16.mxu0 0
        %1781 = vmatmul.mubr.bf16.gmra.mxu0 %v1231
        %v1782 = vpop.f32.mrf.mxu0
        %v1783 = vadd.f32 0.0, %v1782
        %v1784 = vpop.f32.mrf.mxu0
        %v1785 = vpop.f32.mrf.mxu0
        %v1786 = vadd.f32 0.0, %v1785
        %v1787 = vpop.f32.mrf.mxu0
        %1788 = vmatprep.mubr.bf16.mxu0 0
        %1789 = vmatmul.mubr.bf16.gmra.mxu0 %v1234
        %v1790 = vpop.f32.mrf.mxu0
        %v1791 = vadd.f32 0.0, %v1790
        %v1792 = vpop.f32.mrf.mxu0
        %v1793 = vpop.f32.mrf.mxu0
        %v1794 = vadd.f32 0.0, %v1793
        %v1795 = vpop.f32.mrf.mxu0
        %1796 = vmatprep.mubr.bf16.mxu0 0
        %1797 = vmatmul.mubr.bf16.gmra.mxu0 %v1237
        %v1798 = vpop.f32.mrf.mxu0
        %v1799 = vadd.f32 0.0, %v1798
        %v1800 = vpop.f32.mrf.mxu0
        %v1801 = vpop.f32.mrf.mxu0
        %v1802 = vadd.f32 0.0, %v1801
        %v1803 = vpop.f32.mrf.mxu0
        %1804 = vmatprep.mubr.bf16.mxu0 0
        %1805 = vmatmul.mubr.bf16.gmra.mxu0 %v1240
        %v1806 = vpop.f32.mrf.mxu0
        %v1807 = vadd.f32 0.0, %v1806
        %v1808 = vpop.f32.mrf.mxu0
        %v1809 = vpop.f32.mrf.mxu0
        %v1810 = vadd.f32 0.0, %v1809
        %v1811 = vpop.f32.mrf.mxu0
        %1812 = vmatprep.mubr.bf16.mxu0 0
        %1813 = vmatmul.mubr.bf16.gmra.mxu0 %v1243
        %v1814 = vpop.f32.mrf.mxu0
        %v1815 = vadd.f32 0.0, %v1814
        %v1816 = vpop.f32.mrf.mxu0
        %v1817 = vpop.f32.mrf.mxu0
        %v1818 = vadd.f32 0.0, %v1817
        %v1819 = vpop.f32.mrf.mxu0
        %1820 = vmatprep.mubr.bf16.mxu0 0
        %1821 = vmatmul.mubr.bf16.gmra.mxu0 %v1246
        %v1822 = vpop.f32.mrf.mxu0
        %v1823 = vadd.f32 0.0, %v1822
        %v1824 = vpop.f32.mrf.mxu0
        %v1825 = vpop.f32.mrf.mxu0
        %v1826 = vadd.f32 0.0, %v1825
        %v1827 = vpop.f32.mrf.mxu0
        %1828 = vmatprep.mubr.bf16.mxu0 0
        %1829 = vmatmul.mubr.bf16.gmra.mxu0 %v1249
        %v1830 = vpop.f32.mrf.mxu0
        %v1831 = vadd.f32 0.0, %v1830
        %v1832 = vpop.f32.mrf.mxu0
        %v1833 = vpop.f32.mrf.mxu0
        %v1834 = vadd.f32 0.0, %v1833
        %v1835 = vpop.f32.mrf.mxu0
        %1836 = vmatprep.mubr.bf16.mxu0 0
        %1837 = vmatmul.mubr.bf16.gmra.mxu0 %v1252
        %v1838 = vpop.f32.mrf.mxu0
        %v1839 = vadd.f32 0.0, %v1838
        %v1840 = vpop.f32.mrf.mxu0
        %v1841 = vpop.f32.mrf.mxu0
        %v1842 = vadd.f32 0.0, %v1841
        %v1843 = vpop.f32.mrf.mxu0
        %1844 = vmatprep.mubr.bf16.mxu0 0
        %1845 = vmatmul.mubr.bf16.gmra.mxu0 %v1255
        %v1846 = vpop.f32.mrf.mxu0
        %v1847 = vadd.f32 0.0, %v1846
        %v1848 = vpop.f32.mrf.mxu0
        %v1849 = vpop.f32.mrf.mxu0
        %v1850 = vadd.f32 0.0, %v1849
        %v1851 = vpop.f32.mrf.mxu0
        %1852 = vmatprep.mubr.bf16.mxu0 0
        %1853 = vmatmul.mubr.bf16.gmra.mxu0 %v1258
        %v1854 = vpop.f32.mrf.mxu0
        %v1855 = vadd.f32 0.0, %v1854
        %v1856 = vpop.f32.mrf.mxu0
        %v1857 = vpop.f32.mrf.mxu0
        %v1858 = vadd.f32 0.0, %v1857
        %v1859 = vpop.f32.mrf.mxu0
        %1860 = vmatprep.mubr.bf16.mxu0 0
        %1861 = vmatmul.mubr.bf16.gmra.mxu0 %v1261
        %v1862 = vpop.f32.mrf.mxu0
        %v1863 = vadd.f32 0.0, %v1862
        %v1864 = vpop.f32.mrf.mxu0
        %v1865 = vpop.f32.mrf.mxu0
        %v1866 = vadd.f32 0.0, %v1865
        %v1867 = vpop.f32.mrf.mxu0
        %1868 = vmatprep.mubr.bf16.mxu0 0
        %1869 = vmatmul.mubr.bf16.gmra.mxu0 %v1264
        %v1870 = vpop.f32.mrf.mxu0
        %v1871 = vadd.f32 0.0, %v1870
        %v1872 = vpop.f32.mrf.mxu0
        %v1873 = vpop.f32.mrf.mxu0
        %v1874 = vadd.f32 0.0, %v1873
        %v1875 = vpop.f32.mrf.mxu0
        %1876 = vmatprep.mubr.bf16.mxu0 0
        %1877 = vmatmul.mubr.bf16.gmra.mxu0 %v1267
        %v1878 = vpop.f32.mrf.mxu0
        %v1879 = vadd.f32 0.0, %v1878
        %v1880 = vpop.f32.mrf.mxu0
        %v1881 = vpop.f32.mrf.mxu0
        %v1882 = vadd.f32 0.0, %v1881
        %v1883 = vpop.f32.mrf.mxu0
        %1884 = vmatprep.mubr.bf16.mxu0 0
        %1885 = vmatmul.mubr.bf16.gmra.mxu0 %v1270
        %v1886 = vpop.f32.mrf.mxu0
        %v1887 = vadd.f32 0.0, %v1886
        %v1888 = vpop.f32.mrf.mxu0
        %v1889 = vpop.f32.mrf.mxu0
        %v1890 = vadd.f32 0.0, %v1889
        %v1891 = vpop.f32.mrf.mxu0
        %1892 = vmatprep.mubr.bf16.mxu0 0
        %1893 = vmatmul.mubr.bf16.gmra.mxu0 %v1273
        %v1894 = vpop.f32.mrf.mxu0
        %v1895 = vadd.f32 0.0, %v1894
        %v1896 = vpop.f32.mrf.mxu0
        %v1897 = vpop.f32.mrf.mxu0
        %v1898 = vadd.f32 0.0, %v1897
        %v1899 = vpop.f32.mrf.mxu0
        %1900 = vmatprep.mubr.bf16.mxu0 0
        %1901 = vmatmul.mubr.bf16.gmra.mxu0 %v1276
        %v1902 = vpop.f32.mrf.mxu0
        %v1903 = vadd.f32 0.0, %v1902
        %v1904 = vpop.f32.mrf.mxu0
        %v1905 = vpop.f32.mrf.mxu0
        %v1906 = vadd.f32 0.0, %v1905
        %v1907 = vpop.f32.mrf.mxu0
        %1908 = vmatprep.mubr.bf16.mxu0 0
        %1909 = vmatmul.mubr.bf16.gmra.mxu0 %v1279
        %v1910 = vpop.f32.mrf.mxu0
        %v1911 = vadd.f32 0.0, %v1910
        %v1912 = vpop.f32.mrf.mxu0
        %v1913 = vpop.f32.mrf.mxu0
        %v1914 = vadd.f32 0.0, %v1913
        %v1915 = vpop.f32.mrf.mxu0
        %1916 = vmatprep.mubr.bf16.mxu0 0
        %1917 = vmatmul.mubr.bf16.gmra.mxu0 %v1282
        %v1918 = vpop.f32.mrf.mxu0
        %v1919 = vadd.f32 0.0, %v1918
        %v1920 = vpop.f32.mrf.mxu0
        %v1921 = vpop.f32.mrf.mxu0
        %v1922 = vadd.f32 0.0, %v1921
        %v1923 = vpop.f32.mrf.mxu0
        %1924 = vmatprep.mubr.bf16.mxu0 0
        %1925 = vmatmul.mubr.bf16.gmra.mxu0 %v1285
        %v1926 = vpop.f32.mrf.mxu0
        %v1927 = vadd.f32 0.0, %v1926
        %v1928 = vpop.f32.mrf.mxu0
        %v1929 = vpop.f32.mrf.mxu0
        %v1930 = vadd.f32 0.0, %v1929
        %v1931 = vpop.f32.mrf.mxu0
        %1932 = vmatprep.mubr.bf16.mxu0 0
        %1933 = vmatmul.mubr.bf16.gmra.mxu0 %v1288
        %v1934 = vpop.f32.mrf.mxu0
        %v1935 = vadd.f32 0.0, %v1934
        %v1936 = vpop.f32.mrf.mxu0
        %v1937 = vpop.f32.mrf.mxu0
        %v1938 = vadd.f32 0.0, %v1937
        %v1939 = vpop.f32.mrf.mxu0
        %1940 = vmatprep.mubr.bf16.mxu0 0
        %1941 = vmatmul.mubr.bf16.gmra.mxu0 %v1291
        %v1942 = vpop.f32.mrf.mxu0
        %v1943 = vadd.f32 0.0, %v1942
        %v1944 = vpop.f32.mrf.mxu0
        %v1945 = vpop.f32.mrf.mxu0
        %v1946 = vadd.f32 0.0, %v1945
        %v1947 = vpop.f32.mrf.mxu0
        %1948 = vmatprep.mubr.bf16.mxu0 0
        %1949 = vmatmul.mubr.bf16.gmra.mxu0 %v1294
        %v1950 = vpop.f32.mrf.mxu0
        %v1951 = vadd.f32 0.0, %v1950
        %v1952 = vpop.f32.mrf.mxu0
        %v1953 = vpop.f32.mrf.mxu0
        %v1954 = vadd.f32 0.0, %v1953
        %v1955 = vpop.f32.mrf.mxu0
        %1956 = vmatprep.mubr.bf16.mxu0 0
        %1957 = vmatmul.mubr.bf16.gmra.mxu0 %v1297
        %v1958 = vpop.f32.mrf.mxu0
        %v1959 = vadd.f32 0.0, %v1958
        %v1960 = vpop.f32.mrf.mxu0
        %v1961 = vpop.f32.mrf.mxu0
        %v1962 = vadd.f32 0.0, %v1961
        %v1963 = vpop.f32.mrf.mxu0
        %1964 = vmatprep.mubr.bf16.mxu0 0
        %1965 = vmatmul.mubr.bf16.gmra.mxu0 %v1300
        %v1966 = vpop.f32.mrf.mxu0
        %v1967 = vadd.f32 0.0, %v1966
        %v1968 = vpop.f32.mrf.mxu0
        %v1969 = vpop.f32.mrf.mxu0
        %v1970 = vadd.f32 0.0, %v1969
        %v1971 = vpop.f32.mrf.mxu0
        %1972 = vmatprep.mubr.bf16.mxu0 0
        %1973 = vmatmul.mubr.bf16.gmra.mxu0 %v1303
        %v1974 = vpop.f32.mrf.mxu0
        %v1975 = vadd.f32 0.0, %v1974
        %v1976 = vpop.f32.mrf.mxu0
        %v1977 = vpop.f32.mrf.mxu0
        %v1978 = vadd.f32 0.0, %v1977
        %v1979 = vpop.f32.mrf.mxu0
        %1980 = vmatprep.mubr.bf16.mxu0 0
        %1981 = vmatmul.mubr.bf16.gmra.mxu0 %v1306
        %v1982 = vpop.f32.mrf.mxu0
        %v1983 = vadd.f32 0.0, %v1982
        %v1984 = vpop.f32.mrf.mxu0
        %v1985 = vpop.f32.mrf.mxu0
        %v1986 = vadd.f32 0.0, %v1985
        %v1987 = vpop.f32.mrf.mxu0
        %1988 = vmatprep.mubr.bf16.mxu0 0
        %1989 = vmatmul.mubr.bf16.gmra.mxu0 %v1309
        %v1990 = vpop.f32.mrf.mxu0
        %v1991 = vadd.f32 0.0, %v1990
        %v1992 = vpop.f32.mrf.mxu0
        %v1993 = vpop.f32.mrf.mxu0
        %v1994 = vadd.f32 0.0, %v1993
        %v1995 = vpop.f32.mrf.mxu0
        %1996 = vmatprep.mubr.bf16.mxu0 0
        %1997 = vmatmul.mubr.bf16.gmra.mxu0 %v1312
        %v1998 = vpop.f32.mrf.mxu0
        %v1999 = vadd.f32 0.0, %v1998
        %v2000 = vpop.f32.mrf.mxu0
        %v2001 = vpop.f32.mrf.mxu0
        %v2002 = vadd.f32 0.0, %v2001
        %v2003 = vpop.f32.mrf.mxu0
        %2004 = vmatprep.mubr.bf16.mxu0 0
        %2005 = vmatmul.mubr.bf16.gmra.mxu0 %v1315
        %v2006 = vpop.f32.mrf.mxu0
        %v2007 = vadd.f32 0.0, %v2006
        %v2008 = vpop.f32.mrf.mxu0
        %v2009 = vpop.f32.mrf.mxu0
        %v2010 = vadd.f32 0.0, %v2009
        %v2011 = vpop.f32.mrf.mxu0
        %2012 = vmatprep.mubr.bf16.mxu0 0
        %2013 = vmatmul.mubr.bf16.gmra.mxu0 %v1318
        %v2014 = vpop.f32.mrf.mxu0
        %v2015 = vadd.f32 0.0, %v2014
        %v2016 = vpop.f32.mrf.mxu0
        %v2017 = vpop.f32.mrf.mxu0
        %v2018 = vadd.f32 0.0, %v2017
        %v2019 = vpop.f32.mrf.mxu0
        %2020 = vmatprep.mubr.bf16.mxu0 0
        %2021 = vmatmul.mubr.bf16.gmra.mxu0 %v1321
        %v2022 = vpop.f32.mrf.mxu0
        %v2023 = vadd.f32 0.0, %v2022
        %v2024 = vpop.f32.mrf.mxu0
        %v2025 = vpop.f32.mrf.mxu0
        %v2026 = vadd.f32 0.0, %v2025
        %v2027 = vpop.f32.mrf.mxu0
        %2028 = vmatprep.mubr.bf16.mxu0 0
        %2029 = vmatmul.mubr.bf16.gmra.mxu0 %v1324
        %v2030 = vpop.f32.mrf.mxu0
        %v2031 = vadd.f32 0.0, %v2030
        %v2032 = vpop.f32.mrf.mxu0
        %v2033 = vpop.f32.mrf.mxu0
        %v2034 = vadd.f32 0.0, %v2033
        %v2035 = vpop.f32.mrf.mxu0
        %2036 = vmatprep.mubr.bf16.mxu0 0
        %2037 = vmatmul.mubr.bf16.gmra.mxu0 %v1327
        %v2038 = vpop.f32.mrf.mxu0
        %v2039 = vadd.f32 0.0, %v2038
        %v2040 = vpop.f32.mrf.mxu0
        %v2041 = vpop.f32.mrf.mxu0
        %v2042 = vadd.f32 0.0, %v2041
        %v2043 = vpop.f32.mrf.mxu0
        %2044 = vmatprep.mubr.bf16.mxu0 0
        %2045 = vmatmul.mubr.bf16.gmra.mxu0 %v1330
        %v2046 = vpop.f32.mrf.mxu0
        %v2047 = vadd.f32 0.0, %v2046
        %v2048 = vpop.f32.mrf.mxu0
        %v2049 = vpop.f32.mrf.mxu0
        %v2050 = vadd.f32 0.0, %v2049
        %v2051 = vpop.f32.mrf.mxu0
        %2052 = vmatprep.mubr.bf16.mxu0 0
        %2053 = vmatmul.mubr.bf16.gmra.mxu0 %v1333
        %v2054 = vpop.f32.mrf.mxu0
        %v2055 = vadd.f32 0.0, %v2054
        %v2056 = vpop.f32.mrf.mxu0
        %v2057 = vpop.f32.mrf.mxu0
        %v2058 = vadd.f32 0.0, %v2057
        %v2059 = vpop.f32.mrf.mxu0
        %2060 = vmatprep.mubr.bf16.mxu0 0
        %2061 = vmatmul.mubr.bf16.gmra.mxu0 %v1336
        %v2062 = vpop.f32.mrf.mxu0
        %v2063 = vadd.f32 0.0, %v2062
        %v2064 = vpop.f32.mrf.mxu0
        %v2065 = vpop.f32.mrf.mxu0
        %v2066 = vadd.f32 0.0, %v2065
        %v2067 = vpop.f32.mrf.mxu0
        %2068 = vmatprep.mubr.bf16.mxu0 0
        %2069 = vmatmul.mubr.bf16.gmra.mxu0 %v1339
        %v2070 = vpop.f32.mrf.mxu0
        %v2071 = vadd.f32 0.0, %v2070
        %v2072 = vpop.f32.mrf.mxu0
        %v2073 = vpop.f32.mrf.mxu0
        %v2074 = vadd.f32 0.0, %v2073
        %v2075 = vpop.f32.mrf.mxu0
        %2076 = vmatprep.mubr.bf16.mxu0 0
        %2077 = vmatmul.mubr.bf16.gmra.mxu0 %v1342
        %v2078 = vpop.f32.mrf.mxu0
        %v2079 = vadd.f32 0.0, %v2078
        %v2080 = vpop.f32.mrf.mxu0
        %v2081 = vpop.f32.mrf.mxu0
        %v2082 = vadd.f32 0.0, %v2081
        %v2083 = vpop.f32.mrf.mxu0
        %2084 = vmatprep.mubr.bf16.mxu0 0
        %2085 = vmatmul.mubr.bf16.gmra.mxu0 %v1345
        %v2086 = vpop.f32.mrf.mxu0
        %v2087 = vadd.f32 0.0, %v2086
        %v2088 = vpop.f32.mrf.mxu0
        %v2089 = vpop.f32.mrf.mxu0
        %v2090 = vadd.f32 0.0, %v2089
        %v2091 = vpop.f32.mrf.mxu0
        %2092 = vmatprep.mubr.bf16.mxu0 0
        %2093 = vmatmul.mubr.bf16.gmra.mxu0 %v1348
        %v2094 = vpop.f32.mrf.mxu0
        %v2095 = vadd.f32 0.0, %v2094
        %v2096 = vpop.f32.mrf.mxu0
        %v2097 = vpop.f32.mrf.mxu0
        %v2098 = vadd.f32 0.0, %v2097
        %v2099 = vpop.f32.mrf.mxu0
        %2100 = vmatprep.mubr.bf16.mxu0 0
        %2101 = vmatmul.mubr.bf16.gmra.mxu0 %v1351
        %v2102 = vpop.f32.mrf.mxu0
        %v2103 = vadd.f32 0.0, %v2102
        %v2104 = vpop.f32.mrf.mxu0
        %v2105 = vpop.f32.mrf.mxu0
        %v2106 = vadd.f32 0.0, %v2105
        %v2107 = vpop.f32.mrf.mxu0
        %2108 = vmatprep.mubr.bf16.mxu0 0
        %2109 = vmatmul.mubr.bf16.gmra.mxu0 %v1354
        %v2110 = vpop.f32.mrf.mxu0
        %v2111 = vadd.f32 0.0, %v2110
        %v2112 = vpop.f32.mrf.mxu0
        %v2113 = vpop.f32.mrf.mxu0
        %v2114 = vadd.f32 0.0, %v2113
        %v2115 = vpop.f32.mrf.mxu0
        %2116 = vmatprep.mubr.bf16.mxu0 0
        %2117 = vmatmul.mubr.bf16.gmra.mxu0 %v1357
        %v2118 = vpop.f32.mrf.mxu0
        %v2119 = vadd.f32 0.0, %v2118
        %v2120 = vpop.f32.mrf.mxu0
        %v2121 = vpop.f32.mrf.mxu0
        %v2122 = vadd.f32 0.0, %v2121
        %v2123 = vpop.f32.mrf.mxu0
        %2124 = vmatprep.mubr.bf16.mxu0 0
        %2125 = vmatmul.mubr.bf16.gmra.mxu0 %v1360
        %v2126 = vpop.f32.mrf.mxu0
        %v2127 = vadd.f32 0.0, %v2126
        %v2128 = vpop.f32.mrf.mxu0
        %v2129 = vpop.f32.mrf.mxu0
        %v2130 = vadd.f32 0.0, %v2129
        %v2131 = vpop.f32.mrf.mxu0
        %2132 = vmatprep.mubr.bf16.mxu0 0
        %2133 = vmatmul.mubr.bf16.gmra.mxu0 %v1363
        %v2134 = vpop.f32.mrf.mxu0
        %v2135 = vadd.f32 0.0, %v2134
        %v2136 = vpop.f32.mrf.mxu0
        %v2137 = vpop.f32.mrf.mxu0
        %v2138 = vadd.f32 0.0, %v2137
        %v2139 = vpop.f32.mrf.mxu0
        %2140 = vmatprep.mubr.bf16.mxu0 0
        %2141 = vmatmul.mubr.bf16.gmra.mxu0 %v1366
        %v2142 = vpop.f32.mrf.mxu0
        %v2143 = vadd.f32 0.0, %v2142
        %v2144 = vpop.f32.mrf.mxu0
        %v2145 = vpop.f32.mrf.mxu0
        %v2146 = vadd.f32 0.0, %v2145
        %v2147 = vpop.f32.mrf.mxu0
        %2148 = vmatprep.mubr.bf16.mxu0 0
        %2149 = vmatmul.mubr.bf16.gmra.mxu0 %v1369
        %v2150 = vpop.f32.mrf.mxu0
        %v2151 = vadd.f32 0.0, %v2150
        %v2152 = vpop.f32.mrf.mxu0
        %v2153 = vpop.f32.mrf.mxu0
        %v2154 = vadd.f32 0.0, %v2153
        %v2155 = vpop.f32.mrf.mxu0
        %2156 = vmatprep.mubr.bf16.mxu0 0
        %2157 = vmatmul.mubr.bf16.gmra.mxu0 %v1372
        %v2158 = vpop.f32.mrf.mxu0
        %v2159 = vadd.f32 0.0, %v2158
        %v2160 = vpop.f32.mrf.mxu0
        %v2161 = vpop.f32.mrf.mxu0
        %v2162 = vadd.f32 0.0, %v2161
        %v2163 = vpop.f32.mrf.mxu0
        %2164 = vmatprep.mubr.bf16.mxu0 0
        %2165 = vmatmul.mubr.bf16.gmra.mxu0 %v1375
        %v2166 = vpop.f32.mrf.mxu0
        %v2167 = vadd.f32 0.0, %v2166
        %v2168 = vpop.f32.mrf.mxu0
        %v2169 = vpop.f32.mrf.mxu0
        %v2170 = vadd.f32 0.0, %v2169
        %v2171 = vpop.f32.mrf.mxu0
        %2172 = vmatprep.mubr.bf16.mxu0 0
        %2173 = vmatmul.mubr.bf16.gmra.mxu0 %v1378
        %v2174 = vpop.f32.mrf.mxu0
        %v2175 = vadd.f32 0.0, %v2174
        %v2176 = vpop.f32.mrf.mxu0
        %v2177 = vpop.f32.mrf.mxu0
        %v2178 = vadd.f32 0.0, %v2177
        %v2179 = vpop.f32.mrf.mxu0
        %2180 = vmatprep.mubr.bf16.mxu0 0
        %2181 = vmatmul.mubr.bf16.gmra.mxu0 %v1381
        %v2182 = vpop.f32.mrf.mxu0
        %v2183 = vadd.f32 0.0, %v2182
        %v2184 = vpop.f32.mrf.mxu0
        %v2185 = vpop.f32.mrf.mxu0
        %v2186 = vadd.f32 0.0, %v2185
        %v2187 = vpop.f32.mrf.mxu0
        %2188 = vmatprep.mubr.bf16.mxu0 0
        %2189 = vmatmul.mubr.bf16.gmra.mxu0 %v1384
        %v2190 = vpop.f32.mrf.mxu0
        %v2191 = vadd.f32 0.0, %v2190
        %v2192 = vpop.f32.mrf.mxu0
        %v2193 = vpop.f32.mrf.mxu0
        %v2194 = vadd.f32 0.0, %v2193
        %v2195 = vpop.f32.mrf.mxu0
        %2196 = vmatprep.mubr.bf16.mxu0 0
        %2197 = vmatmul.mubr.bf16.gmra.mxu0 %v1387
        %v2198 = vpop.f32.mrf.mxu0
        %v2199 = vadd.f32 0.0, %v2198
        %v2200 = vpop.f32.mrf.mxu0
        %v2201 = vpop.f32.mrf.mxu0
        %v2202 = vadd.f32 0.0, %v2201
        %v2203 = vpop.f32.mrf.mxu0
        %2204 = vmatprep.mubr.bf16.mxu0 0
        %2205 = vmatmul.mubr.bf16.gmra.mxu0 %v1390
        %v2206 = vpop.f32.mrf.mxu0
        %v2207 = vadd.f32 0.0, %v2206
        %v2208 = vpop.f32.mrf.mxu0
        %v2209 = vpop.f32.mrf.mxu0
        %v2210 = vadd.f32 0.0, %v2209
        %v2211 = vpop.f32.mrf.mxu0
        %2212 = vmatprep.mubr.bf16.mxu0 0
        %2213 = vmatmul.mubr.bf16.gmra.mxu0 %v1393
        %v2214 = vpop.f32.mrf.mxu0
        %v2215 = vadd.f32 0.0, %v2214
        %v2216 = vpop.f32.mrf.mxu0
        %v2217 = vpop.f32.mrf.mxu0
        %v2218 = vadd.f32 0.0, %v2217
        %v2219 = vpop.f32.mrf.mxu0
        %2220 = vmatprep.mubr.bf16.mxu0 0
        %2221 = vmatmul.mubr.bf16.gmra.mxu0 %v1396
        %v2222 = vpop.f32.mrf.mxu0
        %v2223 = vadd.f32 0.0, %v2222
        %v2224 = vpop.f32.mrf.mxu0
        %v2225 = vpop.f32.mrf.mxu0
        %v2226 = vadd.f32 0.0, %v2225
        %v2227 = vpop.f32.mrf.mxu0
        %2228 = vmatprep.mubr.bf16.mxu0 0
        %2229 = vmatmul.mubr.bf16.gmra.mxu0 %v1399
        %v2230 = vpop.f32.mrf.mxu0
        %v2231 = vadd.f32 0.0, %v2230
        %v2232 = vpop.f32.mrf.mxu0
        %v2233 = vpop.f32.mrf.mxu0
        %v2234 = vadd.f32 0.0, %v2233
        %v2235 = vpop.f32.mrf.mxu0
        %2236 = vmatprep.mubr.bf16.mxu0 0
        %2237 = vmatmul.mubr.bf16.gmra.mxu0 %v1402
        %v2238 = vpop.f32.mrf.mxu0
        %v2239 = vadd.f32 0.0, %v2238
        %v2240 = vpop.f32.mrf.mxu0
        %v2241 = vpop.f32.mrf.mxu0
        %v2242 = vadd.f32 0.0, %v2241
        %v2243 = vpop.f32.mrf.mxu0
        %2244 = vmatprep.mubr.bf16.mxu0 0
        %2245 = vmatmul.mubr.bf16.gmra.mxu0 %v1405
        %v2246 = vpop.f32.mrf.mxu0
        %v2247 = vadd.f32 0.0, %v2246
        %v2248 = vpop.f32.mrf.mxu0
        %v2249 = vpop.f32.mrf.mxu0
        %v2250 = vadd.f32 0.0, %v2249
        %v2251 = vpop.f32.mrf.mxu0
        %2252 = vmatprep.mubr.bf16.mxu0 0
        %2253 = vmatmul.mubr.bf16.gmra.mxu0 %v1408
        %v2254 = vpop.f32.mrf.mxu0
        %v2255 = vadd.f32 0.0, %v2254
        %v2256 = vpop.f32.mrf.mxu0
        %v2257 = vpop.f32.mrf.mxu0
        %v2258 = vadd.f32 0.0, %v2257
        %v2259 = vpop.f32.mrf.mxu0
        %2260 = vmatprep.mubr.bf16.mxu0 0
        %2261 = vmatmul.mubr.bf16.gmra.mxu0 %v1411
        %v2262 = vpop.f32.mrf.mxu0
        %v2263 = vadd.f32 0.0, %v2262
        %v2264 = vpop.f32.mrf.mxu0
        %v2265 = vpop.f32.mrf.mxu0
        %v2266 = vadd.f32 0.0, %v2265
        %v2267 = vpop.f32.mrf.mxu0
        %2268 = vmatprep.mubr.bf16.mxu0 0
        %2269 = vmatmul.mubr.bf16.gmra.mxu0 %v1414
        %v2270 = vpop.f32.mrf.mxu0
        %v2271 = vadd.f32 0.0, %v2270
        %v2272 = vpop.f32.mrf.mxu0
        %v2273 = vpop.f32.mrf.mxu0
        %v2274 = vadd.f32 0.0, %v2273
        %v2275 = vpop.f32.mrf.mxu0
        %2276 = vmatprep.mubr.bf16.mxu0 0
        %2277 = vmatmul.mubr.bf16.gmra.mxu0 %v1417
        %v2278 = vpop.f32.mrf.mxu0
        %v2279 = vadd.f32 0.0, %v2278
        %v2280 = vpop.f32.mrf.mxu0
        %v2281 = vpop.f32.mrf.mxu0
        %v2282 = vadd.f32 0.0, %v2281
        %v2283 = vpop.f32.mrf.mxu0
        %2284 = vmatprep.mubr.bf16.mxu0 0
        %2285 = vmatmul.mubr.bf16.gmra.mxu0 %v1420
        %v2286 = vpop.f32.mrf.mxu0
        %v2287 = vadd.f32 0.0, %v2286
        %v2288 = vpop.f32.mrf.mxu0
        %v2289 = vpop.f32.mrf.mxu0
        %v2290 = vadd.f32 0.0, %v2289
        %v2291 = vpop.f32.mrf.mxu0
        %2292 = vmatprep.mubr.bf16.mxu0 0
        %2293 = vmatmul.mubr.bf16.gmra.mxu0 %v1423
        %v2294 = vpop.f32.mrf.mxu0
        %v2295 = vadd.f32 0.0, %v2294
        %v2296 = vpop.f32.mrf.mxu0
        %v2297 = vpop.f32.mrf.mxu0
        %v2298 = vadd.f32 0.0, %v2297
        %v2299 = vpop.f32.mrf.mxu0
        %2300 = vmatprep.mubr.bf16.mxu0 0
        %2301 = vmatmul.mubr.bf16.gmra.mxu0 %v1426
        %v2302 = vpop.f32.mrf.mxu0
        %v2303 = vadd.f32 0.0, %v2302
        %v2304 = vpop.f32.mrf.mxu0
        %v2305 = vpop.f32.mrf.mxu0
        %v2306 = vadd.f32 0.0, %v2305
        %v2307 = vpop.f32.mrf.mxu0
        %2308 = vmatprep.mubr.bf16.mxu0 0
        %2309 = vmatmul.mubr.bf16.gmra.mxu0 %v1429
        %v2310 = vpop.f32.mrf.mxu0
        %v2311 = vadd.f32 0.0, %v2310
        %v2312 = vpop.f32.mrf.mxu0
        %v2313 = vpop.f32.mrf.mxu0
        %v2314 = vadd.f32 0.0, %v2313
        %v2315 = vpop.f32.mrf.mxu0
        %2316 = vmatprep.mubr.bf16.mxu0 0
        %2317 = vmatmul.mubr.bf16.gmra.mxu0 %v1432
        %v2318 = vpop.f32.mrf.mxu0
        %v2319 = vadd.f32 0.0, %v2318
        %v2320 = vpop.f32.mrf.mxu0
        %v2321 = vpop.f32.mrf.mxu0
        %v2322 = vadd.f32 0.0, %v2321
        %v2323 = vpop.f32.mrf.mxu0
        %2324 = vmatprep.mubr.bf16.mxu0 0
        %2325 = vmatmul.mubr.bf16.gmra.mxu0 %v1435
        %v2326 = vpop.f32.mrf.mxu0
        %v2327 = vadd.f32 0.0, %v2326
        %v2328 = vpop.f32.mrf.mxu0
        %v2329 = vpop.f32.mrf.mxu0
        %v2330 = vadd.f32 0.0, %v2329
        %v2331 = vpop.f32.mrf.mxu0
        %2332 = vmatprep.mubr.bf16.mxu0 0
        %2333 = vmatmul.mubr.bf16.gmra.mxu0 %v1438
        %v2334 = vpop.f32.mrf.mxu0
        %v2335 = vadd.f32 0.0, %v2334
        %v2336 = vpop.f32.mrf.mxu0
        %v2337 = vpop.f32.mrf.mxu0
        %v2338 = vadd.f32 0.0, %v2337
        %v2339 = vpop.f32.mrf.mxu0
        %2340 = vmatprep.mubr.bf16.mxu0 0
        %2341 = vmatmul.mubr.bf16.gmra.mxu0 %v1441
        %v2342 = vpop.f32.mrf.mxu0
        %v2343 = vadd.f32 0.0, %v2342
        %v2344 = vpop.f32.mrf.mxu0
        %v2345 = vpop.f32.mrf.mxu0
        %v2346 = vadd.f32 0.0, %v2345
        %v2347 = vpop.f32.mrf.mxu0
        %2348 = vmatprep.mubr.bf16.mxu0 0
        %2349 = vmatmul.mubr.bf16.gmra.mxu0 %v1444
        %v2350 = vpop.f32.mrf.mxu0
        %v2351 = vadd.f32 0.0, %v2350
        %v2352 = vpop.f32.mrf.mxu0
        %v2353 = vpop.f32.mrf.mxu0
        %v2354 = vadd.f32 0.0, %v2353
        %v2355 = vpop.f32.mrf.mxu0
        %2356 = vmatprep.mubr.bf16.mxu0 0
        %2357 = vmatmul.mubr.bf16.gmra.mxu0 %v1447
        %v2358 = vpop.f32.mrf.mxu0
        %v2359 = vadd.f32 0.0, %v2358
        %v2360 = vpop.f32.mrf.mxu0
        %v2361 = vpop.f32.mrf.mxu0
        %v2362 = vadd.f32 0.0, %v2361
        %v2363 = vpop.f32.mrf.mxu0
        %2364 = vmatprep.mubr.bf16.mxu0 0
        %2365 = vmatmul.mubr.bf16.gmra.mxu0 %v1450
        %v2366 = vpop.f32.mrf.mxu0
        %v2367 = vadd.f32 0.0, %v2366
        %v2368 = vpop.f32.mrf.mxu0
        %v2369 = vpop.f32.mrf.mxu0
        %v2370 = vadd.f32 0.0, %v2369
        %v2371 = vpop.f32.mrf.mxu0
        %2372 = vmatprep.mubr.bf16.mxu0 0
        %2373 = vmatmul.mubr.bf16.gmra.mxu0 %v1453
        %v2374 = vpop.f32.mrf.mxu0
        %v2375 = vadd.f32 0.0, %v2374
        %v2376 = vpop.f32.mrf.mxu0
        %v2377 = vpop.f32.mrf.mxu0
        %v2378 = vadd.f32 0.0, %v2377
        %v2379 = vpop.f32.mrf.mxu0
        %2380 = vmatprep.mubr.bf16.mxu0 0
        %2381 = vmatmul.mubr.bf16.gmra.mxu0 %v1456
        %v2382 = vpop.f32.mrf.mxu0
        %v2383 = vadd.f32 0.0, %v2382
        %v2384 = vpop.f32.mrf.mxu0
        %v2385 = vpop.f32.mrf.mxu0
        %v2386 = vadd.f32 0.0, %v2385
        %v2387 = vpop.f32.mrf.mxu0
        %2388 = vmatprep.mubr.bf16.mxu0 0
        %2389 = vmatmul.mubr.bf16.gmra.mxu0 %v1459
        %v2390 = vpop.f32.mrf.mxu0
        %v2391 = vadd.f32 0.0, %v2390
        %v2392 = vpop.f32.mrf.mxu0
        %v2393 = vpop.f32.mrf.mxu0
        %v2394 = vadd.f32 0.0, %v2393
        %v2395 = vpop.f32.mrf.mxu0
        %2396 = vmatprep.mubr.bf16.mxu0 0
        %2397 = vmatmul.mubr.bf16.gmra.mxu0 %v1462
        %v2398 = vpop.f32.mrf.mxu0
        %v2399 = vadd.f32 0.0, %v2398
        %v2400 = vpop.f32.mrf.mxu0
        %v2401 = vpop.f32.mrf.mxu0
        %v2402 = vadd.f32 0.0, %v2401
        %v2403 = vpop.f32.mrf.mxu0
        %2404 = vmatprep.mubr.bf16.mxu0 0
        %2405 = vmatmul.mubr.bf16.gmra.mxu0 %v1465
        %v2406 = vpop.f32.mrf.mxu0
        %v2407 = vadd.f32 0.0, %v2406
        %v2408 = vpop.f32.mrf.mxu0
        %v2409 = vpop.f32.mrf.mxu0
        %v2410 = vadd.f32 0.0, %v2409
        %v2411 = vpop.f32.mrf.mxu0
        %2412 = vmatprep.mubr.bf16.mxu0 0
        %2413 = vmatmul.mubr.bf16.gmra.mxu0 %v1468
        %v2414 = vpop.f32.mrf.mxu0
        %v2415 = vadd.f32 0.0, %v2414
        %v2416 = vpop.f32.mrf.mxu0
        %v2417 = vpop.f32.mrf.mxu0
        %v2418 = vadd.f32 0.0, %v2417
        %v2419 = vpop.f32.mrf.mxu0
        %2420 = vmatprep.mubr.bf16.mxu0 0
        %2421 = vmatmul.mubr.bf16.gmra.mxu0 %v1471
        %v2422 = vpop.f32.mrf.mxu0
        %v2423 = vadd.f32 0.0, %v2422
        %v2424 = vpop.f32.mrf.mxu0
        %v2425 = vpop.f32.mrf.mxu0
        %v2426 = vadd.f32 0.0, %v2425
        %v2427 = vpop.f32.mrf.mxu0
        %2428 = vmatprep.mubr.bf16.mxu0 0
        %2429 = vmatmul.mubr.bf16.gmra.mxu0 %v1474
        %v2430 = vpop.f32.mrf.mxu0
        %v2431 = vadd.f32 0.0, %v2430
        %v2432 = vpop.f32.mrf.mxu0
        %v2433 = vpop.f32.mrf.mxu0
        %v2434 = vadd.f32 0.0, %v2433
        %v2435 = vpop.f32.mrf.mxu0
        %2436 = vmatprep.mubr.bf16.mxu0 0
        %2437 = vmatmul.mubr.bf16.gmra.mxu0 %v1477
        %v2438 = vpop.f32.mrf.mxu0
        %v2439 = vadd.f32 0.0, %v2438
        %v2440 = vpop.f32.mrf.mxu0
        %v2441 = vpop.f32.mrf.mxu0
        %v2442 = vadd.f32 0.0, %v2441
        %v2443 = vpop.f32.mrf.mxu0
        %2444 = vmatprep.mubr.bf16.mxu0 0
        %2445 = vmatmul.mubr.bf16.gmra.mxu0 %v1480
        %v2446 = vpop.f32.mrf.mxu0
        %v2447 = vadd.f32 0.0, %v2446
        %v2448 = vpop.f32.mrf.mxu0
        %v2449 = vpop.f32.mrf.mxu0
        %v2450 = vadd.f32 0.0, %v2449
        %v2451 = vpop.f32.mrf.mxu0
        %2452 = vmatprep.mubr.bf16.mxu0 0
        %2453 = vmatmul.mubr.bf16.gmra.mxu0 %v1483
        %v2454 = vpop.f32.mrf.mxu0
        %v2455 = vadd.f32 0.0, %v2454
        %v2456 = vpop.f32.mrf.mxu0
        %v2457 = vpop.f32.mrf.mxu0
        %v2458 = vadd.f32 0.0, %v2457
        %v2459 = vpop.f32.mrf.mxu0
        %2460 = vmatprep.mubr.bf16.mxu0 0
        %2461 = vmatmul.mubr.bf16.gmra.mxu0 %v1486
        %v2462 = vpop.f32.mrf.mxu0
        %v2463 = vadd.f32 0.0, %v2462
        %v2464 = vpop.f32.mrf.mxu0
        %v2465 = vpop.f32.mrf.mxu0
        %v2466 = vadd.f32 0.0, %v2465
        %v2467 = vpop.f32.mrf.mxu0
        %2468 = vmatprep.mubr.bf16.mxu0 0
        %2469 = vmatmul.mubr.bf16.gmra.mxu0 %v1489
        %v2470 = vpop.f32.mrf.mxu0
        %v2471 = vadd.f32 0.0, %v2470
        %v2472 = vpop.f32.mrf.mxu0
        %v2473 = vpop.f32.mrf.mxu0
        %v2474 = vadd.f32 0.0, %v2473
        %v2475 = vpop.f32.mrf.mxu0
        %2476 = vmatprep.mubr.bf16.mxu0 0
        %2477 = vmatmul.mubr.bf16.gmra.mxu0 %v1492
        %v2478 = vpop.f32.mrf.mxu0
        %v2479 = vadd.f32 0.0, %v2478
        %v2480 = vpop.f32.mrf.mxu0
        %v2481 = vpop.f32.mrf.mxu0
        %v2482 = vadd.f32 0.0, %v2481
        %v2483 = vpop.f32.mrf.mxu0
        %2484 = vmatprep.mubr.bf16.mxu0 0
        %2485 = vmatmul.mubr.bf16.gmra.mxu0 %v1495
        %v2486 = vpop.f32.mrf.mxu0
        %v2487 = vadd.f32 0.0, %v2486
        %v2488 = vpop.f32.mrf.mxu0
        %v2489 = vpop.f32.mrf.mxu0
        %v2490 = vadd.f32 0.0, %v2489
        %v2491 = vpop.f32.mrf.mxu0
        %2492 = vmatprep.mubr.bf16.mxu0 0
        %2493 = vmatmul.mubr.bf16.gmra.mxu0 %v1498
        %v2494 = vpop.f32.mrf.mxu0
        %v2495 = vadd.f32 0.0, %v2494
        %v2496 = vpop.f32.mrf.mxu0
        %v2497 = vpop.f32.mrf.mxu0
        %v2498 = vadd.f32 0.0, %v2497
        %v2499 = vpop.f32.mrf.mxu0
        %2500 = vmatprep.mubr.bf16.mxu0 0
        %2501 = vmatmul.mubr.bf16.gmra.mxu0 %v1501
        %v2502 = vpop.f32.mrf.mxu0
        %v2503 = vadd.f32 0.0, %v2502
        %v2504 = vpop.f32.mrf.mxu0
        %v2505 = vpop.f32.mrf.mxu0
        %v2506 = vadd.f32 0.0, %v2505
        %v2507 = vpop.f32.mrf.mxu0
        %2508 = vmatprep.mubr.bf16.mxu0 0
        %2509 = vmatmul.mubr.bf16.gmra.mxu0 %v1504
        %v2510 = vpop.f32.mrf.mxu0
        %v2511 = vadd.f32 0.0, %v2510
        %v2512 = vpop.f32.mrf.mxu0
        %v2513 = vpop.f32.mrf.mxu0
        %v2514 = vadd.f32 0.0, %v2513
        %v2515 = vpop.f32.mrf.mxu0
        %2516 = vmatprep.mubr.bf16.mxu0 0
        %2517 = vmatmul.mubr.bf16.gmra.mxu0 %v1507
        %v2518 = vpop.f32.mrf.mxu0
        %v2519 = vadd.f32 0.0, %v2518
        %v2520 = vpop.f32.mrf.mxu0
        %v2521 = vpop.f32.mrf.mxu0
        %v2522 = vadd.f32 0.0, %v2521
        %v2523 = vpop.f32.mrf.mxu0
        %2524 = vmatprep.mubr.bf16.mxu0 0
        %2525 = vmatmul.mubr.bf16.gmra.mxu0 %v1510
        %v2526 = vpop.f32.mrf.mxu0
        %v2527 = vadd.f32 0.0, %v2526
        %v2528 = vpop.f32.mrf.mxu0
        %v2529 = vpop.f32.mrf.mxu0
        %v2530 = vadd.f32 0.0, %v2529
        %v2531 = vpop.f32.mrf.mxu0
        %2532 = vmatprep.mubr.bf16.mxu0 0
        %2533 = vmatmul.mubr.bf16.gmra.mxu0 %v1513
        %v2534 = vpop.f32.mrf.mxu0
        %v2535 = vadd.f32 0.0, %v2534
        %v2536 = vpop.f32.mrf.mxu0
        %v2537 = vpop.f32.mrf.mxu0
        %v2538 = vadd.f32 0.0, %v2537
        %v2539 = vpop.f32.mrf.mxu0
        %2540 = vmatprep.mubr.bf16.mxu0 0
        %2541 = vmatmul.mubr.bf16.gmra.mxu0 %v1516
        %v2542 = vpop.f32.mrf.mxu0
        %v2543 = vadd.f32 0.0, %v2542
        %v2544 = vpop.f32.mrf.mxu0
        %v2545 = vpop.f32.mrf.mxu0
        %v2546 = vadd.f32 0.0, %v2545
        %v2547 = vpop.f32.mrf.mxu0
        %2548 = vmatprep.mubr.bf16.mxu0 0
        %2549 = vmatmul.mubr.bf16.gmra.mxu0 %v1519
        %v2550 = vpop.f32.mrf.mxu0
        %v2551 = vadd.f32 0.0, %v2550
        %v2552 = vpop.f32.mrf.mxu0
        %v2553 = vpop.f32.mrf.mxu0
        %v2554 = vadd.f32 0.0, %v2553
        %v2555 = vpop.f32.mrf.mxu0
        %2556 = vmatprep.mubr.bf16.mxu0 0
        %2557 = vmatmul.mubr.bf16.gmra.mxu0 %v1522
        %v2558 = vpop.f32.mrf.mxu0
        %v2559 = vadd.f32 0.0, %v2558
        %v2560 = vpop.f32.mrf.mxu0
        %v2561 = vpop.f32.mrf.mxu0
        %v2562 = vadd.f32 0.0, %v2561
        %v2563 = vpop.f32.mrf.mxu0
        %2564 = vmatprep.mubr.bf16.mxu0 0
        %2565 = vmatmul.mubr.bf16.gmra.mxu0 %v1525
        %v2566 = vpop.f32.mrf.mxu0
        %v2567 = vadd.f32 0.0, %v2566
        %v2568 = vpop.f32.mrf.mxu0
        %v2569 = vpop.f32.mrf.mxu0
        %v2570 = vadd.f32 0.0, %v2569
        %v2571 = vpop.f32.mrf.mxu0
        %2572 = vmatprep.mubr.bf16.mxu0 0
        %2573 = vmatmul.mubr.bf16.gmra.mxu0 %v1528
        %v2574 = vpop.f32.mrf.mxu0
        %v2575 = vadd.f32 0.0, %v2574
        %v2576 = vpop.f32.mrf.mxu0
        %v2577 = vpop.f32.mrf.mxu0
        %v2578 = vadd.f32 0.0, %v2577
        %v2579 = vpop.f32.mrf.mxu0
        %2580 = vmatprep.mubr.bf16.mxu0 0
        %2581 = vmatmul.mubr.bf16.gmra.mxu0 %v1531
        %v2582 = vpop.f32.mrf.mxu0
        %v2583 = vadd.f32 0.0, %v2582
        %v2584 = vpop.f32.mrf.mxu0
        %v2585 = vpop.f32.mrf.mxu0
        %v2586 = vadd.f32 0.0, %v2585
        %v2587 = vpop.f32.mrf.mxu0
        %2588 = vmatprep.mubr.bf16.mxu0 0
        %2589 = vmatmul.mubr.bf16.gmra.mxu0 %v1534
        %v2590 = vpop.f32.mrf.mxu0
        %v2591 = vadd.f32 0.0, %v2590
        %v2592 = vpop.f32.mrf.mxu0
        %v2593 = vpop.f32.mrf.mxu0
        %v2594 = vadd.f32 0.0, %v2593
        %v2595 = vpop.f32.mrf.mxu0
        %2596 = vdwg.mxu0
        %v2597 = vmax.f32 %v1575, 0.0
        %v2598 = vmax.f32 %v1578, 0.0
        %v2599 = vmax.f32 %v1583, 0.0
        %v2600 = vmax.f32 %v1586, 0.0
        %v2601 = vmax.f32 %v1591, 0.0
        %v2602 = vmax.f32 %v1594, 0.0
        %v2603 = vmax.f32 %v1599, 0.0
        %v2604 = vmax.f32 %v1602, 0.0
        %v2605 = vmax.f32 %v1607, 0.0
        %v2606 = vmax.f32 %v1610, 0.0
        %v2607 = vmax.f32 %v1615, 0.0
        %v2608 = vmax.f32 %v1618, 0.0
        %v2609 = vmax.f32 %v1623, 0.0
        %v2610 = vmax.f32 %v1626, 0.0
        %v2611 = vmax.f32 %v1631, 0.0
        %v2612 = vmax.f32 %v1634, 0.0
        %v2613 = vmax.f32 %v1639, 0.0
        %v2614 = vmax.f32 %v1642, 0.0
        %v2615 = vmax.f32 %v1647, 0.0
        %v2616 = vmax.f32 %v1650, 0.0
        %v2617 = vmax.f32 %v1655, 0.0
        %v2618 = vmax.f32 %v1658, 0.0
        %v2619 = vmax.f32 %v1663, 0.0
        %v2620 = vmax.f32 %v1666, 0.0
        %v2621 = vmax.f32 %v1671, 0.0
        %v2622 = vmax.f32 %v1674, 0.0
        %v2623 = vmax.f32 %v1679, 0.0
        %v2624 = vmax.f32 %v1682, 0.0
        %v2625 = vmax.f32 %v1687, 0.0
        %v2626 = vmax.f32 %v1690, 0.0
        %v2627 = vmax.f32 %v1695, 0.0
        %v2628 = vmax.f32 %v1698, 0.0
        %v2629 = vmax.f32 %v1703, 0.0
        %v2630 = vmax.f32 %v1706, 0.0
        %v2631 = vmax.f32 %v1711, 0.0
        %v2632 = vmax.f32 %v1714, 0.0
        %v2633 = vmax.f32 %v1719, 0.0
        %v2634 = vmax.f32 %v1722, 0.0
        %v2635 = vmax.f32 %v1727, 0.0
        %v2636 = vmax.f32 %v1730, 0.0
        %v2637 = vmax.f32 %v1735, 0.0
        %v2638 = vmax.f32 %v1738, 0.0
        %v2639 = vmax.f32 %v1743, 0.0
        %v2640 = vmax.f32 %v1746, 0.0
        %v2641 = vmax.f32 %v1751, 0.0
        %v2642 = vmax.f32 %v1754, 0.0
        %v2643 = vmax.f32 %v1759, 0.0
        %v2644 = vmax.f32 %v1762, 0.0
        %v2645 = vmax.f32 %v1767, 0.0
        %v2646 = vmax.f32 %v1770, 0.0
        %v2647 = vmax.f32 %v1775, 0.0
        %v2648 = vmax.f32 %v1778, 0.0
        %v2649 = vmax.f32 %v1783, 0.0
        %v2650 = vmax.f32 %v1786, 0.0
        %v2651 = vmax.f32 %v1791, 0.0
        %v2652 = vmax.f32 %v1794, 0.0
        %v2653 = vmax.f32 %v1799, 0.0
        %v2654 = vmax.f32 %v1802, 0.0
        %v2655 = vmax.f32 %v1807, 0.0
        %v2656 = vmax.f32 %v1810, 0.0
        %v2657 = vmax.f32 %v1815, 0.0
        %v2658 = vmax.f32 %v1818, 0.0
        %v2659 = vmax.f32 %v1823, 0.0
        %v2660 = vmax.f32 %v1826, 0.0
        %v2661 = vmax.f32 %v1831, 0.0
        %v2662 = vmax.f32 %v1834, 0.0
        %v2663 = vmax.f32 %v1839, 0.0
        %v2664 = vmax.f32 %v1842, 0.0
        %v2665 = vmax.f32 %v1847, 0.0
        %v2666 = vmax.f32 %v1850, 0.0
        %v2667 = vmax.f32 %v1855, 0.0
        %v2668 = vmax.f32 %v1858, 0.0
        %v2669 = vmax.f32 %v1863, 0.0
        %v2670 = vmax.f32 %v1866, 0.0
        %v2671 = vmax.f32 %v1871, 0.0
        %v2672 = vmax.f32 %v1874, 0.0
        %v2673 = vmax.f32 %v1879, 0.0
        %v2674 = vmax.f32 %v1882, 0.0
        %v2675 = vmax.f32 %v1887, 0.0
        %v2676 = vmax.f32 %v1890, 0.0
        %v2677 = vmax.f32 %v1895, 0.0
        %v2678 = vmax.f32 %v1898, 0.0
        %v2679 = vmax.f32 %v1903, 0.0
        %v2680 = vmax.f32 %v1906, 0.0
        %v2681 = vmax.f32 %v1911, 0.0
        %v2682 = vmax.f32 %v1914, 0.0
        %v2683 = vmax.f32 %v1919, 0.0
        %v2684 = vmax.f32 %v1922, 0.0
        %v2685 = vmax.f32 %v1927, 0.0
        %v2686 = vmax.f32 %v1930, 0.0
        %v2687 = vmax.f32 %v1935, 0.0
        %v2688 = vmax.f32 %v1938, 0.0
        %v2689 = vmax.f32 %v1943, 0.0
        %v2690 = vmax.f32 %v1946, 0.0
        %v2691 = vmax.f32 %v1951, 0.0
        %v2692 = vmax.f32 %v1954, 0.0
        %v2693 = vmax.f32 %v1959, 0.0
        %v2694 = vmax.f32 %v1962, 0.0
        %v2695 = vmax.f32 %v1967, 0.0
        %v2696 = vmax.f32 %v1970, 0.0
        %v2697 = vmax.f32 %v1975, 0.0
        %v2698 = vmax.f32 %v1978, 0.0
        %v2699 = vmax.f32 %v1983, 0.0
        %v2700 = vmax.f32 %v1986, 0.0
        %v2701 = vmax.f32 %v1991, 0.0
        %v2702 = vmax.f32 %v1994, 0.0
        %v2703 = vmax.f32 %v1999, 0.0
        %v2704 = vmax.f32 %v2002, 0.0
        %v2705 = vmax.f32 %v2007, 0.0
        %v2706 = vmax.f32 %v2010, 0.0
        %v2707 = vmax.f32 %v2015, 0.0
        %v2708 = vmax.f32 %v2018, 0.0
        %v2709 = vmax.f32 %v2023, 0.0
        %v2710 = vmax.f32 %v2026, 0.0
        %v2711 = vmax.f32 %v2031, 0.0
        %v2712 = vmax.f32 %v2034, 0.0
        %v2713 = vmax.f32 %v2039, 0.0
        %v2714 = vmax.f32 %v2042, 0.0
        %v2715 = vmax.f32 %v2047, 0.0
        %v2716 = vmax.f32 %v2050, 0.0
        %v2717 = vmax.f32 %v2055, 0.0
        %v2718 = vmax.f32 %v2058, 0.0
        %v2719 = vmax.f32 %v2063, 0.0
        %v2720 = vmax.f32 %v2066, 0.0
        %v2721 = vmax.f32 %v2071, 0.0
        %v2722 = vmax.f32 %v2074, 0.0
        %v2723 = vmax.f32 %v2079, 0.0
        %v2724 = vmax.f32 %v2082, 0.0
        %v2725 = vmax.f32 %v2087, 0.0
        %v2726 = vmax.f32 %v2090, 0.0
        %v2727 = vmax.f32 %v2095, 0.0
        %v2728 = vmax.f32 %v2098, 0.0
        %v2729 = vmax.f32 %v2103, 0.0
        %v2730 = vmax.f32 %v2106, 0.0
        %v2731 = vmax.f32 %v2111, 0.0
        %v2732 = vmax.f32 %v2114, 0.0
        %v2733 = vmax.f32 %v2119, 0.0
        %v2734 = vmax.f32 %v2122, 0.0
        %v2735 = vmax.f32 %v2127, 0.0
        %v2736 = vmax.f32 %v2130, 0.0
        %v2737 = vmax.f32 %v2135, 0.0
        %v2738 = vmax.f32 %v2138, 0.0
        %v2739 = vmax.f32 %v2143, 0.0
        %v2740 = vmax.f32 %v2146, 0.0
        %v2741 = vmax.f32 %v2151, 0.0
        %v2742 = vmax.f32 %v2154, 0.0
        %v2743 = vmax.f32 %v2159, 0.0
        %v2744 = vmax.f32 %v2162, 0.0
        %v2745 = vmax.f32 %v2167, 0.0
        %v2746 = vmax.f32 %v2170, 0.0
        %v2747 = vmax.f32 %v2175, 0.0
        %v2748 = vmax.f32 %v2178, 0.0
        %v2749 = vmax.f32 %v2183, 0.0
        %v2750 = vmax.f32 %v2186, 0.0
        %v2751 = vmax.f32 %v2191, 0.0
        %v2752 = vmax.f32 %v2194, 0.0
        %v2753 = vmax.f32 %v2199, 0.0
        %v2754 = vmax.f32 %v2202, 0.0
        %v2755 = vmax.f32 %v2207, 0.0
        %v2756 = vmax.f32 %v2210, 0.0
        %v2757 = vmax.f32 %v2215, 0.0
        %v2758 = vmax.f32 %v2218, 0.0
        %v2759 = vmax.f32 %v2223, 0.0
        %v2760 = vmax.f32 %v2226, 0.0
        %v2761 = vmax.f32 %v2231, 0.0
        %v2762 = vmax.f32 %v2234, 0.0
        %v2763 = vmax.f32 %v2239, 0.0
        %v2764 = vmax.f32 %v2242, 0.0
        %v2765 = vmax.f32 %v2247, 0.0
        %v2766 = vmax.f32 %v2250, 0.0
        %v2767 = vmax.f32 %v2255, 0.0
        %v2768 = vmax.f32 %v2258, 0.0
        %v2769 = vmax.f32 %v2263, 0.0
        %v2770 = vmax.f32 %v2266, 0.0
        %v2771 = vmax.f32 %v2271, 0.0
        %v2772 = vmax.f32 %v2274, 0.0
        %v2773 = vmax.f32 %v2279, 0.0
        %v2774 = vmax.f32 %v2282, 0.0
        %v2775 = vmax.f32 %v2287, 0.0
        %v2776 = vmax.f32 %v2290, 0.0
        %v2777 = vmax.f32 %v2295, 0.0
        %v2778 = vmax.f32 %v2298, 0.0
        %v2779 = vmax.f32 %v2303, 0.0
        %v2780 = vmax.f32 %v2306, 0.0
        %v2781 = vmax.f32 %v2311, 0.0
        %v2782 = vmax.f32 %v2314, 0.0
        %v2783 = vmax.f32 %v2319, 0.0
        %v2784 = vmax.f32 %v2322, 0.0
        %v2785 = vmax.f32 %v2327, 0.0
        %v2786 = vmax.f32 %v2330, 0.0
        %v2787 = vmax.f32 %v2335, 0.0
        %v2788 = vmax.f32 %v2338, 0.0
        %v2789 = vmax.f32 %v2343, 0.0
        %v2790 = vmax.f32 %v2346, 0.0
        %v2791 = vmax.f32 %v2351, 0.0
        %v2792 = vmax.f32 %v2354, 0.0
        %v2793 = vmax.f32 %v2359, 0.0
        %v2794 = vmax.f32 %v2362, 0.0
        %v2795 = vmax.f32 %v2367, 0.0
        %v2796 = vmax.f32 %v2370, 0.0
        %v2797 = vmax.f32 %v2375, 0.0
        %v2798 = vmax.f32 %v2378, 0.0
        %v2799 = vmax.f32 %v2383, 0.0
        %v2800 = vmax.f32 %v2386, 0.0
        %v2801 = vmax.f32 %v2391, 0.0
        %v2802 = vmax.f32 %v2394, 0.0
        %v2803 = vmax.f32 %v2399, 0.0
        %v2804 = vmax.f32 %v2402, 0.0
        %v2805 = vmax.f32 %v2407, 0.0
        %v2806 = vmax.f32 %v2410, 0.0
        %v2807 = vmax.f32 %v2415, 0.0
        %v2808 = vmax.f32 %v2418, 0.0
        %v2809 = vmax.f32 %v2423, 0.0
        %v2810 = vmax.f32 %v2426, 0.0
        %v2811 = vmax.f32 %v2431, 0.0
        %v2812 = vmax.f32 %v2434, 0.0
        %v2813 = vmax.f32 %v2439, 0.0
        %v2814 = vmax.f32 %v2442, 0.0
        %v2815 = vmax.f32 %v2447, 0.0
        %v2816 = vmax.f32 %v2450, 0.0
        %v2817 = vmax.f32 %v2455, 0.0
        %v2818 = vmax.f32 %v2458, 0.0
        %v2819 = vmax.f32 %v2463, 0.0
        %v2820 = vmax.f32 %v2466, 0.0
        %v2821 = vmax.f32 %v2471, 0.0
        %v2822 = vmax.f32 %v2474, 0.0
        %v2823 = vmax.f32 %v2479, 0.0
        %v2824 = vmax.f32 %v2482, 0.0
        %v2825 = vmax.f32 %v2487, 0.0
        %v2826 = vmax.f32 %v2490, 0.0
        %v2827 = vmax.f32 %v2495, 0.0
        %v2828 = vmax.f32 %v2498, 0.0
        %v2829 = vmax.f32 %v2503, 0.0
        %v2830 = vmax.f32 %v2506, 0.0
        %v2831 = vmax.f32 %v2511, 0.0
        %v2832 = vmax.f32 %v2514, 0.0
        %v2833 = vmax.f32 %v2519, 0.0
        %v2834 = vmax.f32 %v2522, 0.0
        %v2835 = vmax.f32 %v2527, 0.0
        %v2836 = vmax.f32 %v2530, 0.0
        %v2837 = vmax.f32 %v2535, 0.0
        %v2838 = vmax.f32 %v2538, 0.0
        %v2839 = vmax.f32 %v2543, 0.0
        %v2840 = vmax.f32 %v2546, 0.0
        %v2841 = vmax.f32 %v2551, 0.0
        %v2842 = vmax.f32 %v2554, 0.0
        %v2843 = vmax.f32 %v2559, 0.0
        %v2844 = vmax.f32 %v2562, 0.0
        %v2845 = vmax.f32 %v2567, 0.0
        %v2846 = vmax.f32 %v2570, 0.0
        %v2847 = vmax.f32 %v2575, 0.0
        %v2848 = vmax.f32 %v2578, 0.0
        %v2849 = vmax.f32 %v2583, 0.0
        %v2850 = vmax.f32 %v2586, 0.0
        %v2851 = vmax.f32 %v2591, 0.0
        %v2852 = vmax.f32 %v2594, 0.0
        %v2853 = vpack.c.bf16 %v2598, %v2597
        %v2854 = vpack.c.bf16 %v2600, %v2599
        %v2855 = vpack.c.bf16 %v2602, %v2601
        %v2856 = vpack.c.bf16 %v2604, %v2603
        %v2857 = vpack.c.bf16 %v2606, %v2605
        %v2858 = vpack.c.bf16 %v2608, %v2607
        %v2859 = vpack.c.bf16 %v2610, %v2609
        %v2860 = vpack.c.bf16 %v2612, %v2611
        %v2861 = vpack.c.bf16 %v2614, %v2613
        %v2862 = vpack.c.bf16 %v2616, %v2615
        %v2863 = vpack.c.bf16 %v2618, %v2617
        %v2864 = vpack.c.bf16 %v2620, %v2619
        %v2865 = vpack.c.bf16 %v2622, %v2621
        %v2866 = vpack.c.bf16 %v2624, %v2623
        %v2867 = vpack.c.bf16 %v2626, %v2625
        %v2868 = vpack.c.bf16 %v2628, %v2627
        %v2869 = vpack.c.bf16 %v2630, %v2629
        %v2870 = vpack.c.bf16 %v2632, %v2631
        %v2871 = vpack.c.bf16 %v2634, %v2633
        %v2872 = vpack.c.bf16 %v2636, %v2635
        %v2873 = vpack.c.bf16 %v2638, %v2637
        %v2874 = vpack.c.bf16 %v2640, %v2639
        %v2875 = vpack.c.bf16 %v2642, %v2641
        %v2876 = vpack.c.bf16 %v2644, %v2643
        %v2877 = vpack.c.bf16 %v2646, %v2645
        %v2878 = vpack.c.bf16 %v2648, %v2647
        %v2879 = vpack.c.bf16 %v2650, %v2649
        %v2880 = vpack.c.bf16 %v2652, %v2651
        %v2881 = vpack.c.bf16 %v2654, %v2653
        %v2882 = vpack.c.bf16 %v2656, %v2655
        %v2883 = vpack.c.bf16 %v2658, %v2657
        %v2884 = vpack.c.bf16 %v2660, %v2659
        %v2885 = vpack.c.bf16 %v2662, %v2661
        %v2886 = vpack.c.bf16 %v2664, %v2663
        %v2887 = vpack.c.bf16 %v2666, %v2665
        %v2888 = vpack.c.bf16 %v2668, %v2667
        %v2889 = vpack.c.bf16 %v2670, %v2669
        %v2890 = vpack.c.bf16 %v2672, %v2671
        %v2891 = vpack.c.bf16 %v2674, %v2673
        %v2892 = vpack.c.bf16 %v2676, %v2675
        %v2893 = vpack.c.bf16 %v2678, %v2677
        %v2894 = vpack.c.bf16 %v2680, %v2679
        %v2895 = vpack.c.bf16 %v2682, %v2681
        %v2896 = vpack.c.bf16 %v2684, %v2683
        %v2897 = vpack.c.bf16 %v2686, %v2685
        %v2898 = vpack.c.bf16 %v2688, %v2687
        %v2899 = vpack.c.bf16 %v2690, %v2689
        %v2900 = vpack.c.bf16 %v2692, %v2691
        %v2901 = vpack.c.bf16 %v2694, %v2693
        %v2902 = vpack.c.bf16 %v2696, %v2695
        %v2903 = vpack.c.bf16 %v2698, %v2697
        %v2904 = vpack.c.bf16 %v2700, %v2699
        %v2905 = vpack.c.bf16 %v2702, %v2701
        %v2906 = vpack.c.bf16 %v2704, %v2703
        %v2907 = vpack.c.bf16 %v2706, %v2705
        %v2908 = vpack.c.bf16 %v2708, %v2707
        %v2909 = vpack.c.bf16 %v2710, %v2709
        %v2910 = vpack.c.bf16 %v2712, %v2711
        %v2911 = vpack.c.bf16 %v2714, %v2713
        %v2912 = vpack.c.bf16 %v2716, %v2715
        %v2913 = vpack.c.bf16 %v2718, %v2717
        %v2914 = vpack.c.bf16 %v2720, %v2719
        %v2915 = vpack.c.bf16 %v2722, %v2721
        %v2916 = vpack.c.bf16 %v2724, %v2723
        %v2917 = vpack.c.bf16 %v2726, %v2725
        %v2918 = vpack.c.bf16 %v2728, %v2727
        %v2919 = vpack.c.bf16 %v2730, %v2729
        %v2920 = vpack.c.bf16 %v2732, %v2731
        %v2921 = vpack.c.bf16 %v2734, %v2733
        %v2922 = vpack.c.bf16 %v2736, %v2735
        %v2923 = vpack.c.bf16 %v2738, %v2737
        %v2924 = vpack.c.bf16 %v2740, %v2739
        %v2925 = vpack.c.bf16 %v2742, %v2741
        %v2926 = vpack.c.bf16 %v2744, %v2743
        %v2927 = vpack.c.bf16 %v2746, %v2745
        %v2928 = vpack.c.bf16 %v2748, %v2747
        %v2929 = vpack.c.bf16 %v2750, %v2749
        %v2930 = vpack.c.bf16 %v2752, %v2751
        %v2931 = vpack.c.bf16 %v2754, %v2753
        %v2932 = vpack.c.bf16 %v2756, %v2755
        %v2933 = vpack.c.bf16 %v2758, %v2757
        %v2934 = vpack.c.bf16 %v2760, %v2759
        %v2935 = vpack.c.bf16 %v2762, %v2761
        %v2936 = vpack.c.bf16 %v2764, %v2763
        %v2937 = vpack.c.bf16 %v2766, %v2765
        %v2938 = vpack.c.bf16 %v2768, %v2767
        %v2939 = vpack.c.bf16 %v2770, %v2769
        %v2940 = vpack.c.bf16 %v2772, %v2771
        %v2941 = vpack.c.bf16 %v2774, %v2773
        %v2942 = vpack.c.bf16 %v2776, %v2775
        %v2943 = vpack.c.bf16 %v2778, %v2777
        %v2944 = vpack.c.bf16 %v2780, %v2779
        %v2945 = vpack.c.bf16 %v2782, %v2781
        %v2946 = vpack.c.bf16 %v2784, %v2783
        %v2947 = vpack.c.bf16 %v2786, %v2785
        %v2948 = vpack.c.bf16 %v2788, %v2787
        %v2949 = vpack.c.bf16 %v2790, %v2789
        %v2950 = vpack.c.bf16 %v2792, %v2791
        %v2951 = vpack.c.bf16 %v2794, %v2793
        %v2952 = vpack.c.bf16 %v2796, %v2795
        %v2953 = vpack.c.bf16 %v2798, %v2797
        %v2954 = vpack.c.bf16 %v2800, %v2799
        %v2955 = vpack.c.bf16 %v2802, %v2801
        %v2956 = vpack.c.bf16 %v2804, %v2803
        %v2957 = vpack.c.bf16 %v2806, %v2805
        %v2958 = vpack.c.bf16 %v2808, %v2807
        %v2959 = vpack.c.bf16 %v2810, %v2809
        %v2960 = vpack.c.bf16 %v2812, %v2811
        %v2961 = vpack.c.bf16 %v2814, %v2813
        %v2962 = vpack.c.bf16 %v2816, %v2815
        %v2963 = vpack.c.bf16 %v2818, %v2817
        %v2964 = vpack.c.bf16 %v2820, %v2819
        %v2965 = vpack.c.bf16 %v2822, %v2821
        %v2966 = vpack.c.bf16 %v2824, %v2823
        %v2967 = vpack.c.bf16 %v2826, %v2825
        %v2968 = vpack.c.bf16 %v2828, %v2827
        %v2969 = vpack.c.bf16 %v2830, %v2829
        %v2970 = vpack.c.bf16 %v2832, %v2831
        %v2971 = vpack.c.bf16 %v2834, %v2833
        %v2972 = vpack.c.bf16 %v2836, %v2835
        %v2973 = vpack.c.bf16 %v2838, %v2837
        %v2974 = vpack.c.bf16 %v2840, %v2839
        %v2975 = vpack.c.bf16 %v2842, %v2841
        %v2976 = vpack.c.bf16 %v2844, %v2843
        %v2977 = vpack.c.bf16 %v2846, %v2845
        %v2978 = vpack.c.bf16 %v2848, %v2847
        %v2979 = vpack.c.bf16 %v2850, %v2849
        %v2980 = vpack.c.bf16 %v2852, %v2851
        %v2982 = vlaneseq
        %v2983 = vshrl.u32 %v2982, 7
        %v2984 = vsub.s32 0, %v2983
        %v2985 = vrot.slane %v254, %v2984
        %v2991 = vunpack.c.l.b16 %v250
        %v2992 = vunpack.c.l.b16 %v251
        %v2993 = vunpack.c.l.b16 %v252
        %v2994 = vunpack.c.l.b16 %v253
        %v2995 = vpack.c.b16 %v2992, %v2991
        %v2996 = vpack.c.b16 %v2994, %v2993
        %vm2999 = vcmask 261120
        %v3001 = vsel %vm2999, %v2853, 0
        %v3004 = vsel %vm2999, %v2854, 0
        %v3007 = vsel %vm2999, %v2855, 0
        %v3010 = vsel %vm2999, %v2856, 0
        %v3013 = vsel %vm2999, %v2857, 0
        %v3016 = vsel %vm2999, %v2858, 0
        %v3019 = vsel %vm2999, %v2859, 0
        %v3022 = vsel %vm2999, %v2860, 0
        %v3025 = vsel %vm2999, %v2861, 0
        %v3028 = vsel %vm2999, %v2862, 0
        %v3031 = vsel %vm2999, %v2863, 0
        %v3034 = vsel %vm2999, %v2864, 0
        %v3037 = vsel %vm2999, %v2865, 0
        %v3040 = vsel %vm2999, %v2866, 0
        %v3043 = vsel %vm2999, %v2867, 0
        %v3046 = vsel %vm2999, %v2868, 0
        %v3049 = vsel %vm2999, %v2869, 0
        %v3052 = vsel %vm2999, %v2870, 0
        %v3055 = vsel %vm2999, %v2871, 0
        %v3058 = vsel %vm2999, %v2872, 0
        %v3061 = vsel %vm2999, %v2873, 0
        %v3064 = vsel %vm2999, %v2874, 0
        %v3067 = vsel %vm2999, %v2875, 0
        %v3070 = vsel %vm2999, %v2876, 0
        %v3073 = vsel %vm2999, %v2877, 0
        %v3076 = vsel %vm2999, %v2878, 0
        %v3079 = vsel %vm2999, %v2879, 0
        %v3082 = vsel %vm2999, %v2880, 0
        %v3085 = vsel %vm2999, %v2881, 0
        %v3088 = vsel %vm2999, %v2882, 0
        %v3091 = vsel %vm2999, %v2883, 0
        %v3094 = vsel %vm2999, %v2884, 0
        %v3097 = vsel %vm2999, %v2885, 0
        %v3100 = vsel %vm2999, %v2886, 0
        %v3103 = vsel %vm2999, %v2887, 0
        %v3106 = vsel %vm2999, %v2888, 0
        %v3109 = vsel %vm2999, %v2889, 0
        %v3112 = vsel %vm2999, %v2890, 0
        %v3115 = vsel %vm2999, %v2891, 0
        %v3118 = vsel %vm2999, %v2892, 0
        %v3121 = vsel %vm2999, %v2893, 0
        %v3124 = vsel %vm2999, %v2894, 0
        %v3127 = vsel %vm2999, %v2895, 0
        %v3130 = vsel %vm2999, %v2896, 0
        %v3133 = vsel %vm2999, %v2897, 0
        %v3136 = vsel %vm2999, %v2898, 0
        %v3139 = vsel %vm2999, %v2899, 0
        %v3142 = vsel %vm2999, %v2900, 0
        %v3145 = vsel %vm2999, %v2901, 0
        %v3148 = vsel %vm2999, %v2902, 0
        %v3151 = vsel %vm2999, %v2903, 0
        %v3154 = vsel %vm2999, %v2904, 0
        %v3157 = vsel %vm2999, %v2905, 0
        %v3160 = vsel %vm2999, %v2906, 0
        %v3163 = vsel %vm2999, %v2907, 0
        %v3166 = vsel %vm2999, %v2908, 0
        %v3169 = vsel %vm2999, %v2909, 0
        %v3172 = vsel %vm2999, %v2910, 0
        %v3175 = vsel %vm2999, %v2911, 0
        %v3178 = vsel %vm2999, %v2912, 0
        %v3181 = vsel %vm2999, %v2913, 0
        %v3184 = vsel %vm2999, %v2914, 0
        %v3187 = vsel %vm2999, %v2915, 0
        %v3190 = vsel %vm2999, %v2916, 0
        %v3193 = vsel %vm2999, %v2917, 0
        %v3196 = vsel %vm2999, %v2918, 0
        %v3199 = vsel %vm2999, %v2919, 0
        %v3202 = vsel %vm2999, %v2920, 0
        %v3205 = vsel %vm2999, %v2921, 0
        %v3208 = vsel %vm2999, %v2922, 0
        %v3211 = vsel %vm2999, %v2923, 0
        %v3214 = vsel %vm2999, %v2924, 0
        %v3217 = vsel %vm2999, %v2925, 0
        %v3220 = vsel %vm2999, %v2926, 0
        %v3223 = vsel %vm2999, %v2927, 0
        %v3226 = vsel %vm2999, %v2928, 0
        %v3229 = vsel %vm2999, %v2929, 0
        %v3232 = vsel %vm2999, %v2930, 0
        %v3235 = vsel %vm2999, %v2931, 0
        %v3238 = vsel %vm2999, %v2932, 0
        %v3241 = vsel %vm2999, %v2933, 0
        %v3244 = vsel %vm2999, %v2934, 0
        %v3247 = vsel %vm2999, %v2935, 0
        %v3250 = vsel %vm2999, %v2936, 0
        %v3253 = vsel %vm2999, %v2937, 0
        %v3256 = vsel %vm2999, %v2938, 0
        %v3259 = vsel %vm2999, %v2939, 0
        %v3262 = vsel %vm2999, %v2940, 0
        %v3265 = vsel %vm2999, %v2941, 0
        %v3268 = vsel %vm2999, %v2942, 0
        %v3271 = vsel %vm2999, %v2943, 0
        %v3274 = vsel %vm2999, %v2944, 0
        %v3277 = vsel %vm2999, %v2945, 0
        %v3280 = vsel %vm2999, %v2946, 0
        %v3283 = vsel %vm2999, %v2947, 0
        %v3286 = vsel %vm2999, %v2948, 0
        %v3289 = vsel %vm2999, %v2949, 0
        %v3292 = vsel %vm2999, %v2950, 0
        %v3295 = vsel %vm2999, %v2951, 0
        %v3298 = vsel %vm2999, %v2952, 0
        %v3301 = vsel %vm2999, %v2953, 0
        %v3304 = vsel %vm2999, %v2954, 0
        %v3307 = vsel %vm2999, %v2955, 0
        %v3310 = vsel %vm2999, %v2956, 0
        %v3313 = vsel %vm2999, %v2957, 0
        %v3316 = vsel %vm2999, %v2958, 0
        %v3319 = vsel %vm2999, %v2959, 0
        %v3322 = vsel %vm2999, %v2960, 0
        %v3325 = vsel %vm2999, %v2961, 0
        %v3328 = vsel %vm2999, %v2962, 0
        %v3331 = vsel %vm2999, %v2963, 0
        %v3334 = vsel %vm2999, %v2964, 0
        %v3337 = vsel %vm2999, %v2965, 0
        %v3340 = vsel %vm2999, %v2966, 0
        %v3343 = vsel %vm2999, %v2967, 0
        %v3346 = vsel %vm2999, %v2968, 0
        %v3349 = vsel %vm2999, %v2969, 0
        %v3352 = vsel %vm2999, %v2970, 0
        %v3355 = vsel %vm2999, %v2971, 0
        %v3358 = vsel %vm2999, %v2972, 0
        %v3361 = vsel %vm2999, %v2973, 0
        %v3364 = vsel %vm2999, %v2974, 0
        %v3367 = vsel %vm2999, %v2975, 0
        %v3370 = vsel %vm2999, %v2976, 0
        %v3373 = vsel %vm2999, %v2977, 0
        %v3376 = vsel %vm2999, %v2978, 0
        %v3379 = vsel %vm2999, %v2979, 0
        %v3382 = vsel %vm2999, %v2980, 0
        %3384 = vmatprep.subr.bf16.mxu0 0
        %3385 = vmatpush1.bf16.msra.mxu0 0
        %3386 = vmatprep.subr.bf16.mxu0 0
        %3387 = vmatpush1.bf16.msra.mxu0 0
        %3388 = vmatprep.subr.bf16.mxu0 0
        %3389 = vmatpush1.bf16.msra.mxu0 0
        %3390 = vmatprep.subr.bf16.mxu0 0
        %3391 = vmatpush1.bf16.msra.mxu0 0
        %3392 = vmatprep.subr.bf16.mxu0 0
        %3393 = vmatpush1.bf16.msra.mxu0 0
        %3394 = vmatprep.subr.bf16.mxu0 0
        %3395 = vmatpush1.bf16.msra.mxu0 0
        %3396 = vmatprep.subr.bf16.mxu0 0
        %3397 = vmatpush1.bf16.msra.mxu0 %v2996
        %3398 = vmatprep.subr.bf16.mxu0 0
        %3399 = vmatpush1.bf16.msra.mxu0 %v2995
        %3400 = vmatprep.subr.bf16.mxu0 0
        %3401 = vmatpush2.bf16.msra.mxu0 0
        %3402 = vmatprep.subr.bf16.mxu0 0
        %3403 = vmatpush2.bf16.msra.mxu0 0
        %3404 = vmatprep.subr.bf16.mxu0 0
        %3405 = vmatpush2.bf16.msra.mxu0 0
        %3406 = vmatprep.subr.bf16.mxu0 0
        %3407 = vmatpush2.bf16.msra.mxu0 0
        %3408 = vmatprep.subr.bf16.mxu0 0
        %3409 = vmatpush2.bf16.msra.mxu0 0
        %3410 = vmatprep.subr.bf16.mxu0 0
        %3411 = vmatpush2.bf16.msra.mxu0 0
        %3412 = vmatprep.subr.bf16.mxu0 0
        %3413 = vmatpush2.bf16.msra.mxu0 0
        %3414 = vmatprep.subr.bf16.mxu0 0
        %3415 = vmatpush2.bf16.msra.mxu0 0
        %3416 = vmatprep.mubr.bf16.mxu0 0
        %3417 = vmatmul.mubr.bf16.gmra.mxu0 %v3001
        %v3418 = vpop.f32.mrf.mxu0
        %v3419 = vadd.f32 %v2985, %v3418
        %v3420 = vpop.f32.mrf.mxu0
        %v3421 = vpop.f32.mrf.mxu0
        %v3422 = vadd.f32 %v2985, %v3421
        %v3423 = vpop.f32.mrf.mxu0
        %3424 = vmatprep.mubr.bf16.mxu0 0
        %3425 = vmatmul.mubr.bf16.gmra.mxu0 %v3004
        %v3426 = vpop.f32.mrf.mxu0
        %v3427 = vadd.f32 %v2985, %v3426
        %v3428 = vpop.f32.mrf.mxu0
        %v3429 = vpop.f32.mrf.mxu0
        %v3430 = vadd.f32 %v2985, %v3429
        %v3431 = vpop.f32.mrf.mxu0
        %3432 = vmatprep.mubr.bf16.mxu0 0
        %3433 = vmatmul.mubr.bf16.gmra.mxu0 %v3007
        %v3434 = vpop.f32.mrf.mxu0
        %v3435 = vadd.f32 %v2985, %v3434
        %v3436 = vpop.f32.mrf.mxu0
        %v3437 = vpop.f32.mrf.mxu0
        %v3438 = vadd.f32 %v2985, %v3437
        %v3439 = vpop.f32.mrf.mxu0
        %3440 = vmatprep.mubr.bf16.mxu0 0
        %3441 = vmatmul.mubr.bf16.gmra.mxu0 %v3010
        %v3442 = vpop.f32.mrf.mxu0
        %v3443 = vadd.f32 %v2985, %v3442
        %v3444 = vpop.f32.mrf.mxu0
        %v3445 = vpop.f32.mrf.mxu0
        %v3446 = vadd.f32 %v2985, %v3445
        %v3447 = vpop.f32.mrf.mxu0
        %3448 = vmatprep.mubr.bf16.mxu0 0
        %3449 = vmatmul.mubr.bf16.gmra.mxu0 %v3013
        %v3450 = vpop.f32.mrf.mxu0
        %v3451 = vadd.f32 %v2985, %v3450
        %v3452 = vpop.f32.mrf.mxu0
        %v3453 = vpop.f32.mrf.mxu0
        %v3454 = vadd.f32 %v2985, %v3453
        %v3455 = vpop.f32.mrf.mxu0
        %3456 = vmatprep.mubr.bf16.mxu0 0
        %3457 = vmatmul.mubr.bf16.gmra.mxu0 %v3016
        %v3458 = vpop.f32.mrf.mxu0
        %v3459 = vadd.f32 %v2985, %v3458
        %v3460 = vpop.f32.mrf.mxu0
        %v3461 = vpop.f32.mrf.mxu0
        %v3462 = vadd.f32 %v2985, %v3461
        %v3463 = vpop.f32.mrf.mxu0
        %3464 = vmatprep.mubr.bf16.mxu0 0
        %3465 = vmatmul.mubr.bf16.gmra.mxu0 %v3019
        %v3466 = vpop.f32.mrf.mxu0
        %v3467 = vadd.f32 %v2985, %v3466
        %v3468 = vpop.f32.mrf.mxu0
        %v3469 = vpop.f32.mrf.mxu0
        %v3470 = vadd.f32 %v2985, %v3469
        %v3471 = vpop.f32.mrf.mxu0
        %3472 = vmatprep.mubr.bf16.mxu0 0
        %3473 = vmatmul.mubr.bf16.gmra.mxu0 %v3022
        %v3474 = vpop.f32.mrf.mxu0
        %v3475 = vadd.f32 %v2985, %v3474
        %v3476 = vpop.f32.mrf.mxu0
        %v3477 = vpop.f32.mrf.mxu0
        %v3478 = vadd.f32 %v2985, %v3477
        %v3479 = vpop.f32.mrf.mxu0
        %3480 = vmatprep.mubr.bf16.mxu0 0
        %3481 = vmatmul.mubr.bf16.gmra.mxu0 %v3025
        %v3482 = vpop.f32.mrf.mxu0
        %v3483 = vadd.f32 %v2985, %v3482
        %v3484 = vpop.f32.mrf.mxu0
        %v3485 = vpop.f32.mrf.mxu0
        %v3486 = vadd.f32 %v2985, %v3485
        %v3487 = vpop.f32.mrf.mxu0
        %3488 = vmatprep.mubr.bf16.mxu0 0
        %3489 = vmatmul.mubr.bf16.gmra.mxu0 %v3028
        %v3490 = vpop.f32.mrf.mxu0
        %v3491 = vadd.f32 %v2985, %v3490
        %v3492 = vpop.f32.mrf.mxu0
        %v3493 = vpop.f32.mrf.mxu0
        %v3494 = vadd.f32 %v2985, %v3493
        %v3495 = vpop.f32.mrf.mxu0
        %3496 = vmatprep.mubr.bf16.mxu0 0
        %3497 = vmatmul.mubr.bf16.gmra.mxu0 %v3031
        %v3498 = vpop.f32.mrf.mxu0
        %v3499 = vadd.f32 %v2985, %v3498
        %v3500 = vpop.f32.mrf.mxu0
        %v3501 = vpop.f32.mrf.mxu0
        %v3502 = vadd.f32 %v2985, %v3501
        %v3503 = vpop.f32.mrf.mxu0
        %3504 = vmatprep.mubr.bf16.mxu0 0
        %3505 = vmatmul.mubr.bf16.gmra.mxu0 %v3034
        %v3506 = vpop.f32.mrf.mxu0
        %v3507 = vadd.f32 %v2985, %v3506
        %v3508 = vpop.f32.mrf.mxu0
        %v3509 = vpop.f32.mrf.mxu0
        %v3510 = vadd.f32 %v2985, %v3509
        %v3511 = vpop.f32.mrf.mxu0
        %3512 = vmatprep.mubr.bf16.mxu0 0
        %3513 = vmatmul.mubr.bf16.gmra.mxu0 %v3037
        %v3514 = vpop.f32.mrf.mxu0
        %v3515 = vadd.f32 %v2985, %v3514
        %v3516 = vpop.f32.mrf.mxu0
        %v3517 = vpop.f32.mrf.mxu0
        %v3518 = vadd.f32 %v2985, %v3517
        %v3519 = vpop.f32.mrf.mxu0
        %3520 = vmatprep.mubr.bf16.mxu0 0
        %3521 = vmatmul.mubr.bf16.gmra.mxu0 %v3040
        %v3522 = vpop.f32.mrf.mxu0
        %v3523 = vadd.f32 %v2985, %v3522
        %v3524 = vpop.f32.mrf.mxu0
        %v3525 = vpop.f32.mrf.mxu0
        %v3526 = vadd.f32 %v2985, %v3525
        %v3527 = vpop.f32.mrf.mxu0
        %3528 = vmatprep.mubr.bf16.mxu0 0
        %3529 = vmatmul.mubr.bf16.gmra.mxu0 %v3043
        %v3530 = vpop.f32.mrf.mxu0
        %v3531 = vadd.f32 %v2985, %v3530
        %v3532 = vpop.f32.mrf.mxu0
        %v3533 = vpop.f32.mrf.mxu0
        %v3534 = vadd.f32 %v2985, %v3533
        %v3535 = vpop.f32.mrf.mxu0
        %3536 = vmatprep.mubr.bf16.mxu0 0
        %3537 = vmatmul.mubr.bf16.gmra.mxu0 %v3046
        %v3538 = vpop.f32.mrf.mxu0
        %v3539 = vadd.f32 %v2985, %v3538
        %v3540 = vpop.f32.mrf.mxu0
        %v3541 = vpop.f32.mrf.mxu0
        %v3542 = vadd.f32 %v2985, %v3541
        %v3543 = vpop.f32.mrf.mxu0
        %3544 = vmatprep.mubr.bf16.mxu0 0
        %3545 = vmatmul.mubr.bf16.gmra.mxu0 %v3049
        %v3546 = vpop.f32.mrf.mxu0
        %v3547 = vadd.f32 %v2985, %v3546
        %v3548 = vpop.f32.mrf.mxu0
        %v3549 = vpop.f32.mrf.mxu0
        %v3550 = vadd.f32 %v2985, %v3549
        %v3551 = vpop.f32.mrf.mxu0
        %3552 = vmatprep.mubr.bf16.mxu0 0
        %3553 = vmatmul.mubr.bf16.gmra.mxu0 %v3052
        %v3554 = vpop.f32.mrf.mxu0
        %v3555 = vadd.f32 %v2985, %v3554
        %v3556 = vpop.f32.mrf.mxu0
        %v3557 = vpop.f32.mrf.mxu0
        %v3558 = vadd.f32 %v2985, %v3557
        %v3559 = vpop.f32.mrf.mxu0
        %3560 = vmatprep.mubr.bf16.mxu0 0
        %3561 = vmatmul.mubr.bf16.gmra.mxu0 %v3055
        %v3562 = vpop.f32.mrf.mxu0
        %v3563 = vadd.f32 %v2985, %v3562
        %v3564 = vpop.f32.mrf.mxu0
        %v3565 = vpop.f32.mrf.mxu0
        %v3566 = vadd.f32 %v2985, %v3565
        %v3567 = vpop.f32.mrf.mxu0
        %3568 = vmatprep.mubr.bf16.mxu0 0
        %3569 = vmatmul.mubr.bf16.gmra.mxu0 %v3058
        %v3570 = vpop.f32.mrf.mxu0
        %v3571 = vadd.f32 %v2985, %v3570
        %v3572 = vpop.f32.mrf.mxu0
        %v3573 = vpop.f32.mrf.mxu0
        %v3574 = vadd.f32 %v2985, %v3573
        %v3575 = vpop.f32.mrf.mxu0
        %3576 = vmatprep.mubr.bf16.mxu0 0
        %3577 = vmatmul.mubr.bf16.gmra.mxu0 %v3061
        %v3578 = vpop.f32.mrf.mxu0
        %v3579 = vadd.f32 %v2985, %v3578
        %v3580 = vpop.f32.mrf.mxu0
        %v3581 = vpop.f32.mrf.mxu0
        %v3582 = vadd.f32 %v2985, %v3581
        %v3583 = vpop.f32.mrf.mxu0
        %3584 = vmatprep.mubr.bf16.mxu0 0
        %3585 = vmatmul.mubr.bf16.gmra.mxu0 %v3064
        %v3586 = vpop.f32.mrf.mxu0
        %v3587 = vadd.f32 %v2985, %v3586
        %v3588 = vpop.f32.mrf.mxu0
        %v3589 = vpop.f32.mrf.mxu0
        %v3590 = vadd.f32 %v2985, %v3589
        %v3591 = vpop.f32.mrf.mxu0
        %3592 = vmatprep.mubr.bf16.mxu0 0
        %3593 = vmatmul.mubr.bf16.gmra.mxu0 %v3067
        %v3594 = vpop.f32.mrf.mxu0
        %v3595 = vadd.f32 %v2985, %v3594
        %v3596 = vpop.f32.mrf.mxu0
        %v3597 = vpop.f32.mrf.mxu0
        %v3598 = vadd.f32 %v2985, %v3597
        %v3599 = vpop.f32.mrf.mxu0
        %3600 = vmatprep.mubr.bf16.mxu0 0
        %3601 = vmatmul.mubr.bf16.gmra.mxu0 %v3070
        %v3602 = vpop.f32.mrf.mxu0
        %v3603 = vadd.f32 %v2985, %v3602
        %v3604 = vpop.f32.mrf.mxu0
        %v3605 = vpop.f32.mrf.mxu0
        %v3606 = vadd.f32 %v2985, %v3605
        %v3607 = vpop.f32.mrf.mxu0
        %3608 = vmatprep.mubr.bf16.mxu0 0
        %3609 = vmatmul.mubr.bf16.gmra.mxu0 %v3073
        %v3610 = vpop.f32.mrf.mxu0
        %v3611 = vadd.f32 %v2985, %v3610
        %v3612 = vpop.f32.mrf.mxu0
        %v3613 = vpop.f32.mrf.mxu0
        %v3614 = vadd.f32 %v2985, %v3613
        %v3615 = vpop.f32.mrf.mxu0
        %3616 = vmatprep.mubr.bf16.mxu0 0
        %3617 = vmatmul.mubr.bf16.gmra.mxu0 %v3076
        %v3618 = vpop.f32.mrf.mxu0
        %v3619 = vadd.f32 %v2985, %v3618
        %v3620 = vpop.f32.mrf.mxu0
        %v3621 = vpop.f32.mrf.mxu0
        %v3622 = vadd.f32 %v2985, %v3621
        %v3623 = vpop.f32.mrf.mxu0
        %3624 = vmatprep.mubr.bf16.mxu0 0
        %3625 = vmatmul.mubr.bf16.gmra.mxu0 %v3079
        %v3626 = vpop.f32.mrf.mxu0
        %v3627 = vadd.f32 %v2985, %v3626
        %v3628 = vpop.f32.mrf.mxu0
        %v3629 = vpop.f32.mrf.mxu0
        %v3630 = vadd.f32 %v2985, %v3629
        %v3631 = vpop.f32.mrf.mxu0
        %3632 = vmatprep.mubr.bf16.mxu0 0
        %3633 = vmatmul.mubr.bf16.gmra.mxu0 %v3082
        %v3634 = vpop.f32.mrf.mxu0
        %v3635 = vadd.f32 %v2985, %v3634
        %v3636 = vpop.f32.mrf.mxu0
        %v3637 = vpop.f32.mrf.mxu0
        %v3638 = vadd.f32 %v2985, %v3637
        %v3639 = vpop.f32.mrf.mxu0
        %3640 = vmatprep.mubr.bf16.mxu0 0
        %3641 = vmatmul.mubr.bf16.gmra.mxu0 %v3085
        %v3642 = vpop.f32.mrf.mxu0
        %v3643 = vadd.f32 %v2985, %v3642
        %v3644 = vpop.f32.mrf.mxu0
        %v3645 = vpop.f32.mrf.mxu0
        %v3646 = vadd.f32 %v2985, %v3645
        %v3647 = vpop.f32.mrf.mxu0
        %3648 = vmatprep.mubr.bf16.mxu0 0
        %3649 = vmatmul.mubr.bf16.gmra.mxu0 %v3088
        %v3650 = vpop.f32.mrf.mxu0
        %v3651 = vadd.f32 %v2985, %v3650
        %v3652 = vpop.f32.mrf.mxu0
        %v3653 = vpop.f32.mrf.mxu0
        %v3654 = vadd.f32 %v2985, %v3653
        %v3655 = vpop.f32.mrf.mxu0
        %3656 = vmatprep.mubr.bf16.mxu0 0
        %3657 = vmatmul.mubr.bf16.gmra.mxu0 %v3091
        %v3658 = vpop.f32.mrf.mxu0
        %v3659 = vadd.f32 %v2985, %v3658
        %v3660 = vpop.f32.mrf.mxu0
        %v3661 = vpop.f32.mrf.mxu0
        %v3662 = vadd.f32 %v2985, %v3661
        %v3663 = vpop.f32.mrf.mxu0
        %3664 = vmatprep.mubr.bf16.mxu0 0
        %3665 = vmatmul.mubr.bf16.gmra.mxu0 %v3094
        %v3666 = vpop.f32.mrf.mxu0
        %v3667 = vadd.f32 %v2985, %v3666
        %v3668 = vpop.f32.mrf.mxu0
        %v3669 = vpop.f32.mrf.mxu0
        %v3670 = vadd.f32 %v2985, %v3669
        %v3671 = vpop.f32.mrf.mxu0
        %3672 = vmatprep.mubr.bf16.mxu0 0
        %3673 = vmatmul.mubr.bf16.gmra.mxu0 %v3097
        %v3674 = vpop.f32.mrf.mxu0
        %v3675 = vadd.f32 %v2985, %v3674
        %v3676 = vpop.f32.mrf.mxu0
        %v3677 = vpop.f32.mrf.mxu0
        %v3678 = vadd.f32 %v2985, %v3677
        %v3679 = vpop.f32.mrf.mxu0
        %3680 = vmatprep.mubr.bf16.mxu0 0
        %3681 = vmatmul.mubr.bf16.gmra.mxu0 %v3100
        %v3682 = vpop.f32.mrf.mxu0
        %v3683 = vadd.f32 %v2985, %v3682
        %v3684 = vpop.f32.mrf.mxu0
        %v3685 = vpop.f32.mrf.mxu0
        %v3686 = vadd.f32 %v2985, %v3685
        %v3687 = vpop.f32.mrf.mxu0
        %3688 = vmatprep.mubr.bf16.mxu0 0
        %3689 = vmatmul.mubr.bf16.gmra.mxu0 %v3103
        %v3690 = vpop.f32.mrf.mxu0
        %v3691 = vadd.f32 %v2985, %v3690
        %v3692 = vpop.f32.mrf.mxu0
        %v3693 = vpop.f32.mrf.mxu0
        %v3694 = vadd.f32 %v2985, %v3693
        %v3695 = vpop.f32.mrf.mxu0
        %3696 = vmatprep.mubr.bf16.mxu0 0
        %3697 = vmatmul.mubr.bf16.gmra.mxu0 %v3106
        %v3698 = vpop.f32.mrf.mxu0
        %v3699 = vadd.f32 %v2985, %v3698
        %v3700 = vpop.f32.mrf.mxu0
        %v3701 = vpop.f32.mrf.mxu0
        %v3702 = vadd.f32 %v2985, %v3701
        %v3703 = vpop.f32.mrf.mxu0
        %3704 = vmatprep.mubr.bf16.mxu0 0
        %3705 = vmatmul.mubr.bf16.gmra.mxu0 %v3109
        %v3706 = vpop.f32.mrf.mxu0
        %v3707 = vadd.f32 %v2985, %v3706
        %v3708 = vpop.f32.mrf.mxu0
        %v3709 = vpop.f32.mrf.mxu0
        %v3710 = vadd.f32 %v2985, %v3709
        %v3711 = vpop.f32.mrf.mxu0
        %3712 = vmatprep.mubr.bf16.mxu0 0
        %3713 = vmatmul.mubr.bf16.gmra.mxu0 %v3112
        %v3714 = vpop.f32.mrf.mxu0
        %v3715 = vadd.f32 %v2985, %v3714
        %v3716 = vpop.f32.mrf.mxu0
        %v3717 = vpop.f32.mrf.mxu0
        %v3718 = vadd.f32 %v2985, %v3717
        %v3719 = vpop.f32.mrf.mxu0
        %3720 = vmatprep.mubr.bf16.mxu0 0
        %3721 = vmatmul.mubr.bf16.gmra.mxu0 %v3115
        %v3722 = vpop.f32.mrf.mxu0
        %v3723 = vadd.f32 %v2985, %v3722
        %v3724 = vpop.f32.mrf.mxu0
        %v3725 = vpop.f32.mrf.mxu0
        %v3726 = vadd.f32 %v2985, %v3725
        %v3727 = vpop.f32.mrf.mxu0
        %3728 = vmatprep.mubr.bf16.mxu0 0
        %3729 = vmatmul.mubr.bf16.gmra.mxu0 %v3118
        %v3730 = vpop.f32.mrf.mxu0
        %v3731 = vadd.f32 %v2985, %v3730
        %v3732 = vpop.f32.mrf.mxu0
        %v3733 = vpop.f32.mrf.mxu0
        %v3734 = vadd.f32 %v2985, %v3733
        %v3735 = vpop.f32.mrf.mxu0
        %3736 = vmatprep.mubr.bf16.mxu0 0
        %3737 = vmatmul.mubr.bf16.gmra.mxu0 %v3121
        %v3738 = vpop.f32.mrf.mxu0
        %v3739 = vadd.f32 %v2985, %v3738
        %v3740 = vpop.f32.mrf.mxu0
        %v3741 = vpop.f32.mrf.mxu0
        %v3742 = vadd.f32 %v2985, %v3741
        %v3743 = vpop.f32.mrf.mxu0
        %3744 = vmatprep.mubr.bf16.mxu0 0
        %3745 = vmatmul.mubr.bf16.gmra.mxu0 %v3124
        %v3746 = vpop.f32.mrf.mxu0
        %v3747 = vadd.f32 %v2985, %v3746
        %v3748 = vpop.f32.mrf.mxu0
        %v3749 = vpop.f32.mrf.mxu0
        %v3750 = vadd.f32 %v2985, %v3749
        %v3751 = vpop.f32.mrf.mxu0
        %3752 = vmatprep.mubr.bf16.mxu0 0
        %3753 = vmatmul.mubr.bf16.gmra.mxu0 %v3127
        %v3754 = vpop.f32.mrf.mxu0
        %v3755 = vadd.f32 %v2985, %v3754
        %v3756 = vpop.f32.mrf.mxu0
        %v3757 = vpop.f32.mrf.mxu0
        %v3758 = vadd.f32 %v2985, %v3757
        %v3759 = vpop.f32.mrf.mxu0
        %3760 = vmatprep.mubr.bf16.mxu0 0
        %3761 = vmatmul.mubr.bf16.gmra.mxu0 %v3130
        %v3762 = vpop.f32.mrf.mxu0
        %v3763 = vadd.f32 %v2985, %v3762
        %v3764 = vpop.f32.mrf.mxu0
        %v3765 = vpop.f32.mrf.mxu0
        %v3766 = vadd.f32 %v2985, %v3765
        %v3767 = vpop.f32.mrf.mxu0
        %3768 = vmatprep.mubr.bf16.mxu0 0
        %3769 = vmatmul.mubr.bf16.gmra.mxu0 %v3133
        %v3770 = vpop.f32.mrf.mxu0
        %v3771 = vadd.f32 %v2985, %v3770
        %v3772 = vpop.f32.mrf.mxu0
        %v3773 = vpop.f32.mrf.mxu0
        %v3774 = vadd.f32 %v2985, %v3773
        %v3775 = vpop.f32.mrf.mxu0
        %3776 = vmatprep.mubr.bf16.mxu0 0
        %3777 = vmatmul.mubr.bf16.gmra.mxu0 %v3136
        %v3778 = vpop.f32.mrf.mxu0
        %v3779 = vadd.f32 %v2985, %v3778
        %v3780 = vpop.f32.mrf.mxu0
        %v3781 = vpop.f32.mrf.mxu0
        %v3782 = vadd.f32 %v2985, %v3781
        %v3783 = vpop.f32.mrf.mxu0
        %3784 = vmatprep.mubr.bf16.mxu0 0
        %3785 = vmatmul.mubr.bf16.gmra.mxu0 %v3139
        %v3786 = vpop.f32.mrf.mxu0
        %v3787 = vadd.f32 %v2985, %v3786
        %v3788 = vpop.f32.mrf.mxu0
        %v3789 = vpop.f32.mrf.mxu0
        %v3790 = vadd.f32 %v2985, %v3789
        %v3791 = vpop.f32.mrf.mxu0
        %3792 = vmatprep.mubr.bf16.mxu0 0
        %3793 = vmatmul.mubr.bf16.gmra.mxu0 %v3142
        %v3794 = vpop.f32.mrf.mxu0
        %v3795 = vadd.f32 %v2985, %v3794
        %v3796 = vpop.f32.mrf.mxu0
        %v3797 = vpop.f32.mrf.mxu0
        %v3798 = vadd.f32 %v2985, %v3797
        %v3799 = vpop.f32.mrf.mxu0
        %3800 = vmatprep.mubr.bf16.mxu0 0
        %3801 = vmatmul.mubr.bf16.gmra.mxu0 %v3145
        %v3802 = vpop.f32.mrf.mxu0
        %v3803 = vadd.f32 %v2985, %v3802
        %v3804 = vpop.f32.mrf.mxu0
        %v3805 = vpop.f32.mrf.mxu0
        %v3806 = vadd.f32 %v2985, %v3805
        %v3807 = vpop.f32.mrf.mxu0
        %3808 = vmatprep.mubr.bf16.mxu0 0
        %3809 = vmatmul.mubr.bf16.gmra.mxu0 %v3148
        %v3810 = vpop.f32.mrf.mxu0
        %v3811 = vadd.f32 %v2985, %v3810
        %v3812 = vpop.f32.mrf.mxu0
        %v3813 = vpop.f32.mrf.mxu0
        %v3814 = vadd.f32 %v2985, %v3813
        %v3815 = vpop.f32.mrf.mxu0
        %3816 = vmatprep.mubr.bf16.mxu0 0
        %3817 = vmatmul.mubr.bf16.gmra.mxu0 %v3151
        %v3818 = vpop.f32.mrf.mxu0
        %v3819 = vadd.f32 %v2985, %v3818
        %v3820 = vpop.f32.mrf.mxu0
        %v3821 = vpop.f32.mrf.mxu0
        %v3822 = vadd.f32 %v2985, %v3821
        %v3823 = vpop.f32.mrf.mxu0
        %3824 = vmatprep.mubr.bf16.mxu0 0
        %3825 = vmatmul.mubr.bf16.gmra.mxu0 %v3154
        %v3826 = vpop.f32.mrf.mxu0
        %v3827 = vadd.f32 %v2985, %v3826
        %v3828 = vpop.f32.mrf.mxu0
        %v3829 = vpop.f32.mrf.mxu0
        %v3830 = vadd.f32 %v2985, %v3829
        %v3831 = vpop.f32.mrf.mxu0
        %3832 = vmatprep.mubr.bf16.mxu0 0
        %3833 = vmatmul.mubr.bf16.gmra.mxu0 %v3157
        %v3834 = vpop.f32.mrf.mxu0
        %v3835 = vadd.f32 %v2985, %v3834
        %v3836 = vpop.f32.mrf.mxu0
        %v3837 = vpop.f32.mrf.mxu0
        %v3838 = vadd.f32 %v2985, %v3837
        %v3839 = vpop.f32.mrf.mxu0
        %3840 = vmatprep.mubr.bf16.mxu0 0
        %3841 = vmatmul.mubr.bf16.gmra.mxu0 %v3160
        %v3842 = vpop.f32.mrf.mxu0
        %v3843 = vadd.f32 %v2985, %v3842
        %v3844 = vpop.f32.mrf.mxu0
        %v3845 = vpop.f32.mrf.mxu0
        %v3846 = vadd.f32 %v2985, %v3845
        %v3847 = vpop.f32.mrf.mxu0
        %3848 = vmatprep.mubr.bf16.mxu0 0
        %3849 = vmatmul.mubr.bf16.gmra.mxu0 %v3163
        %v3850 = vpop.f32.mrf.mxu0
        %v3851 = vadd.f32 %v2985, %v3850
        %v3852 = vpop.f32.mrf.mxu0
        %v3853 = vpop.f32.mrf.mxu0
        %v3854 = vadd.f32 %v2985, %v3853
        %v3855 = vpop.f32.mrf.mxu0
        %3856 = vmatprep.mubr.bf16.mxu0 0
        %3857 = vmatmul.mubr.bf16.gmra.mxu0 %v3166
        %v3858 = vpop.f32.mrf.mxu0
        %v3859 = vadd.f32 %v2985, %v3858
        %v3860 = vpop.f32.mrf.mxu0
        %v3861 = vpop.f32.mrf.mxu0
        %v3862 = vadd.f32 %v2985, %v3861
        %v3863 = vpop.f32.mrf.mxu0
        %3864 = vmatprep.mubr.bf16.mxu0 0
        %3865 = vmatmul.mubr.bf16.gmra.mxu0 %v3169
        %v3866 = vpop.f32.mrf.mxu0
        %v3867 = vadd.f32 %v2985, %v3866
        %v3868 = vpop.f32.mrf.mxu0
        %v3869 = vpop.f32.mrf.mxu0
        %v3870 = vadd.f32 %v2985, %v3869
        %v3871 = vpop.f32.mrf.mxu0
        %3872 = vmatprep.mubr.bf16.mxu0 0
        %3873 = vmatmul.mubr.bf16.gmra.mxu0 %v3172
        %v3874 = vpop.f32.mrf.mxu0
        %v3875 = vadd.f32 %v2985, %v3874
        %v3876 = vpop.f32.mrf.mxu0
        %v3877 = vpop.f32.mrf.mxu0
        %v3878 = vadd.f32 %v2985, %v3877
        %v3879 = vpop.f32.mrf.mxu0
        %3880 = vmatprep.mubr.bf16.mxu0 0
        %3881 = vmatmul.mubr.bf16.gmra.mxu0 %v3175
        %v3882 = vpop.f32.mrf.mxu0
        %v3883 = vadd.f32 %v2985, %v3882
        %v3884 = vpop.f32.mrf.mxu0
        %v3885 = vpop.f32.mrf.mxu0
        %v3886 = vadd.f32 %v2985, %v3885
        %v3887 = vpop.f32.mrf.mxu0
        %3888 = vmatprep.mubr.bf16.mxu0 0
        %3889 = vmatmul.mubr.bf16.gmra.mxu0 %v3178
        %v3890 = vpop.f32.mrf.mxu0
        %v3891 = vadd.f32 %v2985, %v3890
        %v3892 = vpop.f32.mrf.mxu0
        %v3893 = vpop.f32.mrf.mxu0
        %v3894 = vadd.f32 %v2985, %v3893
        %v3895 = vpop.f32.mrf.mxu0
        %3896 = vmatprep.mubr.bf16.mxu0 0
        %3897 = vmatmul.mubr.bf16.gmra.mxu0 %v3181
        %v3898 = vpop.f32.mrf.mxu0
        %v3899 = vadd.f32 %v2985, %v3898
        %v3900 = vpop.f32.mrf.mxu0
        %v3901 = vpop.f32.mrf.mxu0
        %v3902 = vadd.f32 %v2985, %v3901
        %v3903 = vpop.f32.mrf.mxu0
        %3904 = vmatprep.mubr.bf16.mxu0 0
        %3905 = vmatmul.mubr.bf16.gmra.mxu0 %v3184
        %v3906 = vpop.f32.mrf.mxu0
        %v3907 = vadd.f32 %v2985, %v3906
        %v3908 = vpop.f32.mrf.mxu0
        %v3909 = vpop.f32.mrf.mxu0
        %v3910 = vadd.f32 %v2985, %v3909
        %v3911 = vpop.f32.mrf.mxu0
        %3912 = vmatprep.mubr.bf16.mxu0 0
        %3913 = vmatmul.mubr.bf16.gmra.mxu0 %v3187
        %v3914 = vpop.f32.mrf.mxu0
        %v3915 = vadd.f32 %v2985, %v3914
        %v3916 = vpop.f32.mrf.mxu0
        %v3917 = vpop.f32.mrf.mxu0
        %v3918 = vadd.f32 %v2985, %v3917
        %v3919 = vpop.f32.mrf.mxu0
        %3920 = vmatprep.mubr.bf16.mxu0 0
        %3921 = vmatmul.mubr.bf16.gmra.mxu0 %v3190
        %v3922 = vpop.f32.mrf.mxu0
        %v3923 = vadd.f32 %v2985, %v3922
        %v3924 = vpop.f32.mrf.mxu0
        %v3925 = vpop.f32.mrf.mxu0
        %v3926 = vadd.f32 %v2985, %v3925
        %v3927 = vpop.f32.mrf.mxu0
        %3928 = vmatprep.mubr.bf16.mxu0 0
        %3929 = vmatmul.mubr.bf16.gmra.mxu0 %v3193
        %v3930 = vpop.f32.mrf.mxu0
        %v3931 = vadd.f32 %v2985, %v3930
        %v3932 = vpop.f32.mrf.mxu0
        %v3933 = vpop.f32.mrf.mxu0
        %v3934 = vadd.f32 %v2985, %v3933
        %v3935 = vpop.f32.mrf.mxu0
        %3936 = vmatprep.mubr.bf16.mxu0 0
        %3937 = vmatmul.mubr.bf16.gmra.mxu0 %v3196
        %v3938 = vpop.f32.mrf.mxu0
        %v3939 = vadd.f32 %v2985, %v3938
        %v3940 = vpop.f32.mrf.mxu0
        %v3941 = vpop.f32.mrf.mxu0
        %v3942 = vadd.f32 %v2985, %v3941
        %v3943 = vpop.f32.mrf.mxu0
        %3944 = vmatprep.mubr.bf16.mxu0 0
        %3945 = vmatmul.mubr.bf16.gmra.mxu0 %v3199
        %v3946 = vpop.f32.mrf.mxu0
        %v3947 = vadd.f32 %v2985, %v3946
        %v3948 = vpop.f32.mrf.mxu0
        %v3949 = vpop.f32.mrf.mxu0
        %v3950 = vadd.f32 %v2985, %v3949
        %v3951 = vpop.f32.mrf.mxu0
        %3952 = vmatprep.mubr.bf16.mxu0 0
        %3953 = vmatmul.mubr.bf16.gmra.mxu0 %v3202
        %v3954 = vpop.f32.mrf.mxu0
        %v3955 = vadd.f32 %v2985, %v3954
        %v3956 = vpop.f32.mrf.mxu0
        %v3957 = vpop.f32.mrf.mxu0
        %v3958 = vadd.f32 %v2985, %v3957
        %v3959 = vpop.f32.mrf.mxu0
        %3960 = vmatprep.mubr.bf16.mxu0 0
        %3961 = vmatmul.mubr.bf16.gmra.mxu0 %v3205
        %v3962 = vpop.f32.mrf.mxu0
        %v3963 = vadd.f32 %v2985, %v3962
        %v3964 = vpop.f32.mrf.mxu0
        %v3965 = vpop.f32.mrf.mxu0
        %v3966 = vadd.f32 %v2985, %v3965
        %v3967 = vpop.f32.mrf.mxu0
        %3968 = vmatprep.mubr.bf16.mxu0 0
        %3969 = vmatmul.mubr.bf16.gmra.mxu0 %v3208
        %v3970 = vpop.f32.mrf.mxu0
        %v3971 = vadd.f32 %v2985, %v3970
        %v3972 = vpop.f32.mrf.mxu0
        %v3973 = vpop.f32.mrf.mxu0
        %v3974 = vadd.f32 %v2985, %v3973
        %v3975 = vpop.f32.mrf.mxu0
        %3976 = vmatprep.mubr.bf16.mxu0 0
        %3977 = vmatmul.mubr.bf16.gmra.mxu0 %v3211
        %v3978 = vpop.f32.mrf.mxu0
        %v3979 = vadd.f32 %v2985, %v3978
        %v3980 = vpop.f32.mrf.mxu0
        %v3981 = vpop.f32.mrf.mxu0
        %v3982 = vadd.f32 %v2985, %v3981
        %v3983 = vpop.f32.mrf.mxu0
        %3984 = vmatprep.mubr.bf16.mxu0 0
        %3985 = vmatmul.mubr.bf16.gmra.mxu0 %v3214
        %v3986 = vpop.f32.mrf.mxu0
        %v3987 = vadd.f32 %v2985, %v3986
        %v3988 = vpop.f32.mrf.mxu0
        %v3989 = vpop.f32.mrf.mxu0
        %v3990 = vadd.f32 %v2985, %v3989
        %v3991 = vpop.f32.mrf.mxu0
        %3992 = vmatprep.mubr.bf16.mxu0 0
        %3993 = vmatmul.mubr.bf16.gmra.mxu0 %v3217
        %v3994 = vpop.f32.mrf.mxu0
        %v3995 = vadd.f32 %v2985, %v3994
        %v3996 = vpop.f32.mrf.mxu0
        %v3997 = vpop.f32.mrf.mxu0
        %v3998 = vadd.f32 %v2985, %v3997
        %v3999 = vpop.f32.mrf.mxu0
        %4000 = vmatprep.mubr.bf16.mxu0 0
        %4001 = vmatmul.mubr.bf16.gmra.mxu0 %v3220
        %v4002 = vpop.f32.mrf.mxu0
        %v4003 = vadd.f32 %v2985, %v4002
        %v4004 = vpop.f32.mrf.mxu0
        %v4005 = vpop.f32.mrf.mxu0
        %v4006 = vadd.f32 %v2985, %v4005
        %v4007 = vpop.f32.mrf.mxu0
        %4008 = vmatprep.mubr.bf16.mxu0 0
        %4009 = vmatmul.mubr.bf16.gmra.mxu0 %v3223
        %v4010 = vpop.f32.mrf.mxu0
        %v4011 = vadd.f32 %v2985, %v4010
        %v4012 = vpop.f32.mrf.mxu0
        %v4013 = vpop.f32.mrf.mxu0
        %v4014 = vadd.f32 %v2985, %v4013
        %v4015 = vpop.f32.mrf.mxu0
        %4016 = vmatprep.mubr.bf16.mxu0 0
        %4017 = vmatmul.mubr.bf16.gmra.mxu0 %v3226
        %v4018 = vpop.f32.mrf.mxu0
        %v4019 = vadd.f32 %v2985, %v4018
        %v4020 = vpop.f32.mrf.mxu0
        %v4021 = vpop.f32.mrf.mxu0
        %v4022 = vadd.f32 %v2985, %v4021
        %v4023 = vpop.f32.mrf.mxu0
        %4024 = vmatprep.mubr.bf16.mxu0 0
        %4025 = vmatmul.mubr.bf16.gmra.mxu0 %v3229
        %v4026 = vpop.f32.mrf.mxu0
        %v4027 = vadd.f32 %v2985, %v4026
        %v4028 = vpop.f32.mrf.mxu0
        %v4029 = vpop.f32.mrf.mxu0
        %v4030 = vadd.f32 %v2985, %v4029
        %v4031 = vpop.f32.mrf.mxu0
        %4032 = vmatprep.mubr.bf16.mxu0 0
        %4033 = vmatmul.mubr.bf16.gmra.mxu0 %v3232
        %v4034 = vpop.f32.mrf.mxu0
        %v4035 = vadd.f32 %v2985, %v4034
        %v4036 = vpop.f32.mrf.mxu0
        %v4037 = vpop.f32.mrf.mxu0
        %v4038 = vadd.f32 %v2985, %v4037
        %v4039 = vpop.f32.mrf.mxu0
        %4040 = vmatprep.mubr.bf16.mxu0 0
        %4041 = vmatmul.mubr.bf16.gmra.mxu0 %v3235
        %v4042 = vpop.f32.mrf.mxu0
        %v4043 = vadd.f32 %v2985, %v4042
        %v4044 = vpop.f32.mrf.mxu0
        %v4045 = vpop.f32.mrf.mxu0
        %v4046 = vadd.f32 %v2985, %v4045
        %v4047 = vpop.f32.mrf.mxu0
        %4048 = vmatprep.mubr.bf16.mxu0 0
        %4049 = vmatmul.mubr.bf16.gmra.mxu0 %v3238
        %v4050 = vpop.f32.mrf.mxu0
        %v4051 = vadd.f32 %v2985, %v4050
        %v4052 = vpop.f32.mrf.mxu0
        %v4053 = vpop.f32.mrf.mxu0
        %v4054 = vadd.f32 %v2985, %v4053
        %v4055 = vpop.f32.mrf.mxu0
        %4056 = vmatprep.mubr.bf16.mxu0 0
        %4057 = vmatmul.mubr.bf16.gmra.mxu0 %v3241
        %v4058 = vpop.f32.mrf.mxu0
        %v4059 = vadd.f32 %v2985, %v4058
        %v4060 = vpop.f32.mrf.mxu0
        %v4061 = vpop.f32.mrf.mxu0
        %v4062 = vadd.f32 %v2985, %v4061
        %v4063 = vpop.f32.mrf.mxu0
        %4064 = vmatprep.mubr.bf16.mxu0 0
        %4065 = vmatmul.mubr.bf16.gmra.mxu0 %v3244
        %v4066 = vpop.f32.mrf.mxu0
        %v4067 = vadd.f32 %v2985, %v4066
        %v4068 = vpop.f32.mrf.mxu0
        %v4069 = vpop.f32.mrf.mxu0
        %v4070 = vadd.f32 %v2985, %v4069
        %v4071 = vpop.f32.mrf.mxu0
        %4072 = vmatprep.mubr.bf16.mxu0 0
        %4073 = vmatmul.mubr.bf16.gmra.mxu0 %v3247
        %v4074 = vpop.f32.mrf.mxu0
        %v4075 = vadd.f32 %v2985, %v4074
        %v4076 = vpop.f32.mrf.mxu0
        %v4077 = vpop.f32.mrf.mxu0
        %v4078 = vadd.f32 %v2985, %v4077
        %v4079 = vpop.f32.mrf.mxu0
        %4080 = vmatprep.mubr.bf16.mxu0 0
        %4081 = vmatmul.mubr.bf16.gmra.mxu0 %v3250
        %v4082 = vpop.f32.mrf.mxu0
        %v4083 = vadd.f32 %v2985, %v4082
        %v4084 = vpop.f32.mrf.mxu0
        %v4085 = vpop.f32.mrf.mxu0
        %v4086 = vadd.f32 %v2985, %v4085
        %v4087 = vpop.f32.mrf.mxu0
        %4088 = vmatprep.mubr.bf16.mxu0 0
        %4089 = vmatmul.mubr.bf16.gmra.mxu0 %v3253
        %v4090 = vpop.f32.mrf.mxu0
        %v4091 = vadd.f32 %v2985, %v4090
        %v4092 = vpop.f32.mrf.mxu0
        %v4093 = vpop.f32.mrf.mxu0
        %v4094 = vadd.f32 %v2985, %v4093
        %v4095 = vpop.f32.mrf.mxu0
        %4096 = vmatprep.mubr.bf16.mxu0 0
        %4097 = vmatmul.mubr.bf16.gmra.mxu0 %v3256
        %v4098 = vpop.f32.mrf.mxu0
        %v4099 = vadd.f32 %v2985, %v4098
        %v4100 = vpop.f32.mrf.mxu0
        %v4101 = vpop.f32.mrf.mxu0
        %v4102 = vadd.f32 %v2985, %v4101
        %v4103 = vpop.f32.mrf.mxu0
        %4104 = vmatprep.mubr.bf16.mxu0 0
        %4105 = vmatmul.mubr.bf16.gmra.mxu0 %v3259
        %v4106 = vpop.f32.mrf.mxu0
        %v4107 = vadd.f32 %v2985, %v4106
        %v4108 = vpop.f32.mrf.mxu0
        %v4109 = vpop.f32.mrf.mxu0
        %v4110 = vadd.f32 %v2985, %v4109
        %v4111 = vpop.f32.mrf.mxu0
        %4112 = vmatprep.mubr.bf16.mxu0 0
        %4113 = vmatmul.mubr.bf16.gmra.mxu0 %v3262
        %v4114 = vpop.f32.mrf.mxu0
        %v4115 = vadd.f32 %v2985, %v4114
        %v4116 = vpop.f32.mrf.mxu0
        %v4117 = vpop.f32.mrf.mxu0
        %v4118 = vadd.f32 %v2985, %v4117
        %v4119 = vpop.f32.mrf.mxu0
        %4120 = vmatprep.mubr.bf16.mxu0 0
        %4121 = vmatmul.mubr.bf16.gmra.mxu0 %v3265
        %v4122 = vpop.f32.mrf.mxu0
        %v4123 = vadd.f32 %v2985, %v4122
        %v4124 = vpop.f32.mrf.mxu0
        %v4125 = vpop.f32.mrf.mxu0
        %v4126 = vadd.f32 %v2985, %v4125
        %v4127 = vpop.f32.mrf.mxu0
        %4128 = vmatprep.mubr.bf16.mxu0 0
        %4129 = vmatmul.mubr.bf16.gmra.mxu0 %v3268
        %v4130 = vpop.f32.mrf.mxu0
        %v4131 = vadd.f32 %v2985, %v4130
        %v4132 = vpop.f32.mrf.mxu0
        %v4133 = vpop.f32.mrf.mxu0
        %v4134 = vadd.f32 %v2985, %v4133
        %v4135 = vpop.f32.mrf.mxu0
        %4136 = vmatprep.mubr.bf16.mxu0 0
        %4137 = vmatmul.mubr.bf16.gmra.mxu0 %v3271
        %v4138 = vpop.f32.mrf.mxu0
        %v4139 = vadd.f32 %v2985, %v4138
        %v4140 = vpop.f32.mrf.mxu0
        %v4141 = vpop.f32.mrf.mxu0
        %v4142 = vadd.f32 %v2985, %v4141
        %v4143 = vpop.f32.mrf.mxu0
        %4144 = vmatprep.mubr.bf16.mxu0 0
        %4145 = vmatmul.mubr.bf16.gmra.mxu0 %v3274
        %v4146 = vpop.f32.mrf.mxu0
        %v4147 = vadd.f32 %v2985, %v4146
        %v4148 = vpop.f32.mrf.mxu0
        %v4149 = vpop.f32.mrf.mxu0
        %v4150 = vadd.f32 %v2985, %v4149
        %v4151 = vpop.f32.mrf.mxu0
        %4152 = vmatprep.mubr.bf16.mxu0 0
        %4153 = vmatmul.mubr.bf16.gmra.mxu0 %v3277
        %v4154 = vpop.f32.mrf.mxu0
        %v4155 = vadd.f32 %v2985, %v4154
        %v4156 = vpop.f32.mrf.mxu0
        %v4157 = vpop.f32.mrf.mxu0
        %v4158 = vadd.f32 %v2985, %v4157
        %v4159 = vpop.f32.mrf.mxu0
        %4160 = vmatprep.mubr.bf16.mxu0 0
        %4161 = vmatmul.mubr.bf16.gmra.mxu0 %v3280
        %v4162 = vpop.f32.mrf.mxu0
        %v4163 = vadd.f32 %v2985, %v4162
        %v4164 = vpop.f32.mrf.mxu0
        %v4165 = vpop.f32.mrf.mxu0
        %v4166 = vadd.f32 %v2985, %v4165
        %v4167 = vpop.f32.mrf.mxu0
        %4168 = vmatprep.mubr.bf16.mxu0 0
        %4169 = vmatmul.mubr.bf16.gmra.mxu0 %v3283
        %v4170 = vpop.f32.mrf.mxu0
        %v4171 = vadd.f32 %v2985, %v4170
        %v4172 = vpop.f32.mrf.mxu0
        %v4173 = vpop.f32.mrf.mxu0
        %v4174 = vadd.f32 %v2985, %v4173
        %v4175 = vpop.f32.mrf.mxu0
        %4176 = vmatprep.mubr.bf16.mxu0 0
        %4177 = vmatmul.mubr.bf16.gmra.mxu0 %v3286
        %v4178 = vpop.f32.mrf.mxu0
        %v4179 = vadd.f32 %v2985, %v4178
        %v4180 = vpop.f32.mrf.mxu0
        %v4181 = vpop.f32.mrf.mxu0
        %v4182 = vadd.f32 %v2985, %v4181
        %v4183 = vpop.f32.mrf.mxu0
        %4184 = vmatprep.mubr.bf16.mxu0 0
        %4185 = vmatmul.mubr.bf16.gmra.mxu0 %v3289
        %v4186 = vpop.f32.mrf.mxu0
        %v4187 = vadd.f32 %v2985, %v4186
        %v4188 = vpop.f32.mrf.mxu0
        %v4189 = vpop.f32.mrf.mxu0
        %v4190 = vadd.f32 %v2985, %v4189
        %v4191 = vpop.f32.mrf.mxu0
        %4192 = vmatprep.mubr.bf16.mxu0 0
        %4193 = vmatmul.mubr.bf16.gmra.mxu0 %v3292
        %v4194 = vpop.f32.mrf.mxu0
        %v4195 = vadd.f32 %v2985, %v4194
        %v4196 = vpop.f32.mrf.mxu0
        %v4197 = vpop.f32.mrf.mxu0
        %v4198 = vadd.f32 %v2985, %v4197
        %v4199 = vpop.f32.mrf.mxu0
        %4200 = vmatprep.mubr.bf16.mxu0 0
        %4201 = vmatmul.mubr.bf16.gmra.mxu0 %v3295
        %v4202 = vpop.f32.mrf.mxu0
        %v4203 = vadd.f32 %v2985, %v4202
        %v4204 = vpop.f32.mrf.mxu0
        %v4205 = vpop.f32.mrf.mxu0
        %v4206 = vadd.f32 %v2985, %v4205
        %v4207 = vpop.f32.mrf.mxu0
        %4208 = vmatprep.mubr.bf16.mxu0 0
        %4209 = vmatmul.mubr.bf16.gmra.mxu0 %v3298
        %v4210 = vpop.f32.mrf.mxu0
        %v4211 = vadd.f32 %v2985, %v4210
        %v4212 = vpop.f32.mrf.mxu0
        %v4213 = vpop.f32.mrf.mxu0
        %v4214 = vadd.f32 %v2985, %v4213
        %v4215 = vpop.f32.mrf.mxu0
        %4216 = vmatprep.mubr.bf16.mxu0 0
        %4217 = vmatmul.mubr.bf16.gmra.mxu0 %v3301
        %v4218 = vpop.f32.mrf.mxu0
        %v4219 = vadd.f32 %v2985, %v4218
        %v4220 = vpop.f32.mrf.mxu0
        %v4221 = vpop.f32.mrf.mxu0
        %v4222 = vadd.f32 %v2985, %v4221
        %v4223 = vpop.f32.mrf.mxu0
        %4224 = vmatprep.mubr.bf16.mxu0 0
        %4225 = vmatmul.mubr.bf16.gmra.mxu0 %v3304
        %v4226 = vpop.f32.mrf.mxu0
        %v4227 = vadd.f32 %v2985, %v4226
        %v4228 = vpop.f32.mrf.mxu0
        %v4229 = vpop.f32.mrf.mxu0
        %v4230 = vadd.f32 %v2985, %v4229
        %v4231 = vpop.f32.mrf.mxu0
        %4232 = vmatprep.mubr.bf16.mxu0 0
        %4233 = vmatmul.mubr.bf16.gmra.mxu0 %v3307
        %v4234 = vpop.f32.mrf.mxu0
        %v4235 = vadd.f32 %v2985, %v4234
        %v4236 = vpop.f32.mrf.mxu0
        %v4237 = vpop.f32.mrf.mxu0
        %v4238 = vadd.f32 %v2985, %v4237
        %v4239 = vpop.f32.mrf.mxu0
        %4240 = vmatprep.mubr.bf16.mxu0 0
        %4241 = vmatmul.mubr.bf16.gmra.mxu0 %v3310
        %v4242 = vpop.f32.mrf.mxu0
        %v4243 = vadd.f32 %v2985, %v4242
        %v4244 = vpop.f32.mrf.mxu0
        %v4245 = vpop.f32.mrf.mxu0
        %v4246 = vadd.f32 %v2985, %v4245
        %v4247 = vpop.f32.mrf.mxu0
        %4248 = vmatprep.mubr.bf16.mxu0 0
        %4249 = vmatmul.mubr.bf16.gmra.mxu0 %v3313
        %v4250 = vpop.f32.mrf.mxu0
        %v4251 = vadd.f32 %v2985, %v4250
        %v4252 = vpop.f32.mrf.mxu0
        %v4253 = vpop.f32.mrf.mxu0
        %v4254 = vadd.f32 %v2985, %v4253
        %v4255 = vpop.f32.mrf.mxu0
        %4256 = vmatprep.mubr.bf16.mxu0 0
        %4257 = vmatmul.mubr.bf16.gmra.mxu0 %v3316
        %v4258 = vpop.f32.mrf.mxu0
        %v4259 = vadd.f32 %v2985, %v4258
        %v4260 = vpop.f32.mrf.mxu0
        %v4261 = vpop.f32.mrf.mxu0
        %v4262 = vadd.f32 %v2985, %v4261
        %v4263 = vpop.f32.mrf.mxu0
        %4264 = vmatprep.mubr.bf16.mxu0 0
        %4265 = vmatmul.mubr.bf16.gmra.mxu0 %v3319
        %v4266 = vpop.f32.mrf.mxu0
        %v4267 = vadd.f32 %v2985, %v4266
        %v4268 = vpop.f32.mrf.mxu0
        %v4269 = vpop.f32.mrf.mxu0
        %v4270 = vadd.f32 %v2985, %v4269
        %v4271 = vpop.f32.mrf.mxu0
        %4272 = vmatprep.mubr.bf16.mxu0 0
        %4273 = vmatmul.mubr.bf16.gmra.mxu0 %v3322
        %v4274 = vpop.f32.mrf.mxu0
        %v4275 = vadd.f32 %v2985, %v4274
        %v4276 = vpop.f32.mrf.mxu0
        %v4277 = vpop.f32.mrf.mxu0
        %v4278 = vadd.f32 %v2985, %v4277
        %v4279 = vpop.f32.mrf.mxu0
        %4280 = vmatprep.mubr.bf16.mxu0 0
        %4281 = vmatmul.mubr.bf16.gmra.mxu0 %v3325
        %v4282 = vpop.f32.mrf.mxu0
        %v4283 = vadd.f32 %v2985, %v4282
        %v4284 = vpop.f32.mrf.mxu0
        %v4285 = vpop.f32.mrf.mxu0
        %v4286 = vadd.f32 %v2985, %v4285
        %v4287 = vpop.f32.mrf.mxu0
        %4288 = vmatprep.mubr.bf16.mxu0 0
        %4289 = vmatmul.mubr.bf16.gmra.mxu0 %v3328
        %v4290 = vpop.f32.mrf.mxu0
        %v4291 = vadd.f32 %v2985, %v4290
        %v4292 = vpop.f32.mrf.mxu0
        %v4293 = vpop.f32.mrf.mxu0
        %v4294 = vadd.f32 %v2985, %v4293
        %v4295 = vpop.f32.mrf.mxu0
        %4296 = vmatprep.mubr.bf16.mxu0 0
        %4297 = vmatmul.mubr.bf16.gmra.mxu0 %v3331
        %v4298 = vpop.f32.mrf.mxu0
        %v4299 = vadd.f32 %v2985, %v4298
        %v4300 = vpop.f32.mrf.mxu0
        %v4301 = vpop.f32.mrf.mxu0
        %v4302 = vadd.f32 %v2985, %v4301
        %v4303 = vpop.f32.mrf.mxu0
        %4304 = vmatprep.mubr.bf16.mxu0 0
        %4305 = vmatmul.mubr.bf16.gmra.mxu0 %v3334
        %v4306 = vpop.f32.mrf.mxu0
        %v4307 = vadd.f32 %v2985, %v4306
        %v4308 = vpop.f32.mrf.mxu0
        %v4309 = vpop.f32.mrf.mxu0
        %v4310 = vadd.f32 %v2985, %v4309
        %v4311 = vpop.f32.mrf.mxu0
        %4312 = vmatprep.mubr.bf16.mxu0 0
        %4313 = vmatmul.mubr.bf16.gmra.mxu0 %v3337
        %v4314 = vpop.f32.mrf.mxu0
        %v4315 = vadd.f32 %v2985, %v4314
        %v4316 = vpop.f32.mrf.mxu0
        %v4317 = vpop.f32.mrf.mxu0
        %v4318 = vadd.f32 %v2985, %v4317
        %v4319 = vpop.f32.mrf.mxu0
        %4320 = vmatprep.mubr.bf16.mxu0 0
        %4321 = vmatmul.mubr.bf16.gmra.mxu0 %v3340
        %v4322 = vpop.f32.mrf.mxu0
        %v4323 = vadd.f32 %v2985, %v4322
        %v4324 = vpop.f32.mrf.mxu0
        %v4325 = vpop.f32.mrf.mxu0
        %v4326 = vadd.f32 %v2985, %v4325
        %v4327 = vpop.f32.mrf.mxu0
        %4328 = vmatprep.mubr.bf16.mxu0 0
        %4329 = vmatmul.mubr.bf16.gmra.mxu0 %v3343
        %v4330 = vpop.f32.mrf.mxu0
        %v4331 = vadd.f32 %v2985, %v4330
        %v4332 = vpop.f32.mrf.mxu0
        %v4333 = vpop.f32.mrf.mxu0
        %v4334 = vadd.f32 %v2985, %v4333
        %v4335 = vpop.f32.mrf.mxu0
        %4336 = vmatprep.mubr.bf16.mxu0 0
        %4337 = vmatmul.mubr.bf16.gmra.mxu0 %v3346
        %v4338 = vpop.f32.mrf.mxu0
        %v4339 = vadd.f32 %v2985, %v4338
        %v4340 = vpop.f32.mrf.mxu0
        %v4341 = vpop.f32.mrf.mxu0
        %v4342 = vadd.f32 %v2985, %v4341
        %v4343 = vpop.f32.mrf.mxu0
        %4344 = vmatprep.mubr.bf16.mxu0 0
        %4345 = vmatmul.mubr.bf16.gmra.mxu0 %v3349
        %v4346 = vpop.f32.mrf.mxu0
        %v4347 = vadd.f32 %v2985, %v4346
        %v4348 = vpop.f32.mrf.mxu0
        %v4349 = vpop.f32.mrf.mxu0
        %v4350 = vadd.f32 %v2985, %v4349
        %v4351 = vpop.f32.mrf.mxu0
        %4352 = vmatprep.mubr.bf16.mxu0 0
        %4353 = vmatmul.mubr.bf16.gmra.mxu0 %v3352
        %v4354 = vpop.f32.mrf.mxu0
        %v4355 = vadd.f32 %v2985, %v4354
        %v4356 = vpop.f32.mrf.mxu0
        %v4357 = vpop.f32.mrf.mxu0
        %v4358 = vadd.f32 %v2985, %v4357
        %v4359 = vpop.f32.mrf.mxu0
        %4360 = vmatprep.mubr.bf16.mxu0 0
        %4361 = vmatmul.mubr.bf16.gmra.mxu0 %v3355
        %v4362 = vpop.f32.mrf.mxu0
        %v4363 = vadd.f32 %v2985, %v4362
        %v4364 = vpop.f32.mrf.mxu0
        %v4365 = vpop.f32.mrf.mxu0
        %v4366 = vadd.f32 %v2985, %v4365
        %v4367 = vpop.f32.mrf.mxu0
        %4368 = vmatprep.mubr.bf16.mxu0 0
        %4369 = vmatmul.mubr.bf16.gmra.mxu0 %v3358
        %v4370 = vpop.f32.mrf.mxu0
        %v4371 = vadd.f32 %v2985, %v4370
        %v4372 = vpop.f32.mrf.mxu0
        %v4373 = vpop.f32.mrf.mxu0
        %v4374 = vadd.f32 %v2985, %v4373
        %v4375 = vpop.f32.mrf.mxu0
        %4376 = vmatprep.mubr.bf16.mxu0 0
        %4377 = vmatmul.mubr.bf16.gmra.mxu0 %v3361
        %v4378 = vpop.f32.mrf.mxu0
        %v4379 = vadd.f32 %v2985, %v4378
        %v4380 = vpop.f32.mrf.mxu0
        %v4381 = vpop.f32.mrf.mxu0
        %v4382 = vadd.f32 %v2985, %v4381
        %v4383 = vpop.f32.mrf.mxu0
        %4384 = vmatprep.mubr.bf16.mxu0 0
        %4385 = vmatmul.mubr.bf16.gmra.mxu0 %v3364
        %v4386 = vpop.f32.mrf.mxu0
        %v4387 = vadd.f32 %v2985, %v4386
        %v4388 = vpop.f32.mrf.mxu0
        %v4389 = vpop.f32.mrf.mxu0
        %v4390 = vadd.f32 %v2985, %v4389
        %v4391 = vpop.f32.mrf.mxu0
        %4392 = vmatprep.mubr.bf16.mxu0 0
        %4393 = vmatmul.mubr.bf16.gmra.mxu0 %v3367
        %v4394 = vpop.f32.mrf.mxu0
        %v4395 = vadd.f32 %v2985, %v4394
        %v4396 = vpop.f32.mrf.mxu0
        %v4397 = vpop.f32.mrf.mxu0
        %v4398 = vadd.f32 %v2985, %v4397
        %v4399 = vpop.f32.mrf.mxu0
        %4400 = vmatprep.mubr.bf16.mxu0 0
        %4401 = vmatmul.mubr.bf16.gmra.mxu0 %v3370
        %v4402 = vpop.f32.mrf.mxu0
        %v4403 = vadd.f32 %v2985, %v4402
        %v4404 = vpop.f32.mrf.mxu0
        %v4405 = vpop.f32.mrf.mxu0
        %v4406 = vadd.f32 %v2985, %v4405
        %v4407 = vpop.f32.mrf.mxu0
        %4408 = vmatprep.mubr.bf16.mxu0 0
        %4409 = vmatmul.mubr.bf16.gmra.mxu0 %v3373
        %v4410 = vpop.f32.mrf.mxu0
        %v4411 = vadd.f32 %v2985, %v4410
        %v4412 = vpop.f32.mrf.mxu0
        %v4413 = vpop.f32.mrf.mxu0
        %v4414 = vadd.f32 %v2985, %v4413
        %v4415 = vpop.f32.mrf.mxu0
        %4416 = vmatprep.mubr.bf16.mxu0 0
        %4417 = vmatmul.mubr.bf16.gmra.mxu0 %v3376
        %v4418 = vpop.f32.mrf.mxu0
        %v4419 = vadd.f32 %v2985, %v4418
        %v4420 = vpop.f32.mrf.mxu0
        %v4421 = vpop.f32.mrf.mxu0
        %v4422 = vadd.f32 %v2985, %v4421
        %v4423 = vpop.f32.mrf.mxu0
        %4424 = vmatprep.mubr.bf16.mxu0 0
        %4425 = vmatmul.mubr.bf16.gmra.mxu0 %v3379
        %v4426 = vpop.f32.mrf.mxu0
        %v4427 = vadd.f32 %v2985, %v4426
        %v4428 = vpop.f32.mrf.mxu0
        %v4429 = vpop.f32.mrf.mxu0
        %v4430 = vadd.f32 %v2985, %v4429
        %v4431 = vpop.f32.mrf.mxu0
        %4432 = vmatprep.mubr.bf16.mxu0 0
        %4433 = vmatmul.mubr.bf16.gmra.mxu0 %v3382
        %v4434 = vpop.f32.mrf.mxu0
        %v4435 = vadd.f32 %v2985, %v4434
        %v4436 = vpop.f32.mrf.mxu0
        %v4437 = vpop.f32.mrf.mxu0
        %v4438 = vadd.f32 %v2985, %v4437
        %v4439 = vpop.f32.mrf.mxu0
        %4440 = vdwg.mxu0
        %v4441 = vmax.f32 %v3419, 0.0
        %v4442 = vmax.f32 %v3422, 0.0
        %v4443 = vmax.f32 %v3427, 0.0
        %v4444 = vmax.f32 %v3430, 0.0
        %v4445 = vmax.f32 %v3435, 0.0
        %v4446 = vmax.f32 %v3438, 0.0
        %v4447 = vmax.f32 %v3443, 0.0
        %v4448 = vmax.f32 %v3446, 0.0
        %v4449 = vmax.f32 %v3451, 0.0
        %v4450 = vmax.f32 %v3454, 0.0
        %v4451 = vmax.f32 %v3459, 0.0
        %v4452 = vmax.f32 %v3462, 0.0
        %v4453 = vmax.f32 %v3467, 0.0
        %v4454 = vmax.f32 %v3470, 0.0
        %v4455 = vmax.f32 %v3475, 0.0
        %v4456 = vmax.f32 %v3478, 0.0
        %v4457 = vmax.f32 %v3483, 0.0
        %v4458 = vmax.f32 %v3486, 0.0
        %v4459 = vmax.f32 %v3491, 0.0
        %v4460 = vmax.f32 %v3494, 0.0
        %v4461 = vmax.f32 %v3499, 0.0
        %v4462 = vmax.f32 %v3502, 0.0
        %v4463 = vmax.f32 %v3507, 0.0
        %v4464 = vmax.f32 %v3510, 0.0
        %v4465 = vmax.f32 %v3515, 0.0
        %v4466 = vmax.f32 %v3518, 0.0
        %v4467 = vmax.f32 %v3523, 0.0
        %v4468 = vmax.f32 %v3526, 0.0
        %v4469 = vmax.f32 %v3531, 0.0
        %v4470 = vmax.f32 %v3534, 0.0
        %v4471 = vmax.f32 %v3539, 0.0
        %v4472 = vmax.f32 %v3542, 0.0
        %v4473 = vmax.f32 %v3547, 0.0
        %v4474 = vmax.f32 %v3550, 0.0
        %v4475 = vmax.f32 %v3555, 0.0
        %v4476 = vmax.f32 %v3558, 0.0
        %v4477 = vmax.f32 %v3563, 0.0
        %v4478 = vmax.f32 %v3566, 0.0
        %v4479 = vmax.f32 %v3571, 0.0
        %v4480 = vmax.f32 %v3574, 0.0
        %v4481 = vmax.f32 %v3579, 0.0
        %v4482 = vmax.f32 %v3582, 0.0
        %v4483 = vmax.f32 %v3587, 0.0
        %v4484 = vmax.f32 %v3590, 0.0
        %v4485 = vmax.f32 %v3595, 0.0
        %v4486 = vmax.f32 %v3598, 0.0
        %v4487 = vmax.f32 %v3603, 0.0
        %v4488 = vmax.f32 %v3606, 0.0
        %v4489 = vmax.f32 %v3611, 0.0
        %v4490 = vmax.f32 %v3614, 0.0
        %v4491 = vmax.f32 %v3619, 0.0
        %v4492 = vmax.f32 %v3622, 0.0
        %v4493 = vmax.f32 %v3627, 0.0
        %v4494 = vmax.f32 %v3630, 0.0
        %v4495 = vmax.f32 %v3635, 0.0
        %v4496 = vmax.f32 %v3638, 0.0
        %v4497 = vmax.f32 %v3643, 0.0
        %v4498 = vmax.f32 %v3646, 0.0
        %v4499 = vmax.f32 %v3651, 0.0
        %v4500 = vmax.f32 %v3654, 0.0
        %v4501 = vmax.f32 %v3659, 0.0
        %v4502 = vmax.f32 %v3662, 0.0
        %v4503 = vmax.f32 %v3667, 0.0
        %v4504 = vmax.f32 %v3670, 0.0
        %v4505 = vmax.f32 %v3675, 0.0
        %v4506 = vmax.f32 %v3678, 0.0
        %v4507 = vmax.f32 %v3683, 0.0
        %v4508 = vmax.f32 %v3686, 0.0
        %v4509 = vmax.f32 %v3691, 0.0
        %v4510 = vmax.f32 %v3694, 0.0
        %v4511 = vmax.f32 %v3699, 0.0
        %v4512 = vmax.f32 %v3702, 0.0
        %v4513 = vmax.f32 %v3707, 0.0
        %v4514 = vmax.f32 %v3710, 0.0
        %v4515 = vmax.f32 %v3715, 0.0
        %v4516 = vmax.f32 %v3718, 0.0
        %v4517 = vmax.f32 %v3723, 0.0
        %v4518 = vmax.f32 %v3726, 0.0
        %v4519 = vmax.f32 %v3731, 0.0
        %v4520 = vmax.f32 %v3734, 0.0
        %v4521 = vmax.f32 %v3739, 0.0
        %v4522 = vmax.f32 %v3742, 0.0
        %v4523 = vmax.f32 %v3747, 0.0
        %v4524 = vmax.f32 %v3750, 0.0
        %v4525 = vmax.f32 %v3755, 0.0
        %v4526 = vmax.f32 %v3758, 0.0
        %v4527 = vmax.f32 %v3763, 0.0
        %v4528 = vmax.f32 %v3766, 0.0
        %v4529 = vmax.f32 %v3771, 0.0
        %v4530 = vmax.f32 %v3774, 0.0
        %v4531 = vmax.f32 %v3779, 0.0
        %v4532 = vmax.f32 %v3782, 0.0
        %v4533 = vmax.f32 %v3787, 0.0
        %v4534 = vmax.f32 %v3790, 0.0
        %v4535 = vmax.f32 %v3795, 0.0
        %v4536 = vmax.f32 %v3798, 0.0
        %v4537 = vmax.f32 %v3803, 0.0
        %v4538 = vmax.f32 %v3806, 0.0
        %v4539 = vmax.f32 %v3811, 0.0
        %v4540 = vmax.f32 %v3814, 0.0
        %v4541 = vmax.f32 %v3819, 0.0
        %v4542 = vmax.f32 %v3822, 0.0
        %v4543 = vmax.f32 %v3827, 0.0
        %v4544 = vmax.f32 %v3830, 0.0
        %v4545 = vmax.f32 %v3835, 0.0
        %v4546 = vmax.f32 %v3838, 0.0
        %v4547 = vmax.f32 %v3843, 0.0
        %v4548 = vmax.f32 %v3846, 0.0
        %v4549 = vmax.f32 %v3851, 0.0
        %v4550 = vmax.f32 %v3854, 0.0
        %v4551 = vmax.f32 %v3859, 0.0
        %v4552 = vmax.f32 %v3862, 0.0
        %v4553 = vmax.f32 %v3867, 0.0
        %v4554 = vmax.f32 %v3870, 0.0
        %v4555 = vmax.f32 %v3875, 0.0
        %v4556 = vmax.f32 %v3878, 0.0
        %v4557 = vmax.f32 %v3883, 0.0
        %v4558 = vmax.f32 %v3886, 0.0
        %v4559 = vmax.f32 %v3891, 0.0
        %v4560 = vmax.f32 %v3894, 0.0
        %v4561 = vmax.f32 %v3899, 0.0
        %v4562 = vmax.f32 %v3902, 0.0
        %v4563 = vmax.f32 %v3907, 0.0
        %v4564 = vmax.f32 %v3910, 0.0
        %v4565 = vmax.f32 %v3915, 0.0
        %v4566 = vmax.f32 %v3918, 0.0
        %v4567 = vmax.f32 %v3923, 0.0
        %v4568 = vmax.f32 %v3926, 0.0
        %v4569 = vmax.f32 %v3931, 0.0
        %v4570 = vmax.f32 %v3934, 0.0
        %v4571 = vmax.f32 %v3939, 0.0
        %v4572 = vmax.f32 %v3942, 0.0
        %v4573 = vmax.f32 %v3947, 0.0
        %v4574 = vmax.f32 %v3950, 0.0
        %v4575 = vmax.f32 %v3955, 0.0
        %v4576 = vmax.f32 %v3958, 0.0
        %v4577 = vmax.f32 %v3963, 0.0
        %v4578 = vmax.f32 %v3966, 0.0
        %v4579 = vmax.f32 %v3971, 0.0
        %v4580 = vmax.f32 %v3974, 0.0
        %v4581 = vmax.f32 %v3979, 0.0
        %v4582 = vmax.f32 %v3982, 0.0
        %v4583 = vmax.f32 %v3987, 0.0
        %v4584 = vmax.f32 %v3990, 0.0
        %v4585 = vmax.f32 %v3995, 0.0
        %v4586 = vmax.f32 %v3998, 0.0
        %v4587 = vmax.f32 %v4003, 0.0
        %v4588 = vmax.f32 %v4006, 0.0
        %v4589 = vmax.f32 %v4011, 0.0
        %v4590 = vmax.f32 %v4014, 0.0
        %v4591 = vmax.f32 %v4019, 0.0
        %v4592 = vmax.f32 %v4022, 0.0
        %v4593 = vmax.f32 %v4027, 0.0
        %v4594 = vmax.f32 %v4030, 0.0
        %v4595 = vmax.f32 %v4035, 0.0
        %v4596 = vmax.f32 %v4038, 0.0
        %v4597 = vmax.f32 %v4043, 0.0
        %v4598 = vmax.f32 %v4046, 0.0
        %v4599 = vmax.f32 %v4051, 0.0
        %v4600 = vmax.f32 %v4054, 0.0
        %v4601 = vmax.f32 %v4059, 0.0
        %v4602 = vmax.f32 %v4062, 0.0
        %v4603 = vmax.f32 %v4067, 0.0
        %v4604 = vmax.f32 %v4070, 0.0
        %v4605 = vmax.f32 %v4075, 0.0
        %v4606 = vmax.f32 %v4078, 0.0
        %v4607 = vmax.f32 %v4083, 0.0
        %v4608 = vmax.f32 %v4086, 0.0
        %v4609 = vmax.f32 %v4091, 0.0
        %v4610 = vmax.f32 %v4094, 0.0
        %v4611 = vmax.f32 %v4099, 0.0
        %v4612 = vmax.f32 %v4102, 0.0
        %v4613 = vmax.f32 %v4107, 0.0
        %v4614 = vmax.f32 %v4110, 0.0
        %v4615 = vmax.f32 %v4115, 0.0
        %v4616 = vmax.f32 %v4118, 0.0
        %v4617 = vmax.f32 %v4123, 0.0
        %v4618 = vmax.f32 %v4126, 0.0
        %v4619 = vmax.f32 %v4131, 0.0
        %v4620 = vmax.f32 %v4134, 0.0
        %v4621 = vmax.f32 %v4139, 0.0
        %v4622 = vmax.f32 %v4142, 0.0
        %v4623 = vmax.f32 %v4147, 0.0
        %v4624 = vmax.f32 %v4150, 0.0
        %v4625 = vmax.f32 %v4155, 0.0
        %v4626 = vmax.f32 %v4158, 0.0
        %v4627 = vmax.f32 %v4163, 0.0
        %v4628 = vmax.f32 %v4166, 0.0
        %v4629 = vmax.f32 %v4171, 0.0
        %v4630 = vmax.f32 %v4174, 0.0
        %v4631 = vmax.f32 %v4179, 0.0
        %v4632 = vmax.f32 %v4182, 0.0
        %v4633 = vmax.f32 %v4187, 0.0
        %v4634 = vmax.f32 %v4190, 0.0
        %v4635 = vmax.f32 %v4195, 0.0
        %v4636 = vmax.f32 %v4198, 0.0
        %v4637 = vmax.f32 %v4203, 0.0
        %v4638 = vmax.f32 %v4206, 0.0
        %v4639 = vmax.f32 %v4211, 0.0
        %v4640 = vmax.f32 %v4214, 0.0
        %v4641 = vmax.f32 %v4219, 0.0
        %v4642 = vmax.f32 %v4222, 0.0
        %v4643 = vmax.f32 %v4227, 0.0
        %v4644 = vmax.f32 %v4230, 0.0
        %v4645 = vmax.f32 %v4235, 0.0
        %v4646 = vmax.f32 %v4238, 0.0
        %v4647 = vmax.f32 %v4243, 0.0
        %v4648 = vmax.f32 %v4246, 0.0
        %v4649 = vmax.f32 %v4251, 0.0
        %v4650 = vmax.f32 %v4254, 0.0
        %v4651 = vmax.f32 %v4259, 0.0
        %v4652 = vmax.f32 %v4262, 0.0
        %v4653 = vmax.f32 %v4267, 0.0
        %v4654 = vmax.f32 %v4270, 0.0
        %v4655 = vmax.f32 %v4275, 0.0
        %v4656 = vmax.f32 %v4278, 0.0
        %v4657 = vmax.f32 %v4283, 0.0
        %v4658 = vmax.f32 %v4286, 0.0
        %v4659 = vmax.f32 %v4291, 0.0
        %v4660 = vmax.f32 %v4294, 0.0
        %v4661 = vmax.f32 %v4299, 0.0
        %v4662 = vmax.f32 %v4302, 0.0
        %v4663 = vmax.f32 %v4307, 0.0
        %v4664 = vmax.f32 %v4310, 0.0
        %v4665 = vmax.f32 %v4315, 0.0
        %v4666 = vmax.f32 %v4318, 0.0
        %v4667 = vmax.f32 %v4323, 0.0
        %v4668 = vmax.f32 %v4326, 0.0
        %v4669 = vmax.f32 %v4331, 0.0
        %v4670 = vmax.f32 %v4334, 0.0
        %v4671 = vmax.f32 %v4339, 0.0
        %v4672 = vmax.f32 %v4342, 0.0
        %v4673 = vmax.f32 %v4347, 0.0
        %v4674 = vmax.f32 %v4350, 0.0
        %v4675 = vmax.f32 %v4355, 0.0
        %v4676 = vmax.f32 %v4358, 0.0
        %v4677 = vmax.f32 %v4363, 0.0
        %v4678 = vmax.f32 %v4366, 0.0
        %v4679 = vmax.f32 %v4371, 0.0
        %v4680 = vmax.f32 %v4374, 0.0
        %v4681 = vmax.f32 %v4379, 0.0
        %v4682 = vmax.f32 %v4382, 0.0
        %v4683 = vmax.f32 %v4387, 0.0
        %v4684 = vmax.f32 %v4390, 0.0
        %v4685 = vmax.f32 %v4395, 0.0
        %v4686 = vmax.f32 %v4398, 0.0
        %v4687 = vmax.f32 %v4403, 0.0
        %v4688 = vmax.f32 %v4406, 0.0
        %v4689 = vmax.f32 %v4411, 0.0
        %v4690 = vmax.f32 %v4414, 0.0
        %v4691 = vmax.f32 %v4419, 0.0
        %v4692 = vmax.f32 %v4422, 0.0
        %v4693 = vmax.f32 %v4427, 0.0
        %v4694 = vmax.f32 %v4430, 0.0
        %v4695 = vmax.f32 %v4435, 0.0
        %v4696 = vmax.f32 %v4438, 0.0
        %v4697 = vld [vmem:[%s245] sm:$0xff]
        %v4698 = vld [vmem:[%s245 + $0x8] sm:$0xff]
        %v4699 = vld [vmem:[%s245 + $0x10] sm:$0xff]
        %v4700 = vld [vmem:[%s245 + $0x18] sm:$0xff]
        %v4701 = vlaneseq
        %v4702 = vshrl.u32 %v4701, 7
        %v4703 = vsub.s32 0, %v4702
        %v4704 = vrot.slane %v4697, %v4703
        %4706 = vbcast.lane.b32.xlu0 %v4704, 256
        %v4707 = vpop.permute.xlu0 %4706
        %s4709 = sor.u32 256, 8
        %4710 = vbcast.lane.b32.xlu0 %v4704, %s4709
        %v4711 = vpop.permute.xlu0 %4710
        %s4713 = sor.u32 256, 16
        %4714 = vbcast.lane.b32.xlu0 %v4704, %s4713
        %v4715 = vpop.permute.xlu0 %4714
        %s4717 = sor.u32 256, 24
        %4718 = vbcast.lane.b32.xlu0 %v4704, %s4717
        %v4719 = vpop.permute.xlu0 %4718
        %s4721 = sor.u32 256, 32
        %4722 = vbcast.lane.b32.xlu0 %v4704, %s4721
        %v4723 = vpop.permute.xlu0 %4722
        %s4725 = sor.u32 256, 40
        %4726 = vbcast.lane.b32.xlu0 %v4704, %s4725
        %v4727 = vpop.permute.xlu0 %4726
        %s4729 = sor.u32 256, 48
        %4730 = vbcast.lane.b32.xlu0 %v4704, %s4729
        %v4731 = vpop.permute.xlu0 %4730
        %s4733 = sor.u32 256, 56
        %4734 = vbcast.lane.b32.xlu0 %v4704, %s4733
        %v4735 = vpop.permute.xlu0 %4734
        %v4736 = vlaneseq
        %v4737 = vshrl.u32 %v4736, 7
        %v4738 = vsub.s32 1, %v4737
        %v4739 = vrot.slane %v4697, %v4738
        %4741 = vbcast.lane.b32.xlu0 %v4739, 256
        %v4742 = vpop.permute.xlu0 %4741
        %s4744 = sor.u32 256, 8
        %4745 = vbcast.lane.b32.xlu0 %v4739, %s4744
        %v4746 = vpop.permute.xlu0 %4745
        %s4748 = sor.u32 256, 16
        %4749 = vbcast.lane.b32.xlu0 %v4739, %s4748
        %v4750 = vpop.permute.xlu0 %4749
        %s4752 = sor.u32 256, 24
        %4753 = vbcast.lane.b32.xlu0 %v4739, %s4752
        %v4754 = vpop.permute.xlu0 %4753
        %s4756 = sor.u32 256, 32
        %4757 = vbcast.lane.b32.xlu0 %v4739, %s4756
        %v4758 = vpop.permute.xlu0 %4757
        %s4760 = sor.u32 256, 40
        %4761 = vbcast.lane.b32.xlu0 %v4739, %s4760
        %v4762 = vpop.permute.xlu0 %4761
        %s4764 = sor.u32 256, 48
        %4765 = vbcast.lane.b32.xlu0 %v4739, %s4764
        %v4766 = vpop.permute.xlu0 %4765
        %s4768 = sor.u32 256, 56
        %4769 = vbcast.lane.b32.xlu0 %v4739, %s4768
        %v4770 = vpop.permute.xlu0 %4769
        %v4771 = vlaneseq
        %v4772 = vshrl.u32 %v4771, 7
        %v4773 = vsub.s32 2, %v4772
        %v4774 = vrot.slane %v4697, %v4773
        %4776 = vbcast.lane.b32.xlu0 %v4774, 256
        %v4777 = vpop.permute.xlu0 %4776
        %s4779 = sor.u32 256, 8
        %4780 = vbcast.lane.b32.xlu0 %v4774, %s4779
        %v4781 = vpop.permute.xlu0 %4780
        %s4783 = sor.u32 256, 16
        %4784 = vbcast.lane.b32.xlu0 %v4774, %s4783
        %v4785 = vpop.permute.xlu0 %4784
        %s4787 = sor.u32 256, 24
        %4788 = vbcast.lane.b32.xlu0 %v4774, %s4787
        %v4789 = vpop.permute.xlu0 %4788
        %s4791 = sor.u32 256, 32
        %4792 = vbcast.lane.b32.xlu0 %v4774, %s4791
        %v4793 = vpop.permute.xlu0 %4792
        %s4795 = sor.u32 256, 40
        %4796 = vbcast.lane.b32.xlu0 %v4774, %s4795
        %v4797 = vpop.permute.xlu0 %4796
        %s4799 = sor.u32 256, 48
        %4800 = vbcast.lane.b32.xlu0 %v4774, %s4799
        %v4801 = vpop.permute.xlu0 %4800
        %s4803 = sor.u32 256, 56
        %4804 = vbcast.lane.b32.xlu0 %v4774, %s4803
        %v4805 = vpop.permute.xlu0 %4804
        %v4806 = vlaneseq
        %v4807 = vshrl.u32 %v4806, 7
        %v4808 = vsub.s32 3, %v4807
        %v4809 = vrot.slane %v4697, %v4808
        %4811 = vbcast.lane.b32.xlu0 %v4809, 256
        %v4812 = vpop.permute.xlu0 %4811
        %s4814 = sor.u32 256, 8
        %4815 = vbcast.lane.b32.xlu0 %v4809, %s4814
        %v4816 = vpop.permute.xlu0 %4815
        %s4818 = sor.u32 256, 16
        %4819 = vbcast.lane.b32.xlu0 %v4809, %s4818
        %v4820 = vpop.permute.xlu0 %4819
        %s4822 = sor.u32 256, 24
        %4823 = vbcast.lane.b32.xlu0 %v4809, %s4822
        %v4824 = vpop.permute.xlu0 %4823
        %s4826 = sor.u32 256, 32
        %4827 = vbcast.lane.b32.xlu0 %v4809, %s4826
        %v4828 = vpop.permute.xlu0 %4827
        %s4830 = sor.u32 256, 40
        %4831 = vbcast.lane.b32.xlu0 %v4809, %s4830
        %v4832 = vpop.permute.xlu0 %4831
        %s4834 = sor.u32 256, 48
        %4835 = vbcast.lane.b32.xlu0 %v4809, %s4834
        %v4836 = vpop.permute.xlu0 %4835
        %s4838 = sor.u32 256, 56
        %4839 = vbcast.lane.b32.xlu0 %v4809, %s4838
        %v4840 = vpop.permute.xlu0 %4839
        %v4841 = vlaneseq
        %v4842 = vshrl.u32 %v4841, 7
        %v4843 = vsub.s32 4, %v4842
        %v4844 = vrot.slane %v4697, %v4843
        %4846 = vbcast.lane.b32.xlu0 %v4844, 256
        %v4847 = vpop.permute.xlu0 %4846
        %s4849 = sor.u32 256, 8
        %4850 = vbcast.lane.b32.xlu0 %v4844, %s4849
        %v4851 = vpop.permute.xlu0 %4850
        %s4853 = sor.u32 256, 16
        %4854 = vbcast.lane.b32.xlu0 %v4844, %s4853
        %v4855 = vpop.permute.xlu0 %4854
        %s4857 = sor.u32 256, 24
        %4858 = vbcast.lane.b32.xlu0 %v4844, %s4857
        %v4859 = vpop.permute.xlu0 %4858
        %s4861 = sor.u32 256, 32
        %4862 = vbcast.lane.b32.xlu0 %v4844, %s4861
        %v4863 = vpop.permute.xlu0 %4862
        %s4865 = sor.u32 256, 40
        %4866 = vbcast.lane.b32.xlu0 %v4844, %s4865
        %v4867 = vpop.permute.xlu0 %4866
        %s4869 = sor.u32 256, 48
        %4870 = vbcast.lane.b32.xlu0 %v4844, %s4869
        %v4871 = vpop.permute.xlu0 %4870
        %s4873 = sor.u32 256, 56
        %4874 = vbcast.lane.b32.xlu0 %v4844, %s4873
        %v4875 = vpop.permute.xlu0 %4874
        %v4876 = vlaneseq
        %v4877 = vshrl.u32 %v4876, 7
        %v4878 = vsub.s32 5, %v4877
        %v4879 = vrot.slane %v4697, %v4878
        %4881 = vbcast.lane.b32.xlu0 %v4879, 256
        %v4882 = vpop.permute.xlu0 %4881
        %s4884 = sor.u32 256, 8
        %4885 = vbcast.lane.b32.xlu0 %v4879, %s4884
        %v4886 = vpop.permute.xlu0 %4885
        %s4888 = sor.u32 256, 16
        %4889 = vbcast.lane.b32.xlu0 %v4879, %s4888
        %v4890 = vpop.permute.xlu0 %4889
        %s4892 = sor.u32 256, 24
        %4893 = vbcast.lane.b32.xlu0 %v4879, %s4892
        %v4894 = vpop.permute.xlu0 %4893
        %s4896 = sor.u32 256, 32
        %4897 = vbcast.lane.b32.xlu0 %v4879, %s4896
        %v4898 = vpop.permute.xlu0 %4897
        %s4900 = sor.u32 256, 40
        %4901 = vbcast.lane.b32.xlu0 %v4879, %s4900
        %v4902 = vpop.permute.xlu0 %4901
        %s4904 = sor.u32 256, 48
        %4905 = vbcast.lane.b32.xlu0 %v4879, %s4904
        %v4906 = vpop.permute.xlu0 %4905
        %s4908 = sor.u32 256, 56
        %4909 = vbcast.lane.b32.xlu0 %v4879, %s4908
        %v4910 = vpop.permute.xlu0 %4909
        %v4911 = vlaneseq
        %v4912 = vshrl.u32 %v4911, 7
        %v4913 = vsub.s32 6, %v4912
        %v4914 = vrot.slane %v4697, %v4913
        %4916 = vbcast.lane.b32.xlu0 %v4914, 256
        %v4917 = vpop.permute.xlu0 %4916
        %s4919 = sor.u32 256, 8
        %4920 = vbcast.lane.b32.xlu0 %v4914, %s4919
        %v4921 = vpop.permute.xlu0 %4920
        %s4923 = sor.u32 256, 16
        %4924 = vbcast.lane.b32.xlu0 %v4914, %s4923
        %v4925 = vpop.permute.xlu0 %4924
        %s4927 = sor.u32 256, 24
        %4928 = vbcast.lane.b32.xlu0 %v4914, %s4927
        %v4929 = vpop.permute.xlu0 %4928
        %s4931 = sor.u32 256, 32
        %4932 = vbcast.lane.b32.xlu0 %v4914, %s4931
        %v4933 = vpop.permute.xlu0 %4932
        %s4935 = sor.u32 256, 40
        %4936 = vbcast.lane.b32.xlu0 %v4914, %s4935
        %v4937 = vpop.permute.xlu0 %4936
        %s4939 = sor.u32 256, 48
        %4940 = vbcast.lane.b32.xlu0 %v4914, %s4939
        %v4941 = vpop.permute.xlu0 %4940
        %s4943 = sor.u32 256, 56
        %4944 = vbcast.lane.b32.xlu0 %v4914, %s4943
        %v4945 = vpop.permute.xlu0 %4944
        %v4946 = vlaneseq
        %v4947 = vshrl.u32 %v4946, 7
        %v4948 = vsub.s32 7, %v4947
        %v4949 = vrot.slane %v4697, %v4948
        %4951 = vbcast.lane.b32.xlu0 %v4949, 256
        %v4952 = vpop.permute.xlu0 %4951
        %s4954 = sor.u32 256, 8
        %4955 = vbcast.lane.b32.xlu0 %v4949, %s4954
        %v4956 = vpop.permute.xlu0 %4955
        %s4958 = sor.u32 256, 16
        %4959 = vbcast.lane.b32.xlu0 %v4949, %s4958
        %v4960 = vpop.permute.xlu0 %4959
        %s4962 = sor.u32 256, 24
        %4963 = vbcast.lane.b32.xlu0 %v4949, %s4962
        %v4964 = vpop.permute.xlu0 %4963
        %s4966 = sor.u32 256, 32
        %4967 = vbcast.lane.b32.xlu0 %v4949, %s4966
        %v4968 = vpop.permute.xlu0 %4967
        %s4970 = sor.u32 256, 40
        %4971 = vbcast.lane.b32.xlu0 %v4949, %s4970
        %v4972 = vpop.permute.xlu0 %4971
        %s4974 = sor.u32 256, 48
        %4975 = vbcast.lane.b32.xlu0 %v4949, %s4974
        %v4976 = vpop.permute.xlu0 %4975
        %s4978 = sor.u32 256, 56
        %4979 = vbcast.lane.b32.xlu0 %v4949, %s4978
        %v4980 = vpop.permute.xlu0 %4979
        %v4981 = vlaneseq
        %v4982 = vshrl.u32 %v4981, 7
        %v4983 = vsub.s32 0, %v4982
        %v4984 = vrot.slane %v4698, %v4983
        %4986 = vbcast.lane.b32.xlu0 %v4984, 256
        %v4987 = vpop.permute.xlu0 %4986
        %s4989 = sor.u32 256, 8
        %4990 = vbcast.lane.b32.xlu0 %v4984, %s4989
        %v4991 = vpop.permute.xlu0 %4990
        %s4993 = sor.u32 256, 16
        %4994 = vbcast.lane.b32.xlu0 %v4984, %s4993
        %v4995 = vpop.permute.xlu0 %4994
        %s4997 = sor.u32 256, 24
        %4998 = vbcast.lane.b32.xlu0 %v4984, %s4997
        %v4999 = vpop.permute.xlu0 %4998
        %s5001 = sor.u32 256, 32
        %5002 = vbcast.lane.b32.xlu0 %v4984, %s5001
        %v5003 = vpop.permute.xlu0 %5002
        %s5005 = sor.u32 256, 40
        %5006 = vbcast.lane.b32.xlu0 %v4984, %s5005
        %v5007 = vpop.permute.xlu0 %5006
        %s5009 = sor.u32 256, 48
        %5010 = vbcast.lane.b32.xlu0 %v4984, %s5009
        %v5011 = vpop.permute.xlu0 %5010
        %s5013 = sor.u32 256, 56
        %5014 = vbcast.lane.b32.xlu0 %v4984, %s5013
        %v5015 = vpop.permute.xlu0 %5014
        %v5016 = vlaneseq
        %v5017 = vshrl.u32 %v5016, 7
        %v5018 = vsub.s32 1, %v5017
        %v5019 = vrot.slane %v4698, %v5018
        %5021 = vbcast.lane.b32.xlu0 %v5019, 256
        %v5022 = vpop.permute.xlu0 %5021
        %s5024 = sor.u32 256, 8
        %5025 = vbcast.lane.b32.xlu0 %v5019, %s5024
        %v5026 = vpop.permute.xlu0 %5025
        %s5028 = sor.u32 256, 16
        %5029 = vbcast.lane.b32.xlu0 %v5019, %s5028
        %v5030 = vpop.permute.xlu0 %5029
        %s5032 = sor.u32 256, 24
        %5033 = vbcast.lane.b32.xlu0 %v5019, %s5032
        %v5034 = vpop.permute.xlu0 %5033
        %s5036 = sor.u32 256, 32
        %5037 = vbcast.lane.b32.xlu0 %v5019, %s5036
        %v5038 = vpop.permute.xlu0 %5037
        %s5040 = sor.u32 256, 40
        %5041 = vbcast.lane.b32.xlu0 %v5019, %s5040
        %v5042 = vpop.permute.xlu0 %5041
        %s5044 = sor.u32 256, 48
        %5045 = vbcast.lane.b32.xlu0 %v5019, %s5044
        %v5046 = vpop.permute.xlu0 %5045
        %s5048 = sor.u32 256, 56
        %5049 = vbcast.lane.b32.xlu0 %v5019, %s5048
        %v5050 = vpop.permute.xlu0 %5049
        %v5051 = vlaneseq
        %v5052 = vshrl.u32 %v5051, 7
        %v5053 = vsub.s32 2, %v5052
        %v5054 = vrot.slane %v4698, %v5053
        %5056 = vbcast.lane.b32.xlu0 %v5054, 256
        %v5057 = vpop.permute.xlu0 %5056
        %s5059 = sor.u32 256, 8
        %5060 = vbcast.lane.b32.xlu0 %v5054, %s5059
        %v5061 = vpop.permute.xlu0 %5060
        %s5063 = sor.u32 256, 16
        %5064 = vbcast.lane.b32.xlu0 %v5054, %s5063
        %v5065 = vpop.permute.xlu0 %5064
        %s5067 = sor.u32 256, 24
        %5068 = vbcast.lane.b32.xlu0 %v5054, %s5067
        %v5069 = vpop.permute.xlu0 %5068
        %s5071 = sor.u32 256, 32
        %5072 = vbcast.lane.b32.xlu0 %v5054, %s5071
        %v5073 = vpop.permute.xlu0 %5072
        %s5075 = sor.u32 256, 40
        %5076 = vbcast.lane.b32.xlu0 %v5054, %s5075
        %v5077 = vpop.permute.xlu0 %5076
        %s5079 = sor.u32 256, 48
        %5080 = vbcast.lane.b32.xlu0 %v5054, %s5079
        %v5081 = vpop.permute.xlu0 %5080
        %s5083 = sor.u32 256, 56
        %5084 = vbcast.lane.b32.xlu0 %v5054, %s5083
        %v5085 = vpop.permute.xlu0 %5084
        %v5086 = vlaneseq
        %v5087 = vshrl.u32 %v5086, 7
        %v5088 = vsub.s32 3, %v5087
        %v5089 = vrot.slane %v4698, %v5088
        %5091 = vbcast.lane.b32.xlu0 %v5089, 256
        %v5092 = vpop.permute.xlu0 %5091
        %s5094 = sor.u32 256, 8
        %5095 = vbcast.lane.b32.xlu0 %v5089, %s5094
        %v5096 = vpop.permute.xlu0 %5095
        %s5098 = sor.u32 256, 16
        %5099 = vbcast.lane.b32.xlu0 %v5089, %s5098
        %v5100 = vpop.permute.xlu0 %5099
        %s5102 = sor.u32 256, 24
        %5103 = vbcast.lane.b32.xlu0 %v5089, %s5102
        %v5104 = vpop.permute.xlu0 %5103
        %s5106 = sor.u32 256, 32
        %5107 = vbcast.lane.b32.xlu0 %v5089, %s5106
        %v5108 = vpop.permute.xlu0 %5107
        %s5110 = sor.u32 256, 40
        %5111 = vbcast.lane.b32.xlu0 %v5089, %s5110
        %v5112 = vpop.permute.xlu0 %5111
        %s5114 = sor.u32 256, 48
        %5115 = vbcast.lane.b32.xlu0 %v5089, %s5114
        %v5116 = vpop.permute.xlu0 %5115
        %s5118 = sor.u32 256, 56
        %5119 = vbcast.lane.b32.xlu0 %v5089, %s5118
        %v5120 = vpop.permute.xlu0 %5119
        %v5121 = vlaneseq
        %v5122 = vshrl.u32 %v5121, 7
        %v5123 = vsub.s32 4, %v5122
        %v5124 = vrot.slane %v4698, %v5123
        %5126 = vbcast.lane.b32.xlu0 %v5124, 256
        %v5127 = vpop.permute.xlu0 %5126
        %s5129 = sor.u32 256, 8
        %5130 = vbcast.lane.b32.xlu0 %v5124, %s5129
        %v5131 = vpop.permute.xlu0 %5130
        %s5133 = sor.u32 256, 16
        %5134 = vbcast.lane.b32.xlu0 %v5124, %s5133
        %v5135 = vpop.permute.xlu0 %5134
        %s5137 = sor.u32 256, 24
        %5138 = vbcast.lane.b32.xlu0 %v5124, %s5137
        %v5139 = vpop.permute.xlu0 %5138
        %s5141 = sor.u32 256, 32
        %5142 = vbcast.lane.b32.xlu0 %v5124, %s5141
        %v5143 = vpop.permute.xlu0 %5142
        %s5145 = sor.u32 256, 40
        %5146 = vbcast.lane.b32.xlu0 %v5124, %s5145
        %v5147 = vpop.permute.xlu0 %5146
        %s5149 = sor.u32 256, 48
        %5150 = vbcast.lane.b32.xlu0 %v5124, %s5149
        %v5151 = vpop.permute.xlu0 %5150
        %s5153 = sor.u32 256, 56
        %5154 = vbcast.lane.b32.xlu0 %v5124, %s5153
        %v5155 = vpop.permute.xlu0 %5154
        %v5156 = vlaneseq
        %v5157 = vshrl.u32 %v5156, 7
        %v5158 = vsub.s32 5, %v5157
        %v5159 = vrot.slane %v4698, %v5158
        %5161 = vbcast.lane.b32.xlu0 %v5159, 256
        %v5162 = vpop.permute.xlu0 %5161
        %s5164 = sor.u32 256, 8
        %5165 = vbcast.lane.b32.xlu0 %v5159, %s5164
        %v5166 = vpop.permute.xlu0 %5165
        %s5168 = sor.u32 256, 16
        %5169 = vbcast.lane.b32.xlu0 %v5159, %s5168
        %v5170 = vpop.permute.xlu0 %5169
        %s5172 = sor.u32 256, 24
        %5173 = vbcast.lane.b32.xlu0 %v5159, %s5172
        %v5174 = vpop.permute.xlu0 %5173
        %s5176 = sor.u32 256, 32
        %5177 = vbcast.lane.b32.xlu0 %v5159, %s5176
        %v5178 = vpop.permute.xlu0 %5177
        %s5180 = sor.u32 256, 40
        %5181 = vbcast.lane.b32.xlu0 %v5159, %s5180
        %v5182 = vpop.permute.xlu0 %5181
        %s5184 = sor.u32 256, 48
        %5185 = vbcast.lane.b32.xlu0 %v5159, %s5184
        %v5186 = vpop.permute.xlu0 %5185
        %s5188 = sor.u32 256, 56
        %5189 = vbcast.lane.b32.xlu0 %v5159, %s5188
        %v5190 = vpop.permute.xlu0 %5189
        %v5191 = vlaneseq
        %v5192 = vshrl.u32 %v5191, 7
        %v5193 = vsub.s32 6, %v5192
        %v5194 = vrot.slane %v4698, %v5193
        %5196 = vbcast.lane.b32.xlu0 %v5194, 256
        %v5197 = vpop.permute.xlu0 %5196
        %s5199 = sor.u32 256, 8
        %5200 = vbcast.lane.b32.xlu0 %v5194, %s5199
        %v5201 = vpop.permute.xlu0 %5200
        %s5203 = sor.u32 256, 16
        %5204 = vbcast.lane.b32.xlu0 %v5194, %s5203
        %v5205 = vpop.permute.xlu0 %5204
        %s5207 = sor.u32 256, 24
        %5208 = vbcast.lane.b32.xlu0 %v5194, %s5207
        %v5209 = vpop.permute.xlu0 %5208
        %s5211 = sor.u32 256, 32
        %5212 = vbcast.lane.b32.xlu0 %v5194, %s5211
        %v5213 = vpop.permute.xlu0 %5212
        %s5215 = sor.u32 256, 40
        %5216 = vbcast.lane.b32.xlu0 %v5194, %s5215
        %v5217 = vpop.permute.xlu0 %5216
        %s5219 = sor.u32 256, 48
        %5220 = vbcast.lane.b32.xlu0 %v5194, %s5219
        %v5221 = vpop.permute.xlu0 %5220
        %s5223 = sor.u32 256, 56
        %5224 = vbcast.lane.b32.xlu0 %v5194, %s5223
        %v5225 = vpop.permute.xlu0 %5224
        %v5226 = vlaneseq
        %v5227 = vshrl.u32 %v5226, 7
        %v5228 = vsub.s32 7, %v5227
        %v5229 = vrot.slane %v4698, %v5228
        %5231 = vbcast.lane.b32.xlu0 %v5229, 256
        %v5232 = vpop.permute.xlu0 %5231
        %s5234 = sor.u32 256, 8
        %5235 = vbcast.lane.b32.xlu0 %v5229, %s5234
        %v5236 = vpop.permute.xlu0 %5235
        %s5238 = sor.u32 256, 16
        %5239 = vbcast.lane.b32.xlu0 %v5229, %s5238
        %v5240 = vpop.permute.xlu0 %5239
        %s5242 = sor.u32 256, 24
        %5243 = vbcast.lane.b32.xlu0 %v5229, %s5242
        %v5244 = vpop.permute.xlu0 %5243
        %s5246 = sor.u32 256, 32
        %5247 = vbcast.lane.b32.xlu0 %v5229, %s5246
        %v5248 = vpop.permute.xlu0 %5247
        %s5250 = sor.u32 256, 40
        %5251 = vbcast.lane.b32.xlu0 %v5229, %s5250
        %v5252 = vpop.permute.xlu0 %5251
        %s5254 = sor.u32 256, 48
        %5255 = vbcast.lane.b32.xlu0 %v5229, %s5254
        %v5256 = vpop.permute.xlu0 %5255
        %s5258 = sor.u32 256, 56
        %5259 = vbcast.lane.b32.xlu0 %v5229, %s5258
        %v5260 = vpop.permute.xlu0 %5259
        %v5261 = vlaneseq
        %v5262 = vshrl.u32 %v5261, 7
        %v5263 = vsub.s32 0, %v5262
        %v5264 = vrot.slane %v4699, %v5263
        %5266 = vbcast.lane.b32.xlu0 %v5264, 256
        %v5267 = vpop.permute.xlu0 %5266
        %s5269 = sor.u32 256, 8
        %5270 = vbcast.lane.b32.xlu0 %v5264, %s5269
        %v5271 = vpop.permute.xlu0 %5270
        %s5273 = sor.u32 256, 16
        %5274 = vbcast.lane.b32.xlu0 %v5264, %s5273
        %v5275 = vpop.permute.xlu0 %5274
        %s5277 = sor.u32 256, 24
        %5278 = vbcast.lane.b32.xlu0 %v5264, %s5277
        %v5279 = vpop.permute.xlu0 %5278
        %s5281 = sor.u32 256, 32
        %5282 = vbcast.lane.b32.xlu0 %v5264, %s5281
        %v5283 = vpop.permute.xlu0 %5282
        %s5285 = sor.u32 256, 40
        %5286 = vbcast.lane.b32.xlu0 %v5264, %s5285
        %v5287 = vpop.permute.xlu0 %5286
        %s5289 = sor.u32 256, 48
        %5290 = vbcast.lane.b32.xlu0 %v5264, %s5289
        %v5291 = vpop.permute.xlu0 %5290
        %s5293 = sor.u32 256, 56
        %5294 = vbcast.lane.b32.xlu0 %v5264, %s5293
        %v5295 = vpop.permute.xlu0 %5294
        %v5296 = vlaneseq
        %v5297 = vshrl.u32 %v5296, 7
        %v5298 = vsub.s32 1, %v5297
        %v5299 = vrot.slane %v4699, %v5298
        %5301 = vbcast.lane.b32.xlu0 %v5299, 256
        %v5302 = vpop.permute.xlu0 %5301
        %s5304 = sor.u32 256, 8
        %5305 = vbcast.lane.b32.xlu0 %v5299, %s5304
        %v5306 = vpop.permute.xlu0 %5305
        %s5308 = sor.u32 256, 16
        %5309 = vbcast.lane.b32.xlu0 %v5299, %s5308
        %v5310 = vpop.permute.xlu0 %5309
        %s5312 = sor.u32 256, 24
        %5313 = vbcast.lane.b32.xlu0 %v5299, %s5312
        %v5314 = vpop.permute.xlu0 %5313
        %s5316 = sor.u32 256, 32
        %5317 = vbcast.lane.b32.xlu0 %v5299, %s5316
        %v5318 = vpop.permute.xlu0 %5317
        %s5320 = sor.u32 256, 40
        %5321 = vbcast.lane.b32.xlu0 %v5299, %s5320
        %v5322 = vpop.permute.xlu0 %5321
        %s5324 = sor.u32 256, 48
        %5325 = vbcast.lane.b32.xlu0 %v5299, %s5324
        %v5326 = vpop.permute.xlu0 %5325
        %s5328 = sor.u32 256, 56
        %5329 = vbcast.lane.b32.xlu0 %v5299, %s5328
        %v5330 = vpop.permute.xlu0 %5329
        %v5331 = vlaneseq
        %v5332 = vshrl.u32 %v5331, 7
        %v5333 = vsub.s32 2, %v5332
        %v5334 = vrot.slane %v4699, %v5333
        %5336 = vbcast.lane.b32.xlu0 %v5334, 256
        %v5337 = vpop.permute.xlu0 %5336
        %s5339 = sor.u32 256, 8
        %5340 = vbcast.lane.b32.xlu0 %v5334, %s5339
        %v5341 = vpop.permute.xlu0 %5340
        %s5343 = sor.u32 256, 16
        %5344 = vbcast.lane.b32.xlu0 %v5334, %s5343
        %v5345 = vpop.permute.xlu0 %5344
        %s5347 = sor.u32 256, 24
        %5348 = vbcast.lane.b32.xlu0 %v5334, %s5347
        %v5349 = vpop.permute.xlu0 %5348
        %s5351 = sor.u32 256, 32
        %5352 = vbcast.lane.b32.xlu0 %v5334, %s5351
        %v5353 = vpop.permute.xlu0 %5352
        %s5355 = sor.u32 256, 40
        %5356 = vbcast.lane.b32.xlu0 %v5334, %s5355
        %v5357 = vpop.permute.xlu0 %5356
        %s5359 = sor.u32 256, 48
        %5360 = vbcast.lane.b32.xlu0 %v5334, %s5359
        %v5361 = vpop.permute.xlu0 %5360
        %s5363 = sor.u32 256, 56
        %5364 = vbcast.lane.b32.xlu0 %v5334, %s5363
        %v5365 = vpop.permute.xlu0 %5364
        %v5366 = vlaneseq
        %v5367 = vshrl.u32 %v5366, 7
        %v5368 = vsub.s32 3, %v5367
        %v5369 = vrot.slane %v4699, %v5368
        %5371 = vbcast.lane.b32.xlu0 %v5369, 256
        %v5372 = vpop.permute.xlu0 %5371
        %s5374 = sor.u32 256, 8
        %5375 = vbcast.lane.b32.xlu0 %v5369, %s5374
        %v5376 = vpop.permute.xlu0 %5375
        %s5378 = sor.u32 256, 16
        %5379 = vbcast.lane.b32.xlu0 %v5369, %s5378
        %v5380 = vpop.permute.xlu0 %5379
        %s5382 = sor.u32 256, 24
        %5383 = vbcast.lane.b32.xlu0 %v5369, %s5382
        %v5384 = vpop.permute.xlu0 %5383
        %s5386 = sor.u32 256, 32
        %5387 = vbcast.lane.b32.xlu0 %v5369, %s5386
        %v5388 = vpop.permute.xlu0 %5387
        %s5390 = sor.u32 256, 40
        %5391 = vbcast.lane.b32.xlu0 %v5369, %s5390
        %v5392 = vpop.permute.xlu0 %5391
        %s5394 = sor.u32 256, 48
        %5395 = vbcast.lane.b32.xlu0 %v5369, %s5394
        %v5396 = vpop.permute.xlu0 %5395
        %s5398 = sor.u32 256, 56
        %5399 = vbcast.lane.b32.xlu0 %v5369, %s5398
        %v5400 = vpop.permute.xlu0 %5399
        %v5401 = vlaneseq
        %v5402 = vshrl.u32 %v5401, 7
        %v5403 = vsub.s32 4, %v5402
        %v5404 = vrot.slane %v4699, %v5403
        %5406 = vbcast.lane.b32.xlu0 %v5404, 256
        %v5407 = vpop.permute.xlu0 %5406
        %s5409 = sor.u32 256, 8
        %5410 = vbcast.lane.b32.xlu0 %v5404, %s5409
        %v5411 = vpop.permute.xlu0 %5410
        %s5413 = sor.u32 256, 16
        %5414 = vbcast.lane.b32.xlu0 %v5404, %s5413
        %v5415 = vpop.permute.xlu0 %5414
        %s5417 = sor.u32 256, 24
        %5418 = vbcast.lane.b32.xlu0 %v5404, %s5417
        %v5419 = vpop.permute.xlu0 %5418
        %s5421 = sor.u32 256, 32
        %5422 = vbcast.lane.b32.xlu0 %v5404, %s5421
        %v5423 = vpop.permute.xlu0 %5422
        %s5425 = sor.u32 256, 40
        %5426 = vbcast.lane.b32.xlu0 %v5404, %s5425
        %v5427 = vpop.permute.xlu0 %5426
        %s5429 = sor.u32 256, 48
        %5430 = vbcast.lane.b32.xlu0 %v5404, %s5429
        %v5431 = vpop.permute.xlu0 %5430
        %s5433 = sor.u32 256, 56
        %5434 = vbcast.lane.b32.xlu0 %v5404, %s5433
        %v5435 = vpop.permute.xlu0 %5434
        %v5436 = vlaneseq
        %v5437 = vshrl.u32 %v5436, 7
        %v5438 = vsub.s32 5, %v5437
        %v5439 = vrot.slane %v4699, %v5438
        %5441 = vbcast.lane.b32.xlu0 %v5439, 256
        %v5442 = vpop.permute.xlu0 %5441
        %s5444 = sor.u32 256, 8
        %5445 = vbcast.lane.b32.xlu0 %v5439, %s5444
        %v5446 = vpop.permute.xlu0 %5445
        %s5448 = sor.u32 256, 16
        %5449 = vbcast.lane.b32.xlu0 %v5439, %s5448
        %v5450 = vpop.permute.xlu0 %5449
        %s5452 = sor.u32 256, 24
        %5453 = vbcast.lane.b32.xlu0 %v5439, %s5452
        %v5454 = vpop.permute.xlu0 %5453
        %s5456 = sor.u32 256, 32
        %5457 = vbcast.lane.b32.xlu0 %v5439, %s5456
        %v5458 = vpop.permute.xlu0 %5457
        %s5460 = sor.u32 256, 40
        %5461 = vbcast.lane.b32.xlu0 %v5439, %s5460
        %v5462 = vpop.permute.xlu0 %5461
        %s5464 = sor.u32 256, 48
        %5465 = vbcast.lane.b32.xlu0 %v5439, %s5464
        %v5466 = vpop.permute.xlu0 %5465
        %s5468 = sor.u32 256, 56
        %5469 = vbcast.lane.b32.xlu0 %v5439, %s5468
        %v5470 = vpop.permute.xlu0 %5469
        %v5471 = vlaneseq
        %v5472 = vshrl.u32 %v5471, 7
        %v5473 = vsub.s32 6, %v5472
        %v5474 = vrot.slane %v4699, %v5473
        %5476 = vbcast.lane.b32.xlu0 %v5474, 256
        %v5477 = vpop.permute.xlu0 %5476
        %s5479 = sor.u32 256, 8
        %5480 = vbcast.lane.b32.xlu0 %v5474, %s5479
        %v5481 = vpop.permute.xlu0 %5480
        %s5483 = sor.u32 256, 16
        %5484 = vbcast.lane.b32.xlu0 %v5474, %s5483
        %v5485 = vpop.permute.xlu0 %5484
        %s5487 = sor.u32 256, 24
        %5488 = vbcast.lane.b32.xlu0 %v5474, %s5487
        %v5489 = vpop.permute.xlu0 %5488
        %s5491 = sor.u32 256, 32
        %5492 = vbcast.lane.b32.xlu0 %v5474, %s5491
        %v5493 = vpop.permute.xlu0 %5492
        %s5495 = sor.u32 256, 40
        %5496 = vbcast.lane.b32.xlu0 %v5474, %s5495
        %v5497 = vpop.permute.xlu0 %5496
        %s5499 = sor.u32 256, 48
        %5500 = vbcast.lane.b32.xlu0 %v5474, %s5499
        %v5501 = vpop.permute.xlu0 %5500
        %s5503 = sor.u32 256, 56
        %5504 = vbcast.lane.b32.xlu0 %v5474, %s5503
        %v5505 = vpop.permute.xlu0 %5504
        %v5506 = vlaneseq
        %v5507 = vshrl.u32 %v5506, 7
        %v5508 = vsub.s32 7, %v5507
        %v5509 = vrot.slane %v4699, %v5508
        %5511 = vbcast.lane.b32.xlu0 %v5509, 256
        %v5512 = vpop.permute.xlu0 %5511
        %s5514 = sor.u32 256, 8
        %5515 = vbcast.lane.b32.xlu0 %v5509, %s5514
        %v5516 = vpop.permute.xlu0 %5515
        %s5518 = sor.u32 256, 16
        %5519 = vbcast.lane.b32.xlu0 %v5509, %s5518
        %v5520 = vpop.permute.xlu0 %5519
        %s5522 = sor.u32 256, 24
        %5523 = vbcast.lane.b32.xlu0 %v5509, %s5522
        %v5524 = vpop.permute.xlu0 %5523
        %s5526 = sor.u32 256, 32
        %5527 = vbcast.lane.b32.xlu0 %v5509, %s5526
        %v5528 = vpop.permute.xlu0 %5527
        %s5530 = sor.u32 256, 40
        %5531 = vbcast.lane.b32.xlu0 %v5509, %s5530
        %v5532 = vpop.permute.xlu0 %5531
        %s5534 = sor.u32 256, 48
        %5535 = vbcast.lane.b32.xlu0 %v5509, %s5534
        %v5536 = vpop.permute.xlu0 %5535
        %s5538 = sor.u32 256, 56
        %5539 = vbcast.lane.b32.xlu0 %v5509, %s5538
        %v5540 = vpop.permute.xlu0 %5539
        %v5541 = vlaneseq
        %v5542 = vshrl.u32 %v5541, 7
        %v5543 = vsub.s32 0, %v5542
        %v5544 = vrot.slane %v4700, %v5543
        %5546 = vbcast.lane.b32.xlu0 %v5544, 256
        %v5547 = vpop.permute.xlu0 %5546
        %s5549 = sor.u32 256, 8
        %5550 = vbcast.lane.b32.xlu0 %v5544, %s5549
        %v5551 = vpop.permute.xlu0 %5550
        %s5553 = sor.u32 256, 16
        %5554 = vbcast.lane.b32.xlu0 %v5544, %s5553
        %v5555 = vpop.permute.xlu0 %5554
        %s5557 = sor.u32 256, 24
        %5558 = vbcast.lane.b32.xlu0 %v5544, %s5557
        %v5559 = vpop.permute.xlu0 %5558
        %s5561 = sor.u32 256, 32
        %5562 = vbcast.lane.b32.xlu0 %v5544, %s5561
        %v5563 = vpop.permute.xlu0 %5562
        %s5565 = sor.u32 256, 40
        %5566 = vbcast.lane.b32.xlu0 %v5544, %s5565
        %v5567 = vpop.permute.xlu0 %5566
        %s5569 = sor.u32 256, 48
        %5570 = vbcast.lane.b32.xlu0 %v5544, %s5569
        %v5571 = vpop.permute.xlu0 %5570
        %s5573 = sor.u32 256, 56
        %5574 = vbcast.lane.b32.xlu0 %v5544, %s5573
        %v5575 = vpop.permute.xlu0 %5574
        %v5576 = vlaneseq
        %v5577 = vshrl.u32 %v5576, 7
        %v5578 = vsub.s32 1, %v5577
        %v5579 = vrot.slane %v4700, %v5578
        %5581 = vbcast.lane.b32.xlu0 %v5579, 256
        %v5582 = vpop.permute.xlu0 %5581
        %s5584 = sor.u32 256, 8
        %5585 = vbcast.lane.b32.xlu0 %v5579, %s5584
        %v5586 = vpop.permute.xlu0 %5585
        %s5588 = sor.u32 256, 16
        %5589 = vbcast.lane.b32.xlu0 %v5579, %s5588
        %v5590 = vpop.permute.xlu0 %5589
        %s5592 = sor.u32 256, 24
        %5593 = vbcast.lane.b32.xlu0 %v5579, %s5592
        %v5594 = vpop.permute.xlu0 %5593
        %s5596 = sor.u32 256, 32
        %5597 = vbcast.lane.b32.xlu0 %v5579, %s5596
        %v5598 = vpop.permute.xlu0 %5597
        %s5600 = sor.u32 256, 40
        %5601 = vbcast.lane.b32.xlu0 %v5579, %s5600
        %v5602 = vpop.permute.xlu0 %5601
        %s5604 = sor.u32 256, 48
        %5605 = vbcast.lane.b32.xlu0 %v5579, %s5604
        %v5606 = vpop.permute.xlu0 %5605
        %s5608 = sor.u32 256, 56
        %5609 = vbcast.lane.b32.xlu0 %v5579, %s5608
        %v5610 = vpop.permute.xlu0 %5609
        %v5611 = vlaneseq
        %v5612 = vshrl.u32 %v5611, 7
        %v5613 = vsub.s32 2, %v5612
        %v5614 = vrot.slane %v4700, %v5613
        %5616 = vbcast.lane.b32.xlu0 %v5614, 256
        %v5617 = vpop.permute.xlu0 %5616
        %s5619 = sor.u32 256, 8
        %5620 = vbcast.lane.b32.xlu0 %v5614, %s5619
        %v5621 = vpop.permute.xlu0 %5620
        %s5623 = sor.u32 256, 16
        %5624 = vbcast.lane.b32.xlu0 %v5614, %s5623
        %v5625 = vpop.permute.xlu0 %5624
        %s5627 = sor.u32 256, 24
        %5628 = vbcast.lane.b32.xlu0 %v5614, %s5627
        %v5629 = vpop.permute.xlu0 %5628
        %s5631 = sor.u32 256, 32
        %5632 = vbcast.lane.b32.xlu0 %v5614, %s5631
        %v5633 = vpop.permute.xlu0 %5632
        %s5635 = sor.u32 256, 40
        %5636 = vbcast.lane.b32.xlu0 %v5614, %s5635
        %v5637 = vpop.permute.xlu0 %5636
        %s5639 = sor.u32 256, 48
        %5640 = vbcast.lane.b32.xlu0 %v5614, %s5639
        %v5641 = vpop.permute.xlu0 %5640
        %s5643 = sor.u32 256, 56
        %5644 = vbcast.lane.b32.xlu0 %v5614, %s5643
        %v5645 = vpop.permute.xlu0 %5644
        %v5646 = vlaneseq
        %v5647 = vshrl.u32 %v5646, 7
        %v5648 = vsub.s32 3, %v5647
        %v5649 = vrot.slane %v4700, %v5648
        %5651 = vbcast.lane.b32.xlu0 %v5649, 256
        %v5652 = vpop.permute.xlu0 %5651
        %s5654 = sor.u32 256, 8
        %5655 = vbcast.lane.b32.xlu0 %v5649, %s5654
        %v5656 = vpop.permute.xlu0 %5655
        %s5658 = sor.u32 256, 16
        %5659 = vbcast.lane.b32.xlu0 %v5649, %s5658
        %v5660 = vpop.permute.xlu0 %5659
        %s5662 = sor.u32 256, 24
        %5663 = vbcast.lane.b32.xlu0 %v5649, %s5662
        %v5664 = vpop.permute.xlu0 %5663
        %s5666 = sor.u32 256, 32
        %5667 = vbcast.lane.b32.xlu0 %v5649, %s5666
        %v5668 = vpop.permute.xlu0 %5667
        %s5670 = sor.u32 256, 40
        %5671 = vbcast.lane.b32.xlu0 %v5649, %s5670
        %v5672 = vpop.permute.xlu0 %5671
        %s5674 = sor.u32 256, 48
        %5675 = vbcast.lane.b32.xlu0 %v5649, %s5674
        %v5676 = vpop.permute.xlu0 %5675
        %s5678 = sor.u32 256, 56
        %5679 = vbcast.lane.b32.xlu0 %v5649, %s5678
        %v5680 = vpop.permute.xlu0 %5679
        %v5681 = vlaneseq
        %v5682 = vshrl.u32 %v5681, 7
        %v5683 = vsub.s32 4, %v5682
        %v5684 = vrot.slane %v4700, %v5683
        %5686 = vbcast.lane.b32.xlu0 %v5684, 256
        %v5687 = vpop.permute.xlu0 %5686
        %s5689 = sor.u32 256, 8
        %5690 = vbcast.lane.b32.xlu0 %v5684, %s5689
        %v5691 = vpop.permute.xlu0 %5690
        %s5693 = sor.u32 256, 16
        %5694 = vbcast.lane.b32.xlu0 %v5684, %s5693
        %v5695 = vpop.permute.xlu0 %5694
        %s5697 = sor.u32 256, 24
        %5698 = vbcast.lane.b32.xlu0 %v5684, %s5697
        %v5699 = vpop.permute.xlu0 %5698
        %s5701 = sor.u32 256, 32
        %5702 = vbcast.lane.b32.xlu0 %v5684, %s5701
        %v5703 = vpop.permute.xlu0 %5702
        %s5705 = sor.u32 256, 40
        %5706 = vbcast.lane.b32.xlu0 %v5684, %s5705
        %v5707 = vpop.permute.xlu0 %5706
        %s5709 = sor.u32 256, 48
        %5710 = vbcast.lane.b32.xlu0 %v5684, %s5709
        %v5711 = vpop.permute.xlu0 %5710
        %s5713 = sor.u32 256, 56
        %5714 = vbcast.lane.b32.xlu0 %v5684, %s5713
        %v5715 = vpop.permute.xlu0 %5714
        %v5716 = vlaneseq
        %v5717 = vshrl.u32 %v5716, 7
        %v5718 = vsub.s32 5, %v5717
        %v5719 = vrot.slane %v4700, %v5718
        %5721 = vbcast.lane.b32.xlu0 %v5719, 256
        %v5722 = vpop.permute.xlu0 %5721
        %s5724 = sor.u32 256, 8
        %5725 = vbcast.lane.b32.xlu0 %v5719, %s5724
        %v5726 = vpop.permute.xlu0 %5725
        %s5728 = sor.u32 256, 16
        %5729 = vbcast.lane.b32.xlu0 %v5719, %s5728
        %v5730 = vpop.permute.xlu0 %5729
        %s5732 = sor.u32 256, 24
        %5733 = vbcast.lane.b32.xlu0 %v5719, %s5732
        %v5734 = vpop.permute.xlu0 %5733
        %s5736 = sor.u32 256, 32
        %5737 = vbcast.lane.b32.xlu0 %v5719, %s5736
        %v5738 = vpop.permute.xlu0 %5737
        %s5740 = sor.u32 256, 40
        %5741 = vbcast.lane.b32.xlu0 %v5719, %s5740
        %v5742 = vpop.permute.xlu0 %5741
        %s5744 = sor.u32 256, 48
        %5745 = vbcast.lane.b32.xlu0 %v5719, %s5744
        %v5746 = vpop.permute.xlu0 %5745
        %s5748 = sor.u32 256, 56
        %5749 = vbcast.lane.b32.xlu0 %v5719, %s5748
        %v5750 = vpop.permute.xlu0 %5749
        %v5751 = vlaneseq
        %v5752 = vshrl.u32 %v5751, 7
        %v5753 = vsub.s32 6, %v5752
        %v5754 = vrot.slane %v4700, %v5753
        %5756 = vbcast.lane.b32.xlu0 %v5754, 256
        %v5757 = vpop.permute.xlu0 %5756
        %s5759 = sor.u32 256, 8
        %5760 = vbcast.lane.b32.xlu0 %v5754, %s5759
        %v5761 = vpop.permute.xlu0 %5760
        %s5763 = sor.u32 256, 16
        %5764 = vbcast.lane.b32.xlu0 %v5754, %s5763
        %v5765 = vpop.permute.xlu0 %5764
        %s5767 = sor.u32 256, 24
        %5768 = vbcast.lane.b32.xlu0 %v5754, %s5767
        %v5769 = vpop.permute.xlu0 %5768
        %s5771 = sor.u32 256, 32
        %5772 = vbcast.lane.b32.xlu0 %v5754, %s5771
        %v5773 = vpop.permute.xlu0 %5772
        %s5775 = sor.u32 256, 40
        %5776 = vbcast.lane.b32.xlu0 %v5754, %s5775
        %v5777 = vpop.permute.xlu0 %5776
        %s5779 = sor.u32 256, 48
        %5780 = vbcast.lane.b32.xlu0 %v5754, %s5779
        %v5781 = vpop.permute.xlu0 %5780
        %s5783 = sor.u32 256, 56
        %5784 = vbcast.lane.b32.xlu0 %v5754, %s5783
        %v5785 = vpop.permute.xlu0 %5784
        %v5786 = vlaneseq
        %v5787 = vshrl.u32 %v5786, 7
        %v5788 = vsub.s32 7, %v5787
        %v5789 = vrot.slane %v4700, %v5788
        %5791 = vbcast.lane.b32.xlu0 %v5789, 256
        %v5792 = vpop.permute.xlu0 %5791
        %s5794 = sor.u32 256, 8
        %5795 = vbcast.lane.b32.xlu0 %v5789, %s5794
        %v5796 = vpop.permute.xlu0 %5795
        %s5798 = sor.u32 256, 16
        %5799 = vbcast.lane.b32.xlu0 %v5789, %s5798
        %v5800 = vpop.permute.xlu0 %5799
        %s5802 = sor.u32 256, 24
        %5803 = vbcast.lane.b32.xlu0 %v5789, %s5802
        %v5804 = vpop.permute.xlu0 %5803
        %s5806 = sor.u32 256, 32
        %5807 = vbcast.lane.b32.xlu0 %v5789, %s5806
        %v5808 = vpop.permute.xlu0 %5807
        %s5810 = sor.u32 256, 40
        %5811 = vbcast.lane.b32.xlu0 %v5789, %s5810
        %v5812 = vpop.permute.xlu0 %5811
        %s5814 = sor.u32 256, 48
        %5815 = vbcast.lane.b32.xlu0 %v5789, %s5814
        %v5816 = vpop.permute.xlu0 %5815
        %s5818 = sor.u32 256, 56
        %5819 = vbcast.lane.b32.xlu0 %v5789, %s5818
        %v5820 = vpop.permute.xlu0 %5819
        %v5821 = vmul.f32 %v4441, %v4707
        %v5822 = vmul.f32 %v4442, %v4711
        %v5823 = vmul.f32 %v4443, %v4715
        %v5824 = vmul.f32 %v4444, %v4719
        %v5825 = vmul.f32 %v4445, %v4723
        %v5826 = vmul.f32 %v4446, %v4727
        %v5827 = vmul.f32 %v4447, %v4731
        %v5828 = vmul.f32 %v4448, %v4735
        %v5829 = vmul.f32 %v4449, %v4742
        %v5830 = vmul.f32 %v4450, %v4746
        %v5831 = vmul.f32 %v4451, %v4750
        %v5832 = vmul.f32 %v4452, %v4754
        %v5833 = vmul.f32 %v4453, %v4758
        %v5834 = vmul.f32 %v4454, %v4762
        %v5835 = vmul.f32 %v4455, %v4766
        %v5836 = vmul.f32 %v4456, %v4770
        %v5837 = vmul.f32 %v4457, %v4777
        %v5838 = vmul.f32 %v4458, %v4781
        %v5839 = vmul.f32 %v4459, %v4785
        %v5840 = vmul.f32 %v4460, %v4789
        %v5841 = vmul.f32 %v4461, %v4793
        %v5842 = vmul.f32 %v4462, %v4797
        %v5843 = vmul.f32 %v4463, %v4801
        %v5844 = vmul.f32 %v4464, %v4805
        %v5845 = vmul.f32 %v4465, %v4812
        %v5846 = vmul.f32 %v4466, %v4816
        %v5847 = vmul.f32 %v4467, %v4820
        %v5848 = vmul.f32 %v4468, %v4824
        %v5849 = vmul.f32 %v4469, %v4828
        %v5850 = vmul.f32 %v4470, %v4832
        %v5851 = vmul.f32 %v4471, %v4836
        %v5852 = vmul.f32 %v4472, %v4840
        %v5853 = vmul.f32 %v4473, %v4847
        %v5854 = vmul.f32 %v4474, %v4851
        %v5855 = vmul.f32 %v4475, %v4855
        %v5856 = vmul.f32 %v4476, %v4859
        %v5857 = vmul.f32 %v4477, %v4863
        %v5858 = vmul.f32 %v4478, %v4867
        %v5859 = vmul.f32 %v4479, %v4871
        %v5860 = vmul.f32 %v4480, %v4875
        %v5861 = vmul.f32 %v4481, %v4882
        %v5862 = vmul.f32 %v4482, %v4886
        %v5863 = vmul.f32 %v4483, %v4890
        %v5864 = vmul.f32 %v4484, %v4894
        %v5865 = vmul.f32 %v4485, %v4898
        %v5866 = vmul.f32 %v4486, %v4902
        %v5867 = vmul.f32 %v4487, %v4906
        %v5868 = vmul.f32 %v4488, %v4910
        %v5869 = vmul.f32 %v4489, %v4917
        %v5870 = vmul.f32 %v4490, %v4921
        %v5871 = vmul.f32 %v4491, %v4925
        %v5872 = vmul.f32 %v4492, %v4929
        %v5873 = vmul.f32 %v4493, %v4933
        %v5874 = vmul.f32 %v4494, %v4937
        %v5875 = vmul.f32 %v4495, %v4941
        %v5876 = vmul.f32 %v4496, %v4945
        %v5877 = vmul.f32 %v4497, %v4952
        %v5878 = vmul.f32 %v4498, %v4956
        %v5879 = vmul.f32 %v4499, %v4960
        %v5880 = vmul.f32 %v4500, %v4964
        %v5881 = vmul.f32 %v4501, %v4968
        %v5882 = vmul.f32 %v4502, %v4972
        %v5883 = vmul.f32 %v4503, %v4976
        %v5884 = vmul.f32 %v4504, %v4980
        %v5885 = vmul.f32 %v4505, %v4987
        %v5886 = vmul.f32 %v4506, %v4991
        %v5887 = vmul.f32 %v4507, %v4995
        %v5888 = vmul.f32 %v4508, %v4999
        %v5889 = vmul.f32 %v4509, %v5003
        %v5890 = vmul.f32 %v4510, %v5007
        %v5891 = vmul.f32 %v4511, %v5011
        %v5892 = vmul.f32 %v4512, %v5015
        %v5893 = vmul.f32 %v4513, %v5022
        %v5894 = vmul.f32 %v4514, %v5026
        %v5895 = vmul.f32 %v4515, %v5030
        %v5896 = vmul.f32 %v4516, %v5034
        %v5897 = vmul.f32 %v4517, %v5038
        %v5898 = vmul.f32 %v4518, %v5042
        %v5899 = vmul.f32 %v4519, %v5046
        %v5900 = vmul.f32 %v4520, %v5050
        %v5901 = vmul.f32 %v4521, %v5057
        %v5902 = vmul.f32 %v4522, %v5061
        %v5903 = vmul.f32 %v4523, %v5065
        %v5904 = vmul.f32 %v4524, %v5069
        %v5905 = vmul.f32 %v4525, %v5073
        %v5906 = vmul.f32 %v4526, %v5077
        %v5907 = vmul.f32 %v4527, %v5081
        %v5908 = vmul.f32 %v4528, %v5085
        %v5909 = vmul.f32 %v4529, %v5092
        %v5910 = vmul.f32 %v4530, %v5096
        %v5911 = vmul.f32 %v4531, %v5100
        %v5912 = vmul.f32 %v4532, %v5104
        %v5913 = vmul.f32 %v4533, %v5108
        %v5914 = vmul.f32 %v4534, %v5112
        %v5915 = vmul.f32 %v4535, %v5116
        %v5916 = vmul.f32 %v4536, %v5120
        %v5917 = vmul.f32 %v4537, %v5127
        %v5918 = vmul.f32 %v4538, %v5131
        %v5919 = vmul.f32 %v4539, %v5135
        %v5920 = vmul.f32 %v4540, %v5139
        %v5921 = vmul.f32 %v4541, %v5143
        %v5922 = vmul.f32 %v4542, %v5147
        %v5923 = vmul.f32 %v4543, %v5151
        %v5924 = vmul.f32 %v4544, %v5155
        %v5925 = vmul.f32 %v4545, %v5162
        %v5926 = vmul.f32 %v4546, %v5166
        %v5927 = vmul.f32 %v4547, %v5170
        %v5928 = vmul.f32 %v4548, %v5174
        %v5929 = vmul.f32 %v4549, %v5178
        %v5930 = vmul.f32 %v4550, %v5182
        %v5931 = vmul.f32 %v4551, %v5186
        %v5932 = vmul.f32 %v4552, %v5190
        %v5933 = vmul.f32 %v4553, %v5197
        %v5934 = vmul.f32 %v4554, %v5201
        %v5935 = vmul.f32 %v4555, %v5205
        %v5936 = vmul.f32 %v4556, %v5209
        %v5937 = vmul.f32 %v4557, %v5213
        %v5938 = vmul.f32 %v4558, %v5217
        %v5939 = vmul.f32 %v4559, %v5221
        %v5940 = vmul.f32 %v4560, %v5225
        %v5941 = vmul.f32 %v4561, %v5232
        %v5942 = vmul.f32 %v4562, %v5236
        %v5943 = vmul.f32 %v4563, %v5240
        %v5944 = vmul.f32 %v4564, %v5244
        %v5945 = vmul.f32 %v4565, %v5248
        %v5946 = vmul.f32 %v4566, %v5252
        %v5947 = vmul.f32 %v4567, %v5256
        %v5948 = vmul.f32 %v4568, %v5260
        %v5949 = vmul.f32 %v4569, %v5267
        %v5950 = vmul.f32 %v4570, %v5271
        %v5951 = vmul.f32 %v4571, %v5275
        %v5952 = vmul.f32 %v4572, %v5279
        %v5953 = vmul.f32 %v4573, %v5283
        %v5954 = vmul.f32 %v4574, %v5287
        %v5955 = vmul.f32 %v4575, %v5291
        %v5956 = vmul.f32 %v4576, %v5295
        %v5957 = vmul.f32 %v4577, %v5302
        %v5958 = vmul.f32 %v4578, %v5306
        %v5959 = vmul.f32 %v4579, %v5310
        %v5960 = vmul.f32 %v4580, %v5314
        %v5961 = vmul.f32 %v4581, %v5318
        %v5962 = vmul.f32 %v4582, %v5322
        %v5963 = vmul.f32 %v4583, %v5326
        %v5964 = vmul.f32 %v4584, %v5330
        %v5965 = vmul.f32 %v4585, %v5337
        %v5966 = vmul.f32 %v4586, %v5341
        %v5967 = vmul.f32 %v4587, %v5345
        %v5968 = vmul.f32 %v4588, %v5349
        %v5969 = vmul.f32 %v4589, %v5353
        %v5970 = vmul.f32 %v4590, %v5357
        %v5971 = vmul.f32 %v4591, %v5361
        %v5972 = vmul.f32 %v4592, %v5365
        %v5973 = vmul.f32 %v4593, %v5372
        %v5974 = vmul.f32 %v4594, %v5376
        %v5975 = vmul.f32 %v4595, %v5380
        %v5976 = vmul.f32 %v4596, %v5384
        %v5977 = vmul.f32 %v4597, %v5388
        %v5978 = vmul.f32 %v4598, %v5392
        %v5979 = vmul.f32 %v4599, %v5396
        %v5980 = vmul.f32 %v4600, %v5400
        %v5981 = vmul.f32 %v4601, %v5407
        %v5982 = vmul.f32 %v4602, %v5411
        %v5983 = vmul.f32 %v4603, %v5415
        %v5984 = vmul.f32 %v4604, %v5419
        %v5985 = vmul.f32 %v4605, %v5423
        %v5986 = vmul.f32 %v4606, %v5427
        %v5987 = vmul.f32 %v4607, %v5431
        %v5988 = vmul.f32 %v4608, %v5435
        %v5989 = vmul.f32 %v4609, %v5442
        %v5990 = vmul.f32 %v4610, %v5446
        %v5991 = vmul.f32 %v4611, %v5450
        %v5992 = vmul.f32 %v4612, %v5454
        %v5993 = vmul.f32 %v4613, %v5458
        %v5994 = vmul.f32 %v4614, %v5462
        %v5995 = vmul.f32 %v4615, %v5466
        %v5996 = vmul.f32 %v4616, %v5470
        %v5997 = vmul.f32 %v4617, %v5477
        %v5998 = vmul.f32 %v4618, %v5481
        %v5999 = vmul.f32 %v4619, %v5485
        %v6000 = vmul.f32 %v4620, %v5489
        %v6001 = vmul.f32 %v4621, %v5493
        %v6002 = vmul.f32 %v4622, %v5497
        %v6003 = vmul.f32 %v4623, %v5501
        %v6004 = vmul.f32 %v4624, %v5505
        %v6005 = vmul.f32 %v4625, %v5512
        %v6006 = vmul.f32 %v4626, %v5516
        %v6007 = vmul.f32 %v4627, %v5520
        %v6008 = vmul.f32 %v4628, %v5524
        %v6009 = vmul.f32 %v4629, %v5528
        %v6010 = vmul.f32 %v4630, %v5532
        %v6011 = vmul.f32 %v4631, %v5536
        %v6012 = vmul.f32 %v4632, %v5540
        %v6013 = vmul.f32 %v4633, %v5547
        %v6014 = vmul.f32 %v4634, %v5551
        %v6015 = vmul.f32 %v4635, %v5555
        %v6016 = vmul.f32 %v4636, %v5559
        %v6017 = vmul.f32 %v4637, %v5563
        %v6018 = vmul.f32 %v4638, %v5567
        %v6019 = vmul.f32 %v4639, %v5571
        %v6020 = vmul.f32 %v4640, %v5575
        %v6021 = vmul.f32 %v4641, %v5582
        %v6022 = vmul.f32 %v4642, %v5586
        %v6023 = vmul.f32 %v4643, %v5590
        %v6024 = vmul.f32 %v4644, %v5594
        %v6025 = vmul.f32 %v4645, %v5598
        %v6026 = vmul.f32 %v4646, %v5602
        %v6027 = vmul.f32 %v4647, %v5606
        %v6028 = vmul.f32 %v4648, %v5610
        %v6029 = vmul.f32 %v4649, %v5617
        %v6030 = vmul.f32 %v4650, %v5621
        %v6031 = vmul.f32 %v4651, %v5625
        %v6032 = vmul.f32 %v4652, %v5629
        %v6033 = vmul.f32 %v4653, %v5633
        %v6034 = vmul.f32 %v4654, %v5637
        %v6035 = vmul.f32 %v4655, %v5641
        %v6036 = vmul.f32 %v4656, %v5645
        %v6037 = vmul.f32 %v4657, %v5652
        %v6038 = vmul.f32 %v4658, %v5656
        %v6039 = vmul.f32 %v4659, %v5660
        %v6040 = vmul.f32 %v4660, %v5664
        %v6041 = vmul.f32 %v4661, %v5668
        %v6042 = vmul.f32 %v4662, %v5672
        %v6043 = vmul.f32 %v4663, %v5676
        %v6044 = vmul.f32 %v4664, %v5680
        %v6045 = vmul.f32 %v4665, %v5687
        %v6046 = vmul.f32 %v4666, %v5691
        %v6047 = vmul.f32 %v4667, %v5695
        %v6048 = vmul.f32 %v4668, %v5699
        %v6049 = vmul.f32 %v4669, %v5703
        %v6050 = vmul.f32 %v4670, %v5707
        %v6051 = vmul.f32 %v4671, %v5711
        %v6052 = vmul.f32 %v4672, %v5715
        %v6053 = vmul.f32 %v4673, %v5722
        %v6054 = vmul.f32 %v4674, %v5726
        %v6055 = vmul.f32 %v4675, %v5730
        %v6056 = vmul.f32 %v4676, %v5734
        %v6057 = vmul.f32 %v4677, %v5738
        %v6058 = vmul.f32 %v4678, %v5742
        %v6059 = vmul.f32 %v4679, %v5746
        %v6060 = vmul.f32 %v4680, %v5750
        %v6061 = vmul.f32 %v4681, %v5757
        %v6062 = vmul.f32 %v4682, %v5761
        %v6063 = vmul.f32 %v4683, %v5765
        %v6064 = vmul.f32 %v4684, %v5769
        %v6065 = vmul.f32 %v4685, %v5773
        %v6066 = vmul.f32 %v4686, %v5777
        %v6067 = vmul.f32 %v4687, %v5781
        %v6068 = vmul.f32 %v4688, %v5785
        %v6069 = vmul.f32 %v4689, %v5792
        %v6070 = vmul.f32 %v4690, %v5796
        %v6071 = vmul.f32 %v4691, %v5800
        %v6072 = vmul.f32 %v4692, %v5804
        %v6073 = vmul.f32 %v4693, %v5808
        %v6074 = vmul.f32 %v4694, %v5812
        %v6075 = vmul.f32 %v4695, %v5816
        %v6076 = vmul.f32 %v4696, %v5820
        %vm6077 = vcmask 523264
        %v6078 = vsel %vm6077, %v5821, -inf
        %v6079 = vsel %vm6077, %v5822, -inf
        %v6080 = vmax.f32 %v6078, %v6079
        %v6081 = vsel %vm6077, %v5823, -inf
        %v6082 = vmax.f32 %v6080, %v6081
        %v6083 = vsel %vm6077, %v5824, -inf
        %v6084 = vmax.f32 %v6082, %v6083
        %v6085 = vsel %vm6077, %v5825, -inf
        %v6086 = vmax.f32 %v6084, %v6085
        %v6087 = vsel %vm6077, %v5826, -inf
        %v6088 = vmax.f32 %v6086, %v6087
        %v6089 = vsel %vm6077, %v5827, -inf
        %v6090 = vmax.f32 %v6088, %v6089
        %v6091 = vsel %vm6077, %v5828, -inf
        %v6092 = vmax.f32 %v6090, %v6091
        %v6093 = vrot.slane %v6092, 4
        %v6094 = vmax.f32 %v6092, %v6093
        %v6095 = vrot.slane %v6094, 2
        %v6096 = vmax.f32 %v6094, %v6095
        %v6097 = vrot.slane %v6096, 1
        %v6098 = vmax.f32 %v6096, %v6097
        %v6099 = vsel %vm6077, %v5829, -inf
        %v6100 = vsel %vm6077, %v5830, -inf
        %v6101 = vmax.f32 %v6099, %v6100
        %v6102 = vsel %vm6077, %v5831, -inf
        %v6103 = vmax.f32 %v6101, %v6102
        %v6104 = vsel %vm6077, %v5832, -inf
        %v6105 = vmax.f32 %v6103, %v6104
        %v6106 = vsel %vm6077, %v5833, -inf
        %v6107 = vmax.f32 %v6105, %v6106
        %v6108 = vsel %vm6077, %v5834, -inf
        %v6109 = vmax.f32 %v6107, %v6108
        %v6110 = vsel %vm6077, %v5835, -inf
        %v6111 = vmax.f32 %v6109, %v6110
        %v6112 = vsel %vm6077, %v5836, -inf
        %v6113 = vmax.f32 %v6111, %v6112
        %v6114 = vrot.slane %v6113, 4
        %v6115 = vmax.f32 %v6113, %v6114
        %v6116 = vrot.slane %v6115, 2
        %v6117 = vmax.f32 %v6115, %v6116
        %v6118 = vrot.slane %v6117, 1
        %v6119 = vmax.f32 %v6117, %v6118
        %v6120 = vsel %vm6077, %v5837, -inf
        %v6121 = vsel %vm6077, %v5838, -inf
        %v6122 = vmax.f32 %v6120, %v6121
        %v6123 = vsel %vm6077, %v5839, -inf
        %v6124 = vmax.f32 %v6122, %v6123
        %v6125 = vsel %vm6077, %v5840, -inf
        %v6126 = vmax.f32 %v6124, %v6125
        %v6127 = vsel %vm6077, %v5841, -inf
        %v6128 = vmax.f32 %v6126, %v6127
        %v6129 = vsel %vm6077, %v5842, -inf
        %v6130 = vmax.f32 %v6128, %v6129
        %v6131 = vsel %vm6077, %v5843, -inf
        %v6132 = vmax.f32 %v6130, %v6131
        %v6133 = vsel %vm6077, %v5844, -inf
        %v6134 = vmax.f32 %v6132, %v6133
        %v6135 = vrot.slane %v6134, 4
        %v6136 = vmax.f32 %v6134, %v6135
        %v6137 = vrot.slane %v6136, 2
        %v6138 = vmax.f32 %v6136, %v6137
        %v6139 = vrot.slane %v6138, 1
        %v6140 = vmax.f32 %v6138, %v6139
        %v6141 = vsel %vm6077, %v5845, -inf
        %v6142 = vsel %vm6077, %v5846, -inf
        %v6143 = vmax.f32 %v6141, %v6142
        %v6144 = vsel %vm6077, %v5847, -inf
        %v6145 = vmax.f32 %v6143, %v6144
        %v6146 = vsel %vm6077, %v5848, -inf
        %v6147 = vmax.f32 %v6145, %v6146
        %v6148 = vsel %vm6077, %v5849, -inf
        %v6149 = vmax.f32 %v6147, %v6148
        %v6150 = vsel %vm6077, %v5850, -inf
        %v6151 = vmax.f32 %v6149, %v6150
        %v6152 = vsel %vm6077, %v5851, -inf
        %v6153 = vmax.f32 %v6151, %v6152
        %v6154 = vsel %vm6077, %v5852, -inf
        %v6155 = vmax.f32 %v6153, %v6154
        %v6156 = vrot.slane %v6155, 4
        %v6157 = vmax.f32 %v6155, %v6156
        %v6158 = vrot.slane %v6157, 2
        %v6159 = vmax.f32 %v6157, %v6158
        %v6160 = vrot.slane %v6159, 1
        %v6161 = vmax.f32 %v6159, %v6160
        %v6162 = vsel %vm6077, %v5853, -inf
        %v6163 = vsel %vm6077, %v5854, -inf
        %v6164 = vmax.f32 %v6162, %v6163
        %v6165 = vsel %vm6077, %v5855, -inf
        %v6166 = vmax.f32 %v6164, %v6165
        %v6167 = vsel %vm6077, %v5856, -inf
        %v6168 = vmax.f32 %v6166, %v6167
        %v6169 = vsel %vm6077, %v5857, -inf
        %v6170 = vmax.f32 %v6168, %v6169
        %v6171 = vsel %vm6077, %v5858, -inf
        %v6172 = vmax.f32 %v6170, %v6171
        %v6173 = vsel %vm6077, %v5859, -inf
        %v6174 = vmax.f32 %v6172, %v6173
        %v6175 = vsel %vm6077, %v5860, -inf
        %v6176 = vmax.f32 %v6174, %v6175
        %v6177 = vrot.slane %v6176, 4
        %v6178 = vmax.f32 %v6176, %v6177
        %v6179 = vrot.slane %v6178, 2
        %v6180 = vmax.f32 %v6178, %v6179
        %v6181 = vrot.slane %v6180, 1
        %v6182 = vmax.f32 %v6180, %v6181
        %v6183 = vsel %vm6077, %v5861, -inf
        %v6184 = vsel %vm6077, %v5862, -inf
        %v6185 = vmax.f32 %v6183, %v6184
        %v6186 = vsel %vm6077, %v5863, -inf
        %v6187 = vmax.f32 %v6185, %v6186
        %v6188 = vsel %vm6077, %v5864, -inf
        %v6189 = vmax.f32 %v6187, %v6188
        %v6190 = vsel %vm6077, %v5865, -inf
        %v6191 = vmax.f32 %v6189, %v6190
        %v6192 = vsel %vm6077, %v5866, -inf
        %v6193 = vmax.f32 %v6191, %v6192
        %v6194 = vsel %vm6077, %v5867, -inf
        %v6195 = vmax.f32 %v6193, %v6194
        %v6196 = vsel %vm6077, %v5868, -inf
        %v6197 = vmax.f32 %v6195, %v6196
        %v6198 = vrot.slane %v6197, 4
        %v6199 = vmax.f32 %v6197, %v6198
        %v6200 = vrot.slane %v6199, 2
        %v6201 = vmax.f32 %v6199, %v6200
        %v6202 = vrot.slane %v6201, 1
        %v6203 = vmax.f32 %v6201, %v6202
        %v6204 = vsel %vm6077, %v5869, -inf
        %v6205 = vsel %vm6077, %v5870, -inf
        %v6206 = vmax.f32 %v6204, %v6205
        %v6207 = vsel %vm6077, %v5871, -inf
        %v6208 = vmax.f32 %v6206, %v6207
        %v6209 = vsel %vm6077, %v5872, -inf
        %v6210 = vmax.f32 %v6208, %v6209
        %v6211 = vsel %vm6077, %v5873, -inf
        %v6212 = vmax.f32 %v6210, %v6211
        %v6213 = vsel %vm6077, %v5874, -inf
        %v6214 = vmax.f32 %v6212, %v6213
        %v6215 = vsel %vm6077, %v5875, -inf
        %v6216 = vmax.f32 %v6214, %v6215
        %v6217 = vsel %vm6077, %v5876, -inf
        %v6218 = vmax.f32 %v6216, %v6217
        %v6219 = vrot.slane %v6218, 4
        %v6220 = vmax.f32 %v6218, %v6219
        %v6221 = vrot.slane %v6220, 2
        %v6222 = vmax.f32 %v6220, %v6221
        %v6223 = vrot.slane %v6222, 1
        %v6224 = vmax.f32 %v6222, %v6223
        %v6225 = vsel %vm6077, %v5877, -inf
        %v6226 = vsel %vm6077, %v5878, -inf
        %v6227 = vmax.f32 %v6225, %v6226
        %v6228 = vsel %vm6077, %v5879, -inf
        %v6229 = vmax.f32 %v6227, %v6228
        %v6230 = vsel %vm6077, %v5880, -inf
        %v6231 = vmax.f32 %v6229, %v6230
        %v6232 = vsel %vm6077, %v5881, -inf
        %v6233 = vmax.f32 %v6231, %v6232
        %v6234 = vsel %vm6077, %v5882, -inf
        %v6235 = vmax.f32 %v6233, %v6234
        %v6236 = vsel %vm6077, %v5883, -inf
        %v6237 = vmax.f32 %v6235, %v6236
        %v6238 = vsel %vm6077, %v5884, -inf
        %v6239 = vmax.f32 %v6237, %v6238
        %v6240 = vrot.slane %v6239, 4
        %v6241 = vmax.f32 %v6239, %v6240
        %v6242 = vrot.slane %v6241, 2
        %v6243 = vmax.f32 %v6241, %v6242
        %v6244 = vrot.slane %v6243, 1
        %v6245 = vmax.f32 %v6243, %v6244
        %v6246 = vsel %vm6077, %v5885, -inf
        %v6247 = vsel %vm6077, %v5886, -inf
        %v6248 = vmax.f32 %v6246, %v6247
        %v6249 = vsel %vm6077, %v5887, -inf
        %v6250 = vmax.f32 %v6248, %v6249
        %v6251 = vsel %vm6077, %v5888, -inf
        %v6252 = vmax.f32 %v6250, %v6251
        %v6253 = vsel %vm6077, %v5889, -inf
        %v6254 = vmax.f32 %v6252, %v6253
        %v6255 = vsel %vm6077, %v5890, -inf
        %v6256 = vmax.f32 %v6254, %v6255
        %v6257 = vsel %vm6077, %v5891, -inf
        %v6258 = vmax.f32 %v6256, %v6257
        %v6259 = vsel %vm6077, %v5892, -inf
        %v6260 = vmax.f32 %v6258, %v6259
        %v6261 = vrot.slane %v6260, 4
        %v6262 = vmax.f32 %v6260, %v6261
        %v6263 = vrot.slane %v6262, 2
        %v6264 = vmax.f32 %v6262, %v6263
        %v6265 = vrot.slane %v6264, 1
        %v6266 = vmax.f32 %v6264, %v6265
        %v6267 = vsel %vm6077, %v5893, -inf
        %v6268 = vsel %vm6077, %v5894, -inf
        %v6269 = vmax.f32 %v6267, %v6268
        %v6270 = vsel %vm6077, %v5895, -inf
        %v6271 = vmax.f32 %v6269, %v6270
        %v6272 = vsel %vm6077, %v5896, -inf
        %v6273 = vmax.f32 %v6271, %v6272
        %v6274 = vsel %vm6077, %v5897, -inf
        %v6275 = vmax.f32 %v6273, %v6274
        %v6276 = vsel %vm6077, %v5898, -inf
        %v6277 = vmax.f32 %v6275, %v6276
        %v6278 = vsel %vm6077, %v5899, -inf
        %v6279 = vmax.f32 %v6277, %v6278
        %v6280 = vsel %vm6077, %v5900, -inf
        %v6281 = vmax.f32 %v6279, %v6280
        %v6282 = vrot.slane %v6281, 4
        %v6283 = vmax.f32 %v6281, %v6282
        %v6284 = vrot.slane %v6283, 2
        %v6285 = vmax.f32 %v6283, %v6284
        %v6286 = vrot.slane %v6285, 1
        %v6287 = vmax.f32 %v6285, %v6286
        %v6288 = vsel %vm6077, %v5901, -inf
        %v6289 = vsel %vm6077, %v5902, -inf
        %v6290 = vmax.f32 %v6288, %v6289
        %v6291 = vsel %vm6077, %v5903, -inf
        %v6292 = vmax.f32 %v6290, %v6291
        %v6293 = vsel %vm6077, %v5904, -inf
        %v6294 = vmax.f32 %v6292, %v6293
        %v6295 = vsel %vm6077, %v5905, -inf
        %v6296 = vmax.f32 %v6294, %v6295
        %v6297 = vsel %vm6077, %v5906, -inf
        %v6298 = vmax.f32 %v6296, %v6297
        %v6299 = vsel %vm6077, %v5907, -inf
        %v6300 = vmax.f32 %v6298, %v6299
        %v6301 = vsel %vm6077, %v5908, -inf
        %v6302 = vmax.f32 %v6300, %v6301
        %v6303 = vrot.slane %v6302, 4
        %v6304 = vmax.f32 %v6302, %v6303
        %v6305 = vrot.slane %v6304, 2
        %v6306 = vmax.f32 %v6304, %v6305
        %v6307 = vrot.slane %v6306, 1
        %v6308 = vmax.f32 %v6306, %v6307
        %v6309 = vsel %vm6077, %v5909, -inf
        %v6310 = vsel %vm6077, %v5910, -inf
        %v6311 = vmax.f32 %v6309, %v6310
        %v6312 = vsel %vm6077, %v5911, -inf
        %v6313 = vmax.f32 %v6311, %v6312
        %v6314 = vsel %vm6077, %v5912, -inf
        %v6315 = vmax.f32 %v6313, %v6314
        %v6316 = vsel %vm6077, %v5913, -inf
        %v6317 = vmax.f32 %v6315, %v6316
        %v6318 = vsel %vm6077, %v5914, -inf
        %v6319 = vmax.f32 %v6317, %v6318
        %v6320 = vsel %vm6077, %v5915, -inf
        %v6321 = vmax.f32 %v6319, %v6320
        %v6322 = vsel %vm6077, %v5916, -inf
        %v6323 = vmax.f32 %v6321, %v6322
        %v6324 = vrot.slane %v6323, 4
        %v6325 = vmax.f32 %v6323, %v6324
        %v6326 = vrot.slane %v6325, 2
        %v6327 = vmax.f32 %v6325, %v6326
        %v6328 = vrot.slane %v6327, 1
        %v6329 = vmax.f32 %v6327, %v6328
        %v6330 = vsel %vm6077, %v5917, -inf
        %v6331 = vsel %vm6077, %v5918, -inf
        %v6332 = vmax.f32 %v6330, %v6331
        %v6333 = vsel %vm6077, %v5919, -inf
        %v6334 = vmax.f32 %v6332, %v6333
        %v6335 = vsel %vm6077, %v5920, -inf
        %v6336 = vmax.f32 %v6334, %v6335
        %v6337 = vsel %vm6077, %v5921, -inf
        %v6338 = vmax.f32 %v6336, %v6337
        %v6339 = vsel %vm6077, %v5922, -inf
        %v6340 = vmax.f32 %v6338, %v6339
        %v6341 = vsel %vm6077, %v5923, -inf
        %v6342 = vmax.f32 %v6340, %v6341
        %v6343 = vsel %vm6077, %v5924, -inf
        %v6344 = vmax.f32 %v6342, %v6343
        %v6345 = vrot.slane %v6344, 4
        %v6346 = vmax.f32 %v6344, %v6345
        %v6347 = vrot.slane %v6346, 2
        %v6348 = vmax.f32 %v6346, %v6347
        %v6349 = vrot.slane %v6348, 1
        %v6350 = vmax.f32 %v6348, %v6349
        %v6351 = vsel %vm6077, %v5925, -inf
        %v6352 = vsel %vm6077, %v5926, -inf
        %v6353 = vmax.f32 %v6351, %v6352
        %v6354 = vsel %vm6077, %v5927, -inf
        %v6355 = vmax.f32 %v6353, %v6354
        %v6356 = vsel %vm6077, %v5928, -inf
        %v6357 = vmax.f32 %v6355, %v6356
        %v6358 = vsel %vm6077, %v5929, -inf
        %v6359 = vmax.f32 %v6357, %v6358
        %v6360 = vsel %vm6077, %v5930, -inf
        %v6361 = vmax.f32 %v6359, %v6360
        %v6362 = vsel %vm6077, %v5931, -inf
        %v6363 = vmax.f32 %v6361, %v6362
        %v6364 = vsel %vm6077, %v5932, -inf
        %v6365 = vmax.f32 %v6363, %v6364
        %v6366 = vrot.slane %v6365, 4
        %v6367 = vmax.f32 %v6365, %v6366
        %v6368 = vrot.slane %v6367, 2
        %v6369 = vmax.f32 %v6367, %v6368
        %v6370 = vrot.slane %v6369, 1
        %v6371 = vmax.f32 %v6369, %v6370
        %v6372 = vsel %vm6077, %v5933, -inf
        %v6373 = vsel %vm6077, %v5934, -inf
        %v6374 = vmax.f32 %v6372, %v6373
        %v6375 = vsel %vm6077, %v5935, -inf
        %v6376 = vmax.f32 %v6374, %v6375
        %v6377 = vsel %vm6077, %v5936, -inf
        %v6378 = vmax.f32 %v6376, %v6377
        %v6379 = vsel %vm6077, %v5937, -inf
        %v6380 = vmax.f32 %v6378, %v6379
        %v6381 = vsel %vm6077, %v5938, -inf
        %v6382 = vmax.f32 %v6380, %v6381
        %v6383 = vsel %vm6077, %v5939, -inf
        %v6384 = vmax.f32 %v6382, %v6383
        %v6385 = vsel %vm6077, %v5940, -inf
        %v6386 = vmax.f32 %v6384, %v6385
        %v6387 = vrot.slane %v6386, 4
        %v6388 = vmax.f32 %v6386, %v6387
        %v6389 = vrot.slane %v6388, 2
        %v6390 = vmax.f32 %v6388, %v6389
        %v6391 = vrot.slane %v6390, 1
        %v6392 = vmax.f32 %v6390, %v6391
        %v6393 = vsel %vm6077, %v5941, -inf
        %v6394 = vsel %vm6077, %v5942, -inf
        %v6395 = vmax.f32 %v6393, %v6394
        %v6396 = vsel %vm6077, %v5943, -inf
        %v6397 = vmax.f32 %v6395, %v6396
        %v6398 = vsel %vm6077, %v5944, -inf
        %v6399 = vmax.f32 %v6397, %v6398
        %v6400 = vsel %vm6077, %v5945, -inf
        %v6401 = vmax.f32 %v6399, %v6400
        %v6402 = vsel %vm6077, %v5946, -inf
        %v6403 = vmax.f32 %v6401, %v6402
        %v6404 = vsel %vm6077, %v5947, -inf
        %v6405 = vmax.f32 %v6403, %v6404
        %v6406 = vsel %vm6077, %v5948, -inf
        %v6407 = vmax.f32 %v6405, %v6406
        %v6408 = vrot.slane %v6407, 4
        %v6409 = vmax.f32 %v6407, %v6408
        %v6410 = vrot.slane %v6409, 2
        %v6411 = vmax.f32 %v6409, %v6410
        %v6412 = vrot.slane %v6411, 1
        %v6413 = vmax.f32 %v6411, %v6412
        %v6414 = vsel %vm6077, %v5949, -inf
        %v6415 = vsel %vm6077, %v5950, -inf
        %v6416 = vmax.f32 %v6414, %v6415
        %v6417 = vsel %vm6077, %v5951, -inf
        %v6418 = vmax.f32 %v6416, %v6417
        %v6419 = vsel %vm6077, %v5952, -inf
        %v6420 = vmax.f32 %v6418, %v6419
        %v6421 = vsel %vm6077, %v5953, -inf
        %v6422 = vmax.f32 %v6420, %v6421
        %v6423 = vsel %vm6077, %v5954, -inf
        %v6424 = vmax.f32 %v6422, %v6423
        %v6425 = vsel %vm6077, %v5955, -inf
        %v6426 = vmax.f32 %v6424, %v6425
        %v6427 = vsel %vm6077, %v5956, -inf
        %v6428 = vmax.f32 %v6426, %v6427
        %v6429 = vrot.slane %v6428, 4
        %v6430 = vmax.f32 %v6428, %v6429
        %v6431 = vrot.slane %v6430, 2
        %v6432 = vmax.f32 %v6430, %v6431
        %v6433 = vrot.slane %v6432, 1
        %v6434 = vmax.f32 %v6432, %v6433
        %v6435 = vsel %vm6077, %v5957, -inf
        %v6436 = vsel %vm6077, %v5958, -inf
        %v6437 = vmax.f32 %v6435, %v6436
        %v6438 = vsel %vm6077, %v5959, -inf
        %v6439 = vmax.f32 %v6437, %v6438
        %v6440 = vsel %vm6077, %v5960, -inf
        %v6441 = vmax.f32 %v6439, %v6440
        %v6442 = vsel %vm6077, %v5961, -inf
        %v6443 = vmax.f32 %v6441, %v6442
        %v6444 = vsel %vm6077, %v5962, -inf
        %v6445 = vmax.f32 %v6443, %v6444
        %v6446 = vsel %vm6077, %v5963, -inf
        %v6447 = vmax.f32 %v6445, %v6446
        %v6448 = vsel %vm6077, %v5964, -inf
        %v6449 = vmax.f32 %v6447, %v6448
        %v6450 = vrot.slane %v6449, 4
        %v6451 = vmax.f32 %v6449, %v6450
        %v6452 = vrot.slane %v6451, 2
        %v6453 = vmax.f32 %v6451, %v6452
        %v6454 = vrot.slane %v6453, 1
        %v6455 = vmax.f32 %v6453, %v6454
        %v6456 = vsel %vm6077, %v5965, -inf
        %v6457 = vsel %vm6077, %v5966, -inf
        %v6458 = vmax.f32 %v6456, %v6457
        %v6459 = vsel %vm6077, %v5967, -inf
        %v6460 = vmax.f32 %v6458, %v6459
        %v6461 = vsel %vm6077, %v5968, -inf
        %v6462 = vmax.f32 %v6460, %v6461
        %v6463 = vsel %vm6077, %v5969, -inf
        %v6464 = vmax.f32 %v6462, %v6463
        %v6465 = vsel %vm6077, %v5970, -inf
        %v6466 = vmax.f32 %v6464, %v6465
        %v6467 = vsel %vm6077, %v5971, -inf
        %v6468 = vmax.f32 %v6466, %v6467
        %v6469 = vsel %vm6077, %v5972, -inf
        %v6470 = vmax.f32 %v6468, %v6469
        %v6471 = vrot.slane %v6470, 4
        %v6472 = vmax.f32 %v6470, %v6471
        %v6473 = vrot.slane %v6472, 2
        %v6474 = vmax.f32 %v6472, %v6473
        %v6475 = vrot.slane %v6474, 1
        %v6476 = vmax.f32 %v6474, %v6475
        %v6477 = vsel %vm6077, %v5973, -inf
        %v6478 = vsel %vm6077, %v5974, -inf
        %v6479 = vmax.f32 %v6477, %v6478
        %v6480 = vsel %vm6077, %v5975, -inf
        %v6481 = vmax.f32 %v6479, %v6480
        %v6482 = vsel %vm6077, %v5976, -inf
        %v6483 = vmax.f32 %v6481, %v6482
        %v6484 = vsel %vm6077, %v5977, -inf
        %v6485 = vmax.f32 %v6483, %v6484
        %v6486 = vsel %vm6077, %v5978, -inf
        %v6487 = vmax.f32 %v6485, %v6486
        %v6488 = vsel %vm6077, %v5979, -inf
        %v6489 = vmax.f32 %v6487, %v6488
        %v6490 = vsel %vm6077, %v5980, -inf
        %v6491 = vmax.f32 %v6489, %v6490
        %v6492 = vrot.slane %v6491, 4
        %v6493 = vmax.f32 %v6491, %v6492
        %v6494 = vrot.slane %v6493, 2
        %v6495 = vmax.f32 %v6493, %v6494
        %v6496 = vrot.slane %v6495, 1
        %v6497 = vmax.f32 %v6495, %v6496
        %v6498 = vsel %vm6077, %v5981, -inf
        %v6499 = vsel %vm6077, %v5982, -inf
        %v6500 = vmax.f32 %v6498, %v6499
        %v6501 = vsel %vm6077, %v5983, -inf
        %v6502 = vmax.f32 %v6500, %v6501
        %v6503 = vsel %vm6077, %v5984, -inf
        %v6504 = vmax.f32 %v6502, %v6503
        %v6505 = vsel %vm6077, %v5985, -inf
        %v6506 = vmax.f32 %v6504, %v6505
        %v6507 = vsel %vm6077, %v5986, -inf
        %v6508 = vmax.f32 %v6506, %v6507
        %v6509 = vsel %vm6077, %v5987, -inf
        %v6510 = vmax.f32 %v6508, %v6509
        %v6511 = vsel %vm6077, %v5988, -inf
        %v6512 = vmax.f32 %v6510, %v6511
        %v6513 = vrot.slane %v6512, 4
        %v6514 = vmax.f32 %v6512, %v6513
        %v6515 = vrot.slane %v6514, 2
        %v6516 = vmax.f32 %v6514, %v6515
        %v6517 = vrot.slane %v6516, 1
        %v6518 = vmax.f32 %v6516, %v6517
        %v6519 = vsel %vm6077, %v5989, -inf
        %v6520 = vsel %vm6077, %v5990, -inf
        %v6521 = vmax.f32 %v6519, %v6520
        %v6522 = vsel %vm6077, %v5991, -inf
        %v6523 = vmax.f32 %v6521, %v6522
        %v6524 = vsel %vm6077, %v5992, -inf
        %v6525 = vmax.f32 %v6523, %v6524
        %v6526 = vsel %vm6077, %v5993, -inf
        %v6527 = vmax.f32 %v6525, %v6526
        %v6528 = vsel %vm6077, %v5994, -inf
        %v6529 = vmax.f32 %v6527, %v6528
        %v6530 = vsel %vm6077, %v5995, -inf
        %v6531 = vmax.f32 %v6529, %v6530
        %v6532 = vsel %vm6077, %v5996, -inf
        %v6533 = vmax.f32 %v6531, %v6532
        %v6534 = vrot.slane %v6533, 4
        %v6535 = vmax.f32 %v6533, %v6534
        %v6536 = vrot.slane %v6535, 2
        %v6537 = vmax.f32 %v6535, %v6536
        %v6538 = vrot.slane %v6537, 1
        %v6539 = vmax.f32 %v6537, %v6538
        %v6540 = vsel %vm6077, %v5997, -inf
        %v6541 = vsel %vm6077, %v5998, -inf
        %v6542 = vmax.f32 %v6540, %v6541
        %v6543 = vsel %vm6077, %v5999, -inf
        %v6544 = vmax.f32 %v6542, %v6543
        %v6545 = vsel %vm6077, %v6000, -inf
        %v6546 = vmax.f32 %v6544, %v6545
        %v6547 = vsel %vm6077, %v6001, -inf
        %v6548 = vmax.f32 %v6546, %v6547
        %v6549 = vsel %vm6077, %v6002, -inf
        %v6550 = vmax.f32 %v6548, %v6549
        %v6551 = vsel %vm6077, %v6003, -inf
        %v6552 = vmax.f32 %v6550, %v6551
        %v6553 = vsel %vm6077, %v6004, -inf
        %v6554 = vmax.f32 %v6552, %v6553
        %v6555 = vrot.slane %v6554, 4
        %v6556 = vmax.f32 %v6554, %v6555
        %v6557 = vrot.slane %v6556, 2
        %v6558 = vmax.f32 %v6556, %v6557
        %v6559 = vrot.slane %v6558, 1
        %v6560 = vmax.f32 %v6558, %v6559
        %v6561 = vsel %vm6077, %v6005, -inf
        %v6562 = vsel %vm6077, %v6006, -inf
        %v6563 = vmax.f32 %v6561, %v6562
        %v6564 = vsel %vm6077, %v6007, -inf
        %v6565 = vmax.f32 %v6563, %v6564
        %v6566 = vsel %vm6077, %v6008, -inf
        %v6567 = vmax.f32 %v6565, %v6566
        %v6568 = vsel %vm6077, %v6009, -inf
        %v6569 = vmax.f32 %v6567, %v6568
        %v6570 = vsel %vm6077, %v6010, -inf
        %v6571 = vmax.f32 %v6569, %v6570
        %v6572 = vsel %vm6077, %v6011, -inf
        %v6573 = vmax.f32 %v6571, %v6572
        %v6574 = vsel %vm6077, %v6012, -inf
        %v6575 = vmax.f32 %v6573, %v6574
        %v6576 = vrot.slane %v6575, 4
        %v6577 = vmax.f32 %v6575, %v6576
        %v6578 = vrot.slane %v6577, 2
        %v6579 = vmax.f32 %v6577, %v6578
        %v6580 = vrot.slane %v6579, 1
        %v6581 = vmax.f32 %v6579, %v6580
        %v6582 = vsel %vm6077, %v6013, -inf
        %v6583 = vsel %vm6077, %v6014, -inf
        %v6584 = vmax.f32 %v6582, %v6583
        %v6585 = vsel %vm6077, %v6015, -inf
        %v6586 = vmax.f32 %v6584, %v6585
        %v6587 = vsel %vm6077, %v6016, -inf
        %v6588 = vmax.f32 %v6586, %v6587
        %v6589 = vsel %vm6077, %v6017, -inf
        %v6590 = vmax.f32 %v6588, %v6589
        %v6591 = vsel %vm6077, %v6018, -inf
        %v6592 = vmax.f32 %v6590, %v6591
        %v6593 = vsel %vm6077, %v6019, -inf
        %v6594 = vmax.f32 %v6592, %v6593
        %v6595 = vsel %vm6077, %v6020, -inf
        %v6596 = vmax.f32 %v6594, %v6595
        %v6597 = vrot.slane %v6596, 4
        %v6598 = vmax.f32 %v6596, %v6597
        %v6599 = vrot.slane %v6598, 2
        %v6600 = vmax.f32 %v6598, %v6599
        %v6601 = vrot.slane %v6600, 1
        %v6602 = vmax.f32 %v6600, %v6601
        %v6603 = vsel %vm6077, %v6021, -inf
        %v6604 = vsel %vm6077, %v6022, -inf
        %v6605 = vmax.f32 %v6603, %v6604
        %v6606 = vsel %vm6077, %v6023, -inf
        %v6607 = vmax.f32 %v6605, %v6606
        %v6608 = vsel %vm6077, %v6024, -inf
        %v6609 = vmax.f32 %v6607, %v6608
        %v6610 = vsel %vm6077, %v6025, -inf
        %v6611 = vmax.f32 %v6609, %v6610
        %v6612 = vsel %vm6077, %v6026, -inf
        %v6613 = vmax.f32 %v6611, %v6612
        %v6614 = vsel %vm6077, %v6027, -inf
        %v6615 = vmax.f32 %v6613, %v6614
        %v6616 = vsel %vm6077, %v6028, -inf
        %v6617 = vmax.f32 %v6615, %v6616
        %v6618 = vrot.slane %v6617, 4
        %v6619 = vmax.f32 %v6617, %v6618
        %v6620 = vrot.slane %v6619, 2
        %v6621 = vmax.f32 %v6619, %v6620
        %v6622 = vrot.slane %v6621, 1
        %v6623 = vmax.f32 %v6621, %v6622
        %v6624 = vsel %vm6077, %v6029, -inf
        %v6625 = vsel %vm6077, %v6030, -inf
        %v6626 = vmax.f32 %v6624, %v6625
        %v6627 = vsel %vm6077, %v6031, -inf
        %v6628 = vmax.f32 %v6626, %v6627
        %v6629 = vsel %vm6077, %v6032, -inf
        %v6630 = vmax.f32 %v6628, %v6629
        %v6631 = vsel %vm6077, %v6033, -inf
        %v6632 = vmax.f32 %v6630, %v6631
        %v6633 = vsel %vm6077, %v6034, -inf
        %v6634 = vmax.f32 %v6632, %v6633
        %v6635 = vsel %vm6077, %v6035, -inf
        %v6636 = vmax.f32 %v6634, %v6635
        %v6637 = vsel %vm6077, %v6036, -inf
        %v6638 = vmax.f32 %v6636, %v6637
        %v6639 = vrot.slane %v6638, 4
        %v6640 = vmax.f32 %v6638, %v6639
        %v6641 = vrot.slane %v6640, 2
        %v6642 = vmax.f32 %v6640, %v6641
        %v6643 = vrot.slane %v6642, 1
        %v6644 = vmax.f32 %v6642, %v6643
        %v6645 = vsel %vm6077, %v6037, -inf
        %v6646 = vsel %vm6077, %v6038, -inf
        %v6647 = vmax.f32 %v6645, %v6646
        %v6648 = vsel %vm6077, %v6039, -inf
        %v6649 = vmax.f32 %v6647, %v6648
        %v6650 = vsel %vm6077, %v6040, -inf
        %v6651 = vmax.f32 %v6649, %v6650
        %v6652 = vsel %vm6077, %v6041, -inf
        %v6653 = vmax.f32 %v6651, %v6652
        %v6654 = vsel %vm6077, %v6042, -inf
        %v6655 = vmax.f32 %v6653, %v6654
        %v6656 = vsel %vm6077, %v6043, -inf
        %v6657 = vmax.f32 %v6655, %v6656
        %v6658 = vsel %vm6077, %v6044, -inf
        %v6659 = vmax.f32 %v6657, %v6658
        %v6660 = vrot.slane %v6659, 4
        %v6661 = vmax.f32 %v6659, %v6660
        %v6662 = vrot.slane %v6661, 2
        %v6663 = vmax.f32 %v6661, %v6662
        %v6664 = vrot.slane %v6663, 1
        %v6665 = vmax.f32 %v6663, %v6664
        %v6666 = vsel %vm6077, %v6045, -inf
        %v6667 = vsel %vm6077, %v6046, -inf
        %v6668 = vmax.f32 %v6666, %v6667
        %v6669 = vsel %vm6077, %v6047, -inf
        %v6670 = vmax.f32 %v6668, %v6669
        %v6671 = vsel %vm6077, %v6048, -inf
        %v6672 = vmax.f32 %v6670, %v6671
        %v6673 = vsel %vm6077, %v6049, -inf
        %v6674 = vmax.f32 %v6672, %v6673
        %v6675 = vsel %vm6077, %v6050, -inf
        %v6676 = vmax.f32 %v6674, %v6675
        %v6677 = vsel %vm6077, %v6051, -inf
        %v6678 = vmax.f32 %v6676, %v6677
        %v6679 = vsel %vm6077, %v6052, -inf
        %v6680 = vmax.f32 %v6678, %v6679
        %v6681 = vrot.slane %v6680, 4
        %v6682 = vmax.f32 %v6680, %v6681
        %v6683 = vrot.slane %v6682, 2
        %v6684 = vmax.f32 %v6682, %v6683
        %v6685 = vrot.slane %v6684, 1
        %v6686 = vmax.f32 %v6684, %v6685
        %v6687 = vsel %vm6077, %v6053, -inf
        %v6688 = vsel %vm6077, %v6054, -inf
        %v6689 = vmax.f32 %v6687, %v6688
        %v6690 = vsel %vm6077, %v6055, -inf
        %v6691 = vmax.f32 %v6689, %v6690
        %v6692 = vsel %vm6077, %v6056, -inf
        %v6693 = vmax.f32 %v6691, %v6692
        %v6694 = vsel %vm6077, %v6057, -inf
        %v6695 = vmax.f32 %v6693, %v6694
        %v6696 = vsel %vm6077, %v6058, -inf
        %v6697 = vmax.f32 %v6695, %v6696
        %v6698 = vsel %vm6077, %v6059, -inf
        %v6699 = vmax.f32 %v6697, %v6698
        %v6700 = vsel %vm6077, %v6060, -inf
        %v6701 = vmax.f32 %v6699, %v6700
        %v6702 = vrot.slane %v6701, 4
        %v6703 = vmax.f32 %v6701, %v6702
        %v6704 = vrot.slane %v6703, 2
        %v6705 = vmax.f32 %v6703, %v6704
        %v6706 = vrot.slane %v6705, 1
        %v6707 = vmax.f32 %v6705, %v6706
        %v6708 = vsel %vm6077, %v6061, -inf
        %v6709 = vsel %vm6077, %v6062, -inf
        %v6710 = vmax.f32 %v6708, %v6709
        %v6711 = vsel %vm6077, %v6063, -inf
        %v6712 = vmax.f32 %v6710, %v6711
        %v6713 = vsel %vm6077, %v6064, -inf
        %v6714 = vmax.f32 %v6712, %v6713
        %v6715 = vsel %vm6077, %v6065, -inf
        %v6716 = vmax.f32 %v6714, %v6715
        %v6717 = vsel %vm6077, %v6066, -inf
        %v6718 = vmax.f32 %v6716, %v6717
        %v6719 = vsel %vm6077, %v6067, -inf
        %v6720 = vmax.f32 %v6718, %v6719
        %v6721 = vsel %vm6077, %v6068, -inf
        %v6722 = vmax.f32 %v6720, %v6721
        %v6723 = vrot.slane %v6722, 4
        %v6724 = vmax.f32 %v6722, %v6723
        %v6725 = vrot.slane %v6724, 2
        %v6726 = vmax.f32 %v6724, %v6725
        %v6727 = vrot.slane %v6726, 1
        %v6728 = vmax.f32 %v6726, %v6727
        %v6729 = vsel %vm6077, %v6069, -inf
        %v6730 = vsel %vm6077, %v6070, -inf
        %v6731 = vmax.f32 %v6729, %v6730
        %v6732 = vsel %vm6077, %v6071, -inf
        %v6733 = vmax.f32 %v6731, %v6732
        %v6734 = vsel %vm6077, %v6072, -inf
        %v6735 = vmax.f32 %v6733, %v6734
        %v6736 = vsel %vm6077, %v6073, -inf
        %v6737 = vmax.f32 %v6735, %v6736
        %v6738 = vsel %vm6077, %v6074, -inf
        %v6739 = vmax.f32 %v6737, %v6738
        %v6740 = vsel %vm6077, %v6075, -inf
        %v6741 = vmax.f32 %v6739, %v6740
        %v6742 = vsel %vm6077, %v6076, -inf
        %v6743 = vmax.f32 %v6741, %v6742
        %v6744 = vrot.slane %v6743, 4
        %v6745 = vmax.f32 %v6743, %v6744
        %v6746 = vrot.slane %v6745, 2
        %v6747 = vmax.f32 %v6745, %v6746
        %v6748 = vrot.slane %v6747, 1
        %v6749 = vmax.f32 %v6747, %v6748
        %vm6782 = vcmask 1041409
        %v6783 = vsel %vm6782, %v6119, %v6098
        %vm6784 = vcmask 1042434
        %v6785 = vsel %vm6784, %v6140, %v6783
        %vm6786 = vcmask 1043459
        %v6787 = vsel %vm6786, %v6161, %v6785
        %vm6788 = vcmask 1044484
        %v6789 = vsel %vm6788, %v6182, %v6787
        %vm6790 = vcmask 1045509
        %v6791 = vsel %vm6790, %v6203, %v6789
        %vm6792 = vcmask 1046534
        %v6793 = vsel %vm6792, %v6224, %v6791
        %vm6794 = vcmask 1047559
        %v6795 = vsel %vm6794, %v6245, %v6793
        %v6796 = vsel %vm6782, %v6287, %v6266
        %v6797 = vsel %vm6784, %v6308, %v6796
        %v6798 = vsel %vm6786, %v6329, %v6797
        %v6799 = vsel %vm6788, %v6350, %v6798
        %v6800 = vsel %vm6790, %v6371, %v6799
        %v6801 = vsel %vm6792, %v6392, %v6800
        %v6802 = vsel %vm6794, %v6413, %v6801
        %v6803 = vsel %vm6782, %v6455, %v6434
        %v6804 = vsel %vm6784, %v6476, %v6803
        %v6805 = vsel %vm6786, %v6497, %v6804
        %v6806 = vsel %vm6788, %v6518, %v6805
        %v6807 = vsel %vm6790, %v6539, %v6806
        %v6808 = vsel %vm6792, %v6560, %v6807
        %v6809 = vsel %vm6794, %v6581, %v6808
        %v6810 = vsel %vm6782, %v6623, %v6602
        %v6811 = vsel %vm6784, %v6644, %v6810
        %v6812 = vsel %vm6786, %v6665, %v6811
        %v6813 = vsel %vm6788, %v6686, %v6812
        %v6814 = vsel %vm6790, %v6707, %v6813
        %v6815 = vsel %vm6792, %v6728, %v6814
        %v6816 = vsel %vm6794, %v6749, %v6815
        %6821 = vst.msk [vmem:[%s234] sm:$0xff] %vm6077, %v6795
        %6822 = vst.msk [vmem:[%s234 + $0x8] sm:$0xff] %vm6077, %v6802
        %6823 = vst.msk [vmem:[%s234 + $0x10] sm:$0xff] %vm6077, %v6809
        %6824 = vst.msk [vmem:[%s234 + $0x18] sm:$0xff] %vm6077, %v6816
        %s6825 = sand.u32 %s142, 1
        %s6826 = scalar_lea.sflag [#allocation3], %s6825
        %s6827 = sand.u32 %s142, 1
        %s6828 = smul.addr %s6827, 32
        %s6829 = scalar_lea.vmem [#allocation2], %s6828
        // Predicated region
        $region41: #{tpu_custom_call.1} parent=39 // pred_check
          %p6830 = pneg %p152
        $region42: #{tpu_custom_call.1} parent=39 // pred_check_branch
          %6832 = sbr.rel (%p6830) target = $region44
        $region43: #{tpu_custom_call.1} parent=39 // pred_region
          %s6833 = smul.u32 4, %s19
          %s6835 = ssub.s32 512, 512
          %6836 = vsyncadd %s6826, %s6835
          %s6837 = smul.addr %s6833, 128
          %s6838 = scalar_lea.hbm %s5, %s6837
          %s6839 = sshll.u32 %s6829, 4
          %s6840 = int_to_ptr.vmem [resolvable:$true] %s6839
          %6845 = dma.vmem_to_hbm [thread:$0]  %s6840, 512, %s6838, %s6826, 128, 128, 8
        $region44: #{tpu_custom_call.1} parent=39 // pred_fallthru
          _
      $region40: #{tpu_custom_call.1} parent=5 // pred_fallthru
        _
      %p6846 = scmp.le.s32.totalorder 2, %s14
      // Predicated region
      $region45: #{tpu_custom_call.1} parent=5 // pred_check
        %p6847 = pneg %p6846
      $region46: #{tpu_custom_call.1} parent=5 // pred_check_branch
        %6849 = sbr.rel (%p6847) target = $region48
      $region47: #{tpu_custom_call.1} parent=5 // pred_region
        %s6850 = ssub.s32 %s14, 2
        // Predicated region
        $region49: #{tpu_custom_call.1} parent=47 // pred_check
          %p6851 = pneg %p158
        $region50: #{tpu_custom_call.1} parent=47 // pred_check_branch
          %6853 = sbr.rel (%p6851) target = $region52
        $region51: #{tpu_custom_call.1} parent=47 // pred_region
          %s6854 = sand.u32 %s143, 1
          %s6855 = scalar_lea.sflag [#allocation3], %s6854
          %s6856 = sand.u32 %s143, 1
          %s6857 = smul.addr %s6856, 32
          %s6858 = scalar_lea.vmem [#allocation2], %s6857
          %6859 = dma.done %s6855, 512
        $region52: #{tpu_custom_call.1} parent=47 // pred_fallthru
          _
      $region48: #{tpu_custom_call.1} parent=5 // pred_fallthru
        _
    $region6: #{tpu_custom_call.1} parent=1 // loop_footer
      %s18 = sadd.s32 1, %s14
    $region7: #{tpu_custom_call.1} parent=1 // loop_footer_branch
      %13 = sbr.rel target = $region3
    $region8: #{tpu_custom_call.1} parent=1 // loop_exit
      _
    %6860 = vsyncpa [#allocation3], 1
    %s6861 = scalar_lea.sflag [#allocation3], 1
    %6862 = vsyncpa %s6861, 1

</llo_original>
